<compile_context>
chip_gen: v6e
topology: v6e:2x2x1
jax: 0.10.0
libtpu: 0.0.40
codegen_flags: <defaults>
</compile_context>

<pallas_src>
import functools

import jax
import jax.numpy as jnp
from jax import lax
from jax.experimental import pallas as pl
from jax.experimental.pallas import tpu as pltpu


def _lstm_chunk_kernel(g_ref, whh_ref, y_ref, h_scr, c_scr, *, hidden_size, chunk):
    """One chunk of time steps for one direction.

    Grid = (direction, time_chunk); direction is "parallel", time "arbitrary".

    g_ref  : (1, CHUNK, B, 4H) f32  precomputed x @ W_ih^T + b (this direction,
             this time chunk; for the backward direction the chunk index is
             already time-reversed by the index_map)
    whh_ref: (1, H, 4H) bf16        hidden->gates weight (pre-transposed)
    y_ref  : (1, CHUNK, B, H)       per-step hidden states (original time order)
    h_scr, c_scr : (B, H) f32       recurrent state carried across time chunks
    """
    H = hidden_size
    d = pl.program_id(0)   # 0 = forward, 1 = backward
    c = pl.program_id(1)   # time-chunk counter (per direction)

    @pl.when(c == 0)
    def _():
        h_scr[...] = jnp.zeros_like(h_scr)
        c_scr[...] = jnp.zeros_like(c_scr)

    whh = whh_ref[0]  # (H, 4H) bf16, resident across the whole sweep

    def step(k, carry):
        h, c_state = carry
        # forward: in-chunk index k; backward: chunk processed in reverse order
        idx = k + d * (chunk - 1 - 2 * k)
        gates = g_ref[0, idx] + jnp.dot(
            h.astype(jnp.bfloat16), whh, preferred_element_type=jnp.float32
        )  # (B, 4H), PyTorch gate order: i, f, g, o
        i_g = jax.nn.sigmoid(gates[:, 0 * H:1 * H])
        f_g = jax.nn.sigmoid(gates[:, 1 * H:2 * H])
        g_g = jnp.tanh(gates[:, 2 * H:3 * H])
        o_g = jax.nn.sigmoid(gates[:, 3 * H:4 * H])
        c_new = f_g * c_state + i_g * g_g
        h_new = o_g * jnp.tanh(c_new)
        y_ref[0, idx] = h_new.astype(y_ref.dtype)
        return h_new, c_new

    h_fin, c_fin = lax.fori_loop(
        0, chunk, step, (h_scr[...], c_scr[...]), unroll=True
    )
    h_scr[...] = h_fin
    c_scr[...] = c_fin


def _bidir_recurrence(g, whh, hidden_size, chunk, out_dtype):
    """Fused bidirectional LSTM recurrence.

    g  : (2, T_pad, B, 4H) f32  precomputed input gates (incl. bias) per
         direction; padded time steps (if any) are all-zero -> state-neutral.
    whh: (2, 4H, H)             per-direction hidden->gates weights (PyTorch).
    Returns y: (2, T_pad, B, H) out_dtype, per-step hidden states in original
    time order (y[0] = forward direction, y[1] = backward direction).
    """
    _, T_pad, B, _ = g.shape
    H = hidden_size
    nc = T_pad // chunk
    whh_t = jnp.transpose(whh, (0, 2, 1)).astype(jnp.bfloat16)  # (2, H, 4H)

    kernel = functools.partial(_lstm_chunk_kernel, hidden_size=H, chunk=chunk)

    # fwd (d=0): time chunk c ; bwd (d=1): time chunk nc-1-c  (branch-free form)
    tmap = lambda d, c: (d, c + d * (nc - 1 - 2 * c), 0, 0)

    y = pl.pallas_call(
        kernel,
        out_shape=jax.ShapeDtypeStruct((2, T_pad, B, H), out_dtype),
        grid_spec=pltpu.PrefetchScalarGridSpec(
            num_scalar_prefetch=0,
            grid=(2, nc),
            in_specs=[
                pl.BlockSpec((1, chunk, B, 4 * H), tmap),
                pl.BlockSpec((1, H, 4 * H), lambda d, c: (d, 0, 0)),
            ],
            out_specs=pl.BlockSpec((1, chunk, B, H), tmap),
            scratch_shapes=[
                pltpu.VMEM((B, H), jnp.float32),  # h state
                pltpu.VMEM((B, H), jnp.float32),  # c state
            ],
        ),
        compiler_params=pltpu.CompilerParams(
            # direction axis is independent (megacore-able); time is recurrent.
            dimension_semantics=("parallel", "arbitrary"),
        ),
    )(g, whh_t)
    return y


def _choose_chunk(T, target):
    """Pick a time-chunk size and (possibly padded) sequence length.

    Prefer an exact divisor of T in [target/2, target] (no padding waste);
    otherwise use `target` and pad T up with zero-gate steps (state-neutral).
    """
    target = max(1, min(target, T))
    lo = max(1, target // 2)
    for c in range(target, lo - 1, -1):
        if T % c == 0:
            return c, T
    t_pad = ((T + target - 1) // target) * target
    return target, t_pad


def init_lstm_params(key, input_size, hidden_size, num_layers, bidirectional=True):
    """Deterministic init matching PyTorch shapes: U(-1/sqrt(H), 1/sqrt(H))."""
    H = hidden_size
    num_dir = 2 if bidirectional else 1
    k = 1.0 / jnp.sqrt(jnp.float32(H))
    params = []
    for layer in range(num_layers):
        in_size = input_size if layer == 0 else H * num_dir
        layer_params = []
        for _ in range(num_dir):
            key, k1, k2, k3, k4 = jax.random.split(key, 5)
            w_ih = jax.random.uniform(k1, (4 * H, in_size), jnp.float32, -k, k)
            w_hh = jax.random.uniform(k2, (4 * H, H), jnp.float32, -k, k)
            b_ih = jax.random.uniform(k3, (4 * H,), jnp.float32, -k, k)
            b_hh = jax.random.uniform(k4, (4 * H,), jnp.float32, -k, k)
            layer_params.append((w_ih, w_hh, b_ih, b_hh))
        params.append(layer_params)
    return params


def lstm_layer_forward(x_bti, params, hidden_size, time_chunk=16):
    """Equivalent of LSTMLayer.forward (eval mode).

    x_bti: (B, T, I) batch-first input.
    Returns (outputs, hidden):
      outputs: (B, T, 2*H)  -- bidirectional, dropout = identity (eval)
      hidden : (num_layers*2, B, H), ordered [l0_fwd, l0_bwd, l1_fwd, l1_bwd, ...]
    """
    H = hidden_size
    B, T, _ = x_bti.shape
    chunk, T_pad = _choose_chunk(T, time_chunk)
    num_layers = len(params)

    # Pad batch to a sublane multiple (>=8) for dense vregs; sliced off at end.
    B_pad = max(8, ((B + 7) // 8) * 8)
    x_tbi = jnp.transpose(x_bti, (1, 0, 2)).astype(jnp.float32)  # (T, B, I)
    if B_pad != B:
        x_tbi = jnp.pad(x_tbi, ((0, 0), (0, B_pad - B), (0, 0)))

    hiddens = []
    y_prev = None  # (2, T_pad, B_pad, H) per-direction outputs of previous layer
    for layer_idx, layer_params in enumerate(params):
        wih = jnp.stack([p[0] for p in layer_params])              # (2, 4H, in)
        whh = jnp.stack([p[1] for p in layer_params])              # (2, 4H, H)
        bias = jnp.stack([p[2] + p[3] for p in layer_params])      # (2, 4H)

        # Hoisted input projection: one big bf16 GEMM over the whole sequence.
        if layer_idx == 0:
            g = jnp.einsum(
                "tbi,dgi->dtbg",
                x_tbi.astype(jnp.bfloat16),
                wih.astype(jnp.bfloat16),
                preferred_element_type=jnp.float32,
            )
        else:
            # Fold the [y_fwd | y_bwd] concat into the GEMM: W_ih is (4H, 2H);
            # split its input dim into (prev_direction, H). Only real time
            # steps feed the projection (padded steps re-added as zeros below).
            wih_split = wih.reshape(2, 4 * H, 2, H)                # (d, g, p, h)
            g = jnp.einsum(
                "ptbh,dgph->dtbg",
                y_prev[:, :T].astype(jnp.bfloat16),
                wih_split.astype(jnp.bfloat16),
                preferred_element_type=jnp.float32,
            )
        g = g + bias[:, None, None, :]                             # (2, T, B, 4H)
        if T_pad != T:
            # Zero-gate padding: with zero initial state these steps leave
            # (h, c) == 0, so the backward pass (which sees them first) is safe.
            g = jnp.pad(g, ((0, 0), (0, T_pad - T), (0, 0), (0, 0)))

        # Intermediate layers write bf16 (consumed as bf16 by the next GEMM);
        # the final layer writes f32 for full-fidelity outputs.
        out_dtype = jnp.float32 if layer_idx == num_layers - 1 else jnp.bfloat16
        y_prev = _bidir_recurrence(g, whh, H, chunk, out_dtype)    # (2,T_pad,B,H)

        # Final hidden states: last processed step of each direction.
        hiddens.append(y_prev[0, T - 1].astype(jnp.float32))   # forward: t = T-1
        hiddens.append(y_prev[1, 0].astype(jnp.float32))       # backward: t = 0
        # TODO(synk): inter-layer dropout (p=0.1) omitted (eval-mode identity).

    outputs = jnp.concatenate([y_prev[0, :T], y_prev[1, :T]], axis=-1)  # (T,B,2H)
    outputs = jnp.transpose(outputs, (1, 0, 2))[:B].astype(jnp.float32)  # (B,T,2H)
    hidden = jnp.stack(hiddens, axis=0)[:, :B]                           # (2L,B,H)
    # Final self.dropout(outputs): identity in eval mode.
    return outputs, hidden


def lstm_layer_reference(x_bti, params, hidden_size):
    """Pure-JAX f32 reference (lax.scan) for correctness checking."""
    H = hidden_size
    x = jnp.transpose(x_bti, (1, 0, 2)).astype(jnp.float32)  # (T, B, I)
    _, B, _ = x.shape

    def run_dir(x_seq, w_ih, w_hh, b, reverse):
        def step(carry, x_t):
            h, c = carry
            gates = x_t @ w_ih.T + h @ w_hh.T + b
            i = jax.nn.sigmoid(gates[:, 0 * H:1 * H])
            f = jax.nn.sigmoid(gates[:, 1 * H:2 * H])
            g = jnp.tanh(gates[:, 2 * H:3 * H])
            o = jax.nn.sigmoid(gates[:, 3 * H:4 * H])
            c = f * c + i * g
            h = o * jnp.tanh(c)
            return (h, c), h

        xs = x_seq[::-1] if reverse else x_seq
        init = (jnp.zeros((B, H), jnp.float32), jnp.zeros((B, H), jnp.float32))
        (hT, _), ys = lax.scan(step, init, xs)
        ys = ys[::-1] if reverse else ys
        return ys, hT

    layer_in = x
    hiddens = []
    for layer_params in params:
        outs = []
        for di, (w_ih, w_hh, b_ih, b_hh) in enumerate(layer_params):
            ys, hT = run_dir(layer_in, w_ih, w_hh, b_ih + b_hh, reverse=(di == 1))
            outs.append(ys)
            hiddens.append(hT)
        layer_in = jnp.concatenate(outs, axis=-1)
    return jnp.transpose(layer_in, (1, 0, 2)), jnp.stack(hiddens, axis=0)


if __name__ == "__main__":
    B, T = 2, 8
    input_size, hidden_size, num_layers = 16, 32, 2

    key = jax.random.PRNGKey(0)
    key, pkey, xkey = jax.random.split(key, 3)
    params = init_lstm_params(pkey, input_size, hidden_size, num_layers,
                              bidirectional=True)
    x = jax.random.normal(xkey, (B, T, input_size), jnp.float32)

    run = jax.jit(lambda xx: lstm_layer_forward(xx, params, hidden_size))
    outputs, hidden = run(x)
    jax.block_until_ready((outputs, hidden))

    assert outputs.shape == (B, T, 2 * hidden_size), outputs.shape
    assert hidden.shape == (num_layers * 2, B, hidden_size), hidden.shape

    # Numerical check vs. pure-f32 reference (kernel uses bf16 matmul operands
    # and bf16 inter-layer activations, f32 accumulation/state, so allow a
    # loose tolerance).
    out_ref, hid_ref = lstm_layer_reference(x, params, hidden_size)
    err_o = float(jnp.max(jnp.abs(outputs - out_ref)))
    err_h = float(jnp.max(jnp.abs(hidden - hid_ref)))
    assert err_o < 1e-1 and err_h < 1e-1, (err_o, err_h)

    print("KERNEL_OK")
</pallas_src>

<mosaic_0001>
module attributes {stable_mosaic.version = 11 : i64} {
  func.func @_lstm_chunk_kernel(%arg0: i32, %arg1: i32, %arg2: memref<1x8x8x128xf32, #tpu.memory_space<vmem>>, %arg3: memref<1x32x128xbf16, #tpu.memory_space<vmem>>, %arg4: memref<1x8x8x32xbf16, #tpu.memory_space<vmem>>, %arg5: memref<8x32xf32, #tpu.memory_space<vmem>>, %arg6: memref<8x32xf32, #tpu.memory_space<vmem>>) attributes {dimension_semantics = [#tpu.dimension_semantics<parallel>, #tpu.dimension_semantics<arbitrary>], iteration_bounds = array<i64: 2, 1>, scalar_prefetch = 0 : i64, scratch_operands = 2 : i64, tpu.core_type = #tpu.core_type<tc>, window_params = [{transform_indices = @transform_0, window_bounds = array<i64: 1, 8, 8, 128>}, {transform_indices = @transform_1, window_bounds = array<i64: 1, 32, 128>}, {transform_indices = @transform_2, window_bounds = array<i64: 1, 8, 8, 32>}]} {
    %c0_i32 = arith.constant 0 : i32
    %0 = arith.cmpi eq, %arg1, %c0_i32 : i32
    %1 = arith.extui %0 : i1 to i32
    %c0_i32_0 = arith.constant 0 : i32
    %2 = arith.cmpi ne, %1, %c0_i32_0 : i32
    scf.if %2 {
      %cst_107 = arith.constant 0.000000e+00 : f32
      %329 = vector.broadcast %cst_107 : f32 to vector<8x32xf32>
      %c0_108 = arith.constant 0 : index
      %c0_109 = arith.constant 0 : index
      %330 = vector.load %arg5[%c0_108, %c0_109] : memref<8x32xf32, #tpu.memory_space<vmem>>, vector<8x32xf32>
      tpu.vector_store %arg5[%c0_108, %c0_109], %329 {strides = array<i32>} : memref<8x32xf32, #tpu.memory_space<vmem>>, vector<8x32xf32>,
      %cst_110 = arith.constant 0.000000e+00 : f32
      %331 = vector.broadcast %cst_110 : f32 to vector<8x32xf32>
      %c0_111 = arith.constant 0 : index
      %c0_112 = arith.constant 0 : index
      %332 = vector.load %arg6[%c0_111, %c0_112] : memref<8x32xf32, #tpu.memory_space<vmem>>, vector<8x32xf32>
      tpu.vector_store %arg6[%c0_111, %c0_112], %331 {strides = array<i32>} : memref<8x32xf32, #tpu.memory_space<vmem>>, vector<8x32xf32>,
    } else {
    }
    %c0 = arith.constant 0 : index
    %c0_1 = arith.constant 0 : index
    %c0_2 = arith.constant 0 : index
    %3 = vector.load %arg3[%c0, %c0_1, %c0_2] : memref<1x32x128xbf16, #tpu.memory_space<vmem>>, vector<1x32x128xbf16>
    %4 = vector.shape_cast %3 : vector<1x32x128xbf16> to vector<32x128xbf16>
    %c0_3 = arith.constant 0 : index
    %c0_4 = arith.constant 0 : index
    %5 = vector.load %arg5[%c0_3, %c0_4] : memref<8x32xf32, #tpu.memory_space<vmem>>, vector<8x32xf32>
    %c0_5 = arith.constant 0 : index
    %c0_6 = arith.constant 0 : index
    %6 = vector.load %arg6[%c0_5, %c0_6] : memref<8x32xf32, #tpu.memory_space<vmem>>, vector<8x32xf32>
    %c0_i32_7 = arith.constant 0 : i32
    %c2_i32 = arith.constant 2 : i32
    %7 = arith.muli %c2_i32, %c0_i32_7 : i32
    %c7_i32 = arith.constant 7 : i32
    %8 = arith.subi %c7_i32, %7 : i32
    %9 = arith.muli %arg0, %8 : i32
    %10 = arith.addi %c0_i32_7, %9 : i32
    %c0_8 = arith.constant 0 : index
    %11 = arith.index_cast %10 : i32 to index
    %c0_9 = arith.constant 0 : index
    %c0_10 = arith.constant 0 : index
    %12 = vector.load %arg2[%c0_8, %11, %c0_9, %c0_10] : memref<1x8x8x128xf32, #tpu.memory_space<vmem>>, vector<1x1x8x128xf32>
    %13 = vector.shape_cast %12 : vector<1x1x8x128xf32> to vector<8x128xf32>
    %14 = arith.truncf %5 : vector<8x32xf32> to vector<8x32xbf16>
    %cst = arith.constant dense<0.000000e+00> : vector<8x128xf32>
    %15 = tpu.matmul %14, %4, %cst {dimension_numbers = #tpu.dot_dimension_numbers<[1], [0], [0], [1], [0, 0, 1, 1], [], []>} : vector<8x32xbf16>, vector<32x128xbf16>, vector<8x128xf32> -> vector<8x128xf32>
    %16 = arith.addf %13, %15 : vector<8x128xf32>
    %17 = vector.extract_strided_slice %16 {offsets = [0, 0], sizes = [8, 32], strides = [1, 1]} : vector<8x128xf32> to vector<8x32xf32>
    %18 = arith.negf %17 : vector<8x32xf32>
    %19 = math.exp %18 : vector<8x32xf32>
    %cst_11 = arith.constant 1.000000e+00 : f32
    %20 = vector.broadcast %cst_11 : f32 to vector<8x32xf32>
    %21 = arith.addf %20, %19 : vector<8x32xf32>
    %22 = arith.divf %20, %21 : vector<8x32xf32>
    %23 = vector.extract_strided_slice %16 {offsets = [0, 32], sizes = [8, 32], strides = [1, 1]} : vector<8x128xf32> to vector<8x32xf32>
    %24 = arith.negf %23 : vector<8x32xf32>
    %25 = math.exp %24 : vector<8x32xf32>
    %cst_12 = arith.constant 1.000000e+00 : f32
    %26 = vector.broadcast %cst_12 : f32 to vector<8x32xf32>
    %27 = arith.addf %26, %25 : vector<8x32xf32>
    %28 = arith.divf %26, %27 : vector<8x32xf32>
    %29 = vector.extract_strided_slice %16 {offsets = [0, 64], sizes = [8, 32], strides = [1, 1]} : vector<8x128xf32> to vector<8x32xf32>
    %30 = math.tanh %29 : vector<8x32xf32>
    %31 = vector.extract_strided_slice %16 {offsets = [0, 96], sizes = [8, 32], strides = [1, 1]} : vector<8x128xf32> to vector<8x32xf32>
    %32 = arith.negf %31 : vector<8x32xf32>
    %33 = math.exp %32 : vector<8x32xf32>
    %cst_13 = arith.constant 1.000000e+00 : f32
    %34 = vector.broadcast %cst_13 : f32 to vector<8x32xf32>
    %35 = arith.addf %34, %33 : vector<8x32xf32>
    %36 = arith.divf %34, %35 : vector<8x32xf32>
    %37 = arith.mulf %28, %6 : vector<8x32xf32>
    %38 = arith.mulf %22, %30 : vector<8x32xf32>
    %39 = arith.addf %37, %38 : vector<8x32xf32>
    %40 = math.tanh %39 : vector<8x32xf32>
    %41 = arith.mulf %36, %40 : vector<8x32xf32>
    %42 = arith.truncf %41 : vector<8x32xf32> to vector<8x32xbf16>
    %c0_14 = arith.constant 0 : index
    %43 = arith.index_cast %10 : i32 to index
    %c0_15 = arith.constant 0 : index
    %c0_16 = arith.constant 0 : index
    %44 = vector.load %arg4[%c0_14, %43, %c0_15, %c0_16] : memref<1x8x8x32xbf16, #tpu.memory_space<vmem>>, vector<1x1x8x32xbf16>
    %45 = vector.shape_cast %44 : vector<1x1x8x32xbf16> to vector<8x32xbf16>
    %46 = vector.shape_cast %42 : vector<8x32xbf16> to vector<1x1x8x32xbf16>
    tpu.vector_store %arg4[%c0_14, %43, %c0_15, %c0_16], %46 {strides = array<i32>} : memref<1x8x8x32xbf16, #tpu.memory_space<vmem>>, vector<1x1x8x32xbf16>,
    %c1_i32 = arith.constant 1 : i32
    %c2_i32_17 = arith.constant 2 : i32
    %47 = arith.muli %c2_i32_17, %c1_i32 : i32
    %c7_i32_18 = arith.constant 7 : i32
    %48 = arith.subi %c7_i32_18, %47 : i32
    %49 = arith.muli %arg0, %48 : i32
    %50 = arith.addi %c1_i32, %49 : i32
    %c0_19 = arith.constant 0 : index
    %51 = arith.index_cast %50 : i32 to index
    %c0_20 = arith.constant 0 : index
    %c0_21 = arith.constant 0 : index
    %52 = vector.load %arg2[%c0_19, %51, %c0_20, %c0_21] : memref<1x8x8x128xf32, #tpu.memory_space<vmem>>, vector<1x1x8x128xf32>
    %53 = vector.shape_cast %52 : vector<1x1x8x128xf32> to vector<8x128xf32>
    %54 = arith.truncf %41 : vector<8x32xf32> to vector<8x32xbf16>
    %cst_22 = arith.constant dense<0.000000e+00> : vector<8x128xf32>
    %55 = tpu.matmul %54, %4, %cst_22 {dimension_numbers = #tpu.dot_dimension_numbers<[1], [0], [0], [1], [0, 0, 1, 1], [], []>} : vector<8x32xbf16>, vector<32x128xbf16>, vector<8x128xf32> -> vector<8x128xf32>
    %56 = arith.addf %53, %55 : vector<8x128xf32>
    %57 = vector.extract_strided_slice %56 {offsets = [0, 0], sizes = [8, 32], strides = [1, 1]} : vector<8x128xf32> to vector<8x32xf32>
    %58 = arith.negf %57 : vector<8x32xf32>
    %59 = math.exp %58 : vector<8x32xf32>
    %cst_23 = arith.constant 1.000000e+00 : f32
    %60 = vector.broadcast %cst_23 : f32 to vector<8x32xf32>
    %61 = arith.addf %60, %59 : vector<8x32xf32>
    %62 = arith.divf %60, %61 : vector<8x32xf32>
    %63 = vector.extract_strided_slice %56 {offsets = [0, 32], sizes = [8, 32], strides = [1, 1]} : vector<8x128xf32> to vector<8x32xf32>
    %64 = arith.negf %63 : vector<8x32xf32>
    %65 = math.exp %64 : vector<8x32xf32>
    %cst_24 = arith.constant 1.000000e+00 : f32
    %66 = vector.broadcast %cst_24 : f32 to vector<8x32xf32>
    %67 = arith.addf %66, %65 : vector<8x32xf32>
    %68 = arith.divf %66, %67 : vector<8x32xf32>
    %69 = vector.extract_strided_slice %56 {offsets = [0, 64], sizes = [8, 32], strides = [1, 1]} : vector<8x128xf32> to vector<8x32xf32>
    %70 = math.tanh %69 : vector<8x32xf32>
    %71 = vector.extract_strided_slice %56 {offsets = [0, 96], sizes = [8, 32], strides = [1, 1]} : vector<8x128xf32> to vector<8x32xf32>
    %72 = arith.negf %71 : vector<8x32xf32>
    %73 = math.exp %72 : vector<8x32xf32>
    %cst_25 = arith.constant 1.000000e+00 : f32
    %74 = vector.broadcast %cst_25 : f32 to vector<8x32xf32>
    %75 = arith.addf %74, %73 : vector<8x32xf32>
    %76 = arith.divf %74, %75 : vector<8x32xf32>
    %77 = arith.mulf %68, %39 : vector<8x32xf32>
    %78 = arith.mulf %62, %70 : vector<8x32xf32>
    %79 = arith.addf %77, %78 : vector<8x32xf32>
    %80 = math.tanh %79 : vector<8x32xf32>
    %81 = arith.mulf %76, %80 : vector<8x32xf32>
    %82 = arith.truncf %81 : vector<8x32xf32> to vector<8x32xbf16>
    %c0_26 = arith.constant 0 : index
    %83 = arith.index_cast %50 : i32 to index
    %c0_27 = arith.constant 0 : index
    %c0_28 = arith.constant 0 : index
    %84 = vector.load %arg4[%c0_26, %83, %c0_27, %c0_28] : memref<1x8x8x32xbf16, #tpu.memory_space<vmem>>, vector<1x1x8x32xbf16>
    %85 = vector.shape_cast %84 : vector<1x1x8x32xbf16> to vector<8x32xbf16>
    %86 = vector.shape_cast %82 : vector<8x32xbf16> to vector<1x1x8x32xbf16>
    tpu.vector_store %arg4[%c0_26, %83, %c0_27, %c0_28], %86 {strides = array<i32>} : memref<1x8x8x32xbf16, #tpu.memory_space<vmem>>, vector<1x1x8x32xbf16>,
    %c2_i32_29 = arith.constant 2 : i32
    %c2_i32_30 = arith.constant 2 : i32
    %87 = arith.muli %c2_i32_30, %c2_i32_29 : i32
    %c7_i32_31 = arith.constant 7 : i32
    %88 = arith.subi %c7_i32_31, %87 : i32
    %89 = arith.muli %arg0, %88 : i32
    %90 = arith.addi %c2_i32_29, %89 : i32
    %c0_32 = arith.constant 0 : index
    %91 = arith.index_cast %90 : i32 to index
    %c0_33 = arith.constant 0 : index
    %c0_34 = arith.constant 0 : index
    %92 = vector.load %arg2[%c0_32, %91, %c0_33, %c0_34] : memref<1x8x8x128xf32, #tpu.memory_space<vmem>>, vector<1x1x8x128xf32>
    %93 = vector.shape_cast %92 : vector<1x1x8x128xf32> to vector<8x128xf32>
    %94 = arith.truncf %81 : vector<8x32xf32> to vector<8x32xbf16>
    %cst_35 = arith.constant dense<0.000000e+00> : vector<8x128xf32>
    %95 = tpu.matmul %94, %4, %cst_35 {dimension_numbers = #tpu.dot_dimension_numbers<[1], [0], [0], [1], [0, 0, 1, 1], [], []>} : vector<8x32xbf16>, vector<32x128xbf16>, vector<8x128xf32> -> vector<8x128xf32>
    %96 = arith.addf %93, %95 : vector<8x128xf32>
    %97 = vector.extract_strided_slice %96 {offsets = [0, 0], sizes = [8, 32], strides = [1, 1]} : vector<8x128xf32> to vector<8x32xf32>
    %98 = arith.negf %97 : vector<8x32xf32>
    %99 = math.exp %98 : vector<8x32xf32>
    %cst_36 = arith.constant 1.000000e+00 : f32
    %100 = vector.broadcast %cst_36 : f32 to vector<8x32xf32>
    %101 = arith.addf %100, %99 : vector<8x32xf32>
    %102 = arith.divf %100, %101 : vector<8x32xf32>
    %103 = vector.extract_strided_slice %96 {offsets = [0, 32], sizes = [8, 32], strides = [1, 1]} : vector<8x128xf32> to vector<8x32xf32>
    %104 = arith.negf %103 : vector<8x32xf32>
    %105 = math.exp %104 : vector<8x32xf32>
    %cst_37 = arith.constant 1.000000e+00 : f32
    %106 = vector.broadcast %cst_37 : f32 to vector<8x32xf32>
    %107 = arith.addf %106, %105 : vector<8x32xf32>
    %108 = arith.divf %106, %107 : vector<8x32xf32>
    %109 = vector.extract_strided_slice %96 {offsets = [0, 64], sizes = [8, 32], strides = [1, 1]} : vector<8x128xf32> to vector<8x32xf32>
    %110 = math.tanh %109 : vector<8x32xf32>
    %111 = vector.extract_strided_slice %96 {offsets = [0, 96], sizes = [8, 32], strides = [1, 1]} : vector<8x128xf32> to vector<8x32xf32>
    %112 = arith.negf %111 : vector<8x32xf32>
    %113 = math.exp %112 : vector<8x32xf32>
    %cst_38 = arith.constant 1.000000e+00 : f32
    %114 = vector.broadcast %cst_38 : f32 to vector<8x32xf32>
    %115 = arith.addf %114, %113 : vector<8x32xf32>
    %116 = arith.divf %114, %115 : vector<8x32xf32>
    %117 = arith.mulf %108, %79 : vector<8x32xf32>
    %118 = arith.mulf %102, %110 : vector<8x32xf32>
    %119 = arith.addf %117, %118 : vector<8x32xf32>
    %120 = math.tanh %119 : vector<8x32xf32>
    %121 = arith.mulf %116, %120 : vector<8x32xf32>
    %122 = arith.truncf %121 : vector<8x32xf32> to vector<8x32xbf16>
    %c0_39 = arith.constant 0 : index
    %123 = arith.index_cast %90 : i32 to index
    %c0_40 = arith.constant 0 : index
    %c0_41 = arith.constant 0 : index
    %124 = vector.load %arg4[%c0_39, %123, %c0_40, %c0_41] : memref<1x8x8x32xbf16, #tpu.memory_space<vmem>>, vector<1x1x8x32xbf16>
    %125 = vector.shape_cast %124 : vector<1x1x8x32xbf16> to vector<8x32xbf16>
    %126 = vector.shape_cast %122 : vector<8x32xbf16> to vector<1x1x8x32xbf16>
    tpu.vector_store %arg4[%c0_39, %123, %c0_40, %c0_41], %126 {strides = array<i32>} : memref<1x8x8x32xbf16, #tpu.memory_space<vmem>>, vector<1x1x8x32xbf16>,
    %c3_i32 = arith.constant 3 : i32
    %c2_i32_42 = arith.constant 2 : i32
    %127 = arith.muli %c2_i32_42, %c3_i32 : i32
    %c7_i32_43 = arith.constant 7 : i32
    %128 = arith.subi %c7_i32_43, %127 : i32
    %129 = arith.muli %arg0, %128 : i32
    %130 = arith.addi %c3_i32, %129 : i32
    %c0_44 = arith.constant 0 : index
    %131 = arith.index_cast %130 : i32 to index
    %c0_45 = arith.constant 0 : index
    %c0_46 = arith.constant 0 : index
    %132 = vector.load %arg2[%c0_44, %131, %c0_45, %c0_46] : memref<1x8x8x128xf32, #tpu.memory_space<vmem>>, vector<1x1x8x128xf32>
    %133 = vector.shape_cast %132 : vector<1x1x8x128xf32> to vector<8x128xf32>
    %134 = arith.truncf %121 : vector<8x32xf32> to vector<8x32xbf16>
    %cst_47 = arith.constant dense<0.000000e+00> : vector<8x128xf32>
    %135 = tpu.matmul %134, %4, %cst_47 {dimension_numbers = #tpu.dot_dimension_numbers<[1], [0], [0], [1], [0, 0, 1, 1], [], []>} : vector<8x32xbf16>, vector<32x128xbf16>, vector<8x128xf32> -> vector<8x128xf32>
    %136 = arith.addf %133, %135 : vector<8x128xf32>
    %137 = vector.extract_strided_slice %136 {offsets = [0, 0], sizes = [8, 32], strides = [1, 1]} : vector<8x128xf32> to vector<8x32xf32>
    %138 = arith.negf %137 : vector<8x32xf32>
    %139 = math.exp %138 : vector<8x32xf32>
    %cst_48 = arith.constant 1.000000e+00 : f32
    %140 = vector.broadcast %cst_48 : f32 to vector<8x32xf32>
    %141 = arith.addf %140, %139 : vector<8x32xf32>
    %142 = arith.divf %140, %141 : vector<8x32xf32>
    %143 = vector.extract_strided_slice %136 {offsets = [0, 32], sizes = [8, 32], strides = [1, 1]} : vector<8x128xf32> to vector<8x32xf32>
    %144 = arith.negf %143 : vector<8x32xf32>
    %145 = math.exp %144 : vector<8x32xf32>
    %cst_49 = arith.constant 1.000000e+00 : f32
    %146 = vector.broadcast %cst_49 : f32 to vector<8x32xf32>
    %147 = arith.addf %146, %145 : vector<8x32xf32>
    %148 = arith.divf %146, %147 : vector<8x32xf32>
    %149 = vector.extract_strided_slice %136 {offsets = [0, 64], sizes = [8, 32], strides = [1, 1]} : vector<8x128xf32> to vector<8x32xf32>
    %150 = math.tanh %149 : vector<8x32xf32>
    %151 = vector.extract_strided_slice %136 {offsets = [0, 96], sizes = [8, 32], strides = [1, 1]} : vector<8x128xf32> to vector<8x32xf32>
    %152 = arith.negf %151 : vector<8x32xf32>
    %153 = math.exp %152 : vector<8x32xf32>
    %cst_50 = arith.constant 1.000000e+00 : f32
    %154 = vector.broadcast %cst_50 : f32 to vector<8x32xf32>
    %155 = arith.addf %154, %153 : vector<8x32xf32>
    %156 = arith.divf %154, %155 : vector<8x32xf32>
    %157 = arith.mulf %148, %119 : vector<8x32xf32>
    %158 = arith.mulf %142, %150 : vector<8x32xf32>
    %159 = arith.addf %157, %158 : vector<8x32xf32>
    %160 = math.tanh %159 : vector<8x32xf32>
    %161 = arith.mulf %156, %160 : vector<8x32xf32>
    %162 = arith.truncf %161 : vector<8x32xf32> to vector<8x32xbf16>
    %c0_51 = arith.constant 0 : index
    %163 = arith.index_cast %130 : i32 to index
    %c0_52 = arith.constant 0 : index
    %c0_53 = arith.constant 0 : index
    %164 = vector.load %arg4[%c0_51, %163, %c0_52, %c0_53] : memref<1x8x8x32xbf16, #tpu.memory_space<vmem>>, vector<1x1x8x32xbf16>
    %165 = vector.shape_cast %164 : vector<1x1x8x32xbf16> to vector<8x32xbf16>
    %166 = vector.shape_cast %162 : vector<8x32xbf16> to vector<1x1x8x32xbf16>
    tpu.vector_store %arg4[%c0_51, %163, %c0_52, %c0_53], %166 {strides = array<i32>} : memref<1x8x8x32xbf16, #tpu.memory_space<vmem>>, vector<1x1x8x32xbf16>,
    %c4_i32 = arith.constant 4 : i32
    %c2_i32_54 = arith.constant 2 : i32
    %167 = arith.muli %c2_i32_54, %c4_i32 : i32
    %c7_i32_55 = arith.constant 7 : i32
    %168 = arith.subi %c7_i32_55, %167 : i32
    %169 = arith.muli %arg0, %168 : i32
    %170 = arith.addi %c4_i32, %169 : i32
    %c0_56 = arith.constant 0 : index
    %171 = arith.index_cast %170 : i32 to index
    %c0_57 = arith.constant 0 : index
    %c0_58 = arith.constant 0 : index
    %172 = vector.load %arg2[%c0_56, %171, %c0_57, %c0_58] : memref<1x8x8x128xf32, #tpu.memory_space<vmem>>, vector<1x1x8x128xf32>
    %173 = vector.shape_cast %172 : vector<1x1x8x128xf32> to vector<8x128xf32>
    %174 = arith.truncf %161 : vector<8x32xf32> to vector<8x32xbf16>
    %cst_59 = arith.constant dense<0.000000e+00> : vector<8x128xf32>
    %175 = tpu.matmul %174, %4, %cst_59 {dimension_numbers = #tpu.dot_dimension_numbers<[1], [0], [0], [1], [0, 0, 1, 1], [], []>} : vector<8x32xbf16>, vector<32x128xbf16>, vector<8x128xf32> -> vector<8x128xf32>
    %176 = arith.addf %173, %175 : vector<8x128xf32>
    %177 = vector.extract_strided_slice %176 {offsets = [0, 0], sizes = [8, 32], strides = [1, 1]} : vector<8x128xf32> to vector<8x32xf32>
    %178 = arith.negf %177 : vector<8x32xf32>
    %179 = math.exp %178 : vector<8x32xf32>
    %cst_60 = arith.constant 1.000000e+00 : f32
    %180 = vector.broadcast %cst_60 : f32 to vector<8x32xf32>
    %181 = arith.addf %180, %179 : vector<8x32xf32>
    %182 = arith.divf %180, %181 : vector<8x32xf32>
    %183 = vector.extract_strided_slice %176 {offsets = [0, 32], sizes = [8, 32], strides = [1, 1]} : vector<8x128xf32> to vector<8x32xf32>
    %184 = arith.negf %183 : vector<8x32xf32>
    %185 = math.exp %184 : vector<8x32xf32>
    %cst_61 = arith.constant 1.000000e+00 : f32
    %186 = vector.broadcast %cst_61 : f32 to vector<8x32xf32>
    %187 = arith.addf %186, %185 : vector<8x32xf32>
    %188 = arith.divf %186, %187 : vector<8x32xf32>
    %189 = vector.extract_strided_slice %176 {offsets = [0, 64], sizes = [8, 32], strides = [1, 1]} : vector<8x128xf32> to vector<8x32xf32>
    %190 = math.tanh %189 : vector<8x32xf32>
    %191 = vector.extract_strided_slice %176 {offsets = [0, 96], sizes = [8, 32], strides = [1, 1]} : vector<8x128xf32> to vector<8x32xf32>
    %192 = arith.negf %191 : vector<8x32xf32>
    %193 = math.exp %192 : vector<8x32xf32>
    %cst_62 = arith.constant 1.000000e+00 : f32
    %194 = vector.broadcast %cst_62 : f32 to vector<8x32xf32>
    %195 = arith.addf %194, %193 : vector<8x32xf32>
    %196 = arith.divf %194, %195 : vector<8x32xf32>
    %197 = arith.mulf %188, %159 : vector<8x32xf32>
    %198 = arith.mulf %182, %190 : vector<8x32xf32>
    %199 = arith.addf %197, %198 : vector<8x32xf32>
    %200 = math.tanh %199 : vector<8x32xf32>
    %201 = arith.mulf %196, %200 : vector<8x32xf32>
    %202 = arith.truncf %201 : vector<8x32xf32> to vector<8x32xbf16>
    %c0_63 = arith.constant 0 : index
    %203 = arith.index_cast %170 : i32 to index
    %c0_64 = arith.constant 0 : index
    %c0_65 = arith.constant 0 : index
    %204 = vector.load %arg4[%c0_63, %203, %c0_64, %c0_65] : memref<1x8x8x32xbf16, #tpu.memory_space<vmem>>, vector<1x1x8x32xbf16>
    %205 = vector.shape_cast %204 : vector<1x1x8x32xbf16> to vector<8x32xbf16>
    %206 = vector.shape_cast %202 : vector<8x32xbf16> to vector<1x1x8x32xbf16>
    tpu.vector_store %arg4[%c0_63, %203, %c0_64, %c0_65], %206 {strides = array<i32>} : memref<1x8x8x32xbf16, #tpu.memory_space<vmem>>, vector<1x1x8x32xbf16>,
    %c5_i32 = arith.constant 5 : i32
    %c2_i32_66 = arith.constant 2 : i32
    %207 = arith.muli %c2_i32_66, %c5_i32 : i32
    %c7_i32_67 = arith.constant 7 : i32
    %208 = arith.subi %c7_i32_67, %207 : i32
    %209 = arith.muli %arg0, %208 : i32
    %210 = arith.addi %c5_i32, %209 : i32
    %c0_68 = arith.constant 0 : index
    %211 = arith.index_cast %210 : i32 to index
    %c0_69 = arith.constant 0 : index
    %c0_70 = arith.constant 0 : index
    %212 = vector.load %arg2[%c0_68, %211, %c0_69, %c0_70] : memref<1x8x8x128xf32, #tpu.memory_space<vmem>>, vector<1x1x8x128xf32>
    %213 = vector.shape_cast %212 : vector<1x1x8x128xf32> to vector<8x128xf32>
    %214 = arith.truncf %201 : vector<8x32xf32> to vector<8x32xbf16>
    %cst_71 = arith.constant dense<0.000000e+00> : vector<8x128xf32>
    %215 = tpu.matmul %214, %4, %cst_71 {dimension_numbers = #tpu.dot_dimension_numbers<[1], [0], [0], [1], [0, 0, 1, 1], [], []>} : vector<8x32xbf16>, vector<32x128xbf16>, vector<8x128xf32> -> vector<8x128xf32>
    %216 = arith.addf %213, %215 : vector<8x128xf32>
    %217 = vector.extract_strided_slice %216 {offsets = [0, 0], sizes = [8, 32], strides = [1, 1]} : vector<8x128xf32> to vector<8x32xf32>
    %218 = arith.negf %217 : vector<8x32xf32>
    %219 = math.exp %218 : vector<8x32xf32>
    %cst_72 = arith.constant 1.000000e+00 : f32
    %220 = vector.broadcast %cst_72 : f32 to vector<8x32xf32>
    %221 = arith.addf %220, %219 : vector<8x32xf32>
    %222 = arith.divf %220, %221 : vector<8x32xf32>
    %223 = vector.extract_strided_slice %216 {offsets = [0, 32], sizes = [8, 32], strides = [1, 1]} : vector<8x128xf32> to vector<8x32xf32>
    %224 = arith.negf %223 : vector<8x32xf32>
    %225 = math.exp %224 : vector<8x32xf32>
    %cst_73 = arith.constant 1.000000e+00 : f32
    %226 = vector.broadcast %cst_73 : f32 to vector<8x32xf32>
    %227 = arith.addf %226, %225 : vector<8x32xf32>
    %228 = arith.divf %226, %227 : vector<8x32xf32>
    %229 = vector.extract_strided_slice %216 {offsets = [0, 64], sizes = [8, 32], strides = [1, 1]} : vector<8x128xf32> to vector<8x32xf32>
    %230 = math.tanh %229 : vector<8x32xf32>
    %231 = vector.extract_strided_slice %216 {offsets = [0, 96], sizes = [8, 32], strides = [1, 1]} : vector<8x128xf32> to vector<8x32xf32>
    %232 = arith.negf %231 : vector<8x32xf32>
    %233 = math.exp %232 : vector<8x32xf32>
    %cst_74 = arith.constant 1.000000e+00 : f32
    %234 = vector.broadcast %cst_74 : f32 to vector<8x32xf32>
    %235 = arith.addf %234, %233 : vector<8x32xf32>
    %236 = arith.divf %234, %235 : vector<8x32xf32>
    %237 = arith.mulf %228, %199 : vector<8x32xf32>
    %238 = arith.mulf %222, %230 : vector<8x32xf32>
    %239 = arith.addf %237, %238 : vector<8x32xf32>
    %240 = math.tanh %239 : vector<8x32xf32>
    %241 = arith.mulf %236, %240 : vector<8x32xf32>
    %242 = arith.truncf %241 : vector<8x32xf32> to vector<8x32xbf16>
    %c0_75 = arith.constant 0 : index
    %243 = arith.index_cast %210 : i32 to index
    %c0_76 = arith.constant 0 : index
    %c0_77 = arith.constant 0 : index
    %244 = vector.load %arg4[%c0_75, %243, %c0_76, %c0_77] : memref<1x8x8x32xbf16, #tpu.memory_space<vmem>>, vector<1x1x8x32xbf16>
    %245 = vector.shape_cast %244 : vector<1x1x8x32xbf16> to vector<8x32xbf16>
    %246 = vector.shape_cast %242 : vector<8x32xbf16> to vector<1x1x8x32xbf16>
    tpu.vector_store %arg4[%c0_75, %243, %c0_76, %c0_77], %246 {strides = array<i32>} : memref<1x8x8x32xbf16, #tpu.memory_space<vmem>>, vector<1x1x8x32xbf16>,
    %c6_i32 = arith.constant 6 : i32
    %c2_i32_78 = arith.constant 2 : i32
    %247 = arith.muli %c2_i32_78, %c6_i32 : i32
    %c7_i32_79 = arith.constant 7 : i32
    %248 = arith.subi %c7_i32_79, %247 : i32
    %249 = arith.muli %arg0, %248 : i32
    %250 = arith.addi %c6_i32, %249 : i32
    %c0_80 = arith.constant 0 : index
    %251 = arith.index_cast %250 : i32 to index
    %c0_81 = arith.constant 0 : index
    %c0_82 = arith.constant 0 : index
    %252 = vector.load %arg2[%c0_80, %251, %c0_81, %c0_82] : memref<1x8x8x128xf32, #tpu.memory_space<vmem>>, vector<1x1x8x128xf32>
    %253 = vector.shape_cast %252 : vector<1x1x8x128xf32> to vector<8x128xf32>
    %254 = arith.truncf %241 : vector<8x32xf32> to vector<8x32xbf16>
    %cst_83 = arith.constant dense<0.000000e+00> : vector<8x128xf32>
    %255 = tpu.matmul %254, %4, %cst_83 {dimension_numbers = #tpu.dot_dimension_numbers<[1], [0], [0], [1], [0, 0, 1, 1], [], []>} : vector<8x32xbf16>, vector<32x128xbf16>, vector<8x128xf32> -> vector<8x128xf32>
    %256 = arith.addf %253, %255 : vector<8x128xf32>
    %257 = vector.extract_strided_slice %256 {offsets = [0, 0], sizes = [8, 32], strides = [1, 1]} : vector<8x128xf32> to vector<8x32xf32>
    %258 = arith.negf %257 : vector<8x32xf32>
    %259 = math.exp %258 : vector<8x32xf32>
    %cst_84 = arith.constant 1.000000e+00 : f32
    %260 = vector.broadcast %cst_84 : f32 to vector<8x32xf32>
    %261 = arith.addf %260, %259 : vector<8x32xf32>
    %262 = arith.divf %260, %261 : vector<8x32xf32>
    %263 = vector.extract_strided_slice %256 {offsets = [0, 32], sizes = [8, 32], strides = [1, 1]} : vector<8x128xf32> to vector<8x32xf32>
    %264 = arith.negf %263 : vector<8x32xf32>
    %265 = math.exp %264 : vector<8x32xf32>
    %cst_85 = arith.constant 1.000000e+00 : f32
    %266 = vector.broadcast %cst_85 : f32 to vector<8x32xf32>
    %267 = arith.addf %266, %265 : vector<8x32xf32>
    %268 = arith.divf %266, %267 : vector<8x32xf32>
    %269 = vector.extract_strided_slice %256 {offsets = [0, 64], sizes = [8, 32], strides = [1, 1]} : vector<8x128xf32> to vector<8x32xf32>
    %270 = math.tanh %269 : vector<8x32xf32>
    %271 = vector.extract_strided_slice %256 {offsets = [0, 96], sizes = [8, 32], strides = [1, 1]} : vector<8x128xf32> to vector<8x32xf32>
    %272 = arith.negf %271 : vector<8x32xf32>
    %273 = math.exp %272 : vector<8x32xf32>
    %cst_86 = arith.constant 1.000000e+00 : f32
    %274 = vector.broadcast %cst_86 : f32 to vector<8x32xf32>
    %275 = arith.addf %274, %273 : vector<8x32xf32>
    %276 = arith.divf %274, %275 : vector<8x32xf32>
    %277 = arith.mulf %268, %239 : vector<8x32xf32>
    %278 = arith.mulf %262, %270 : vector<8x32xf32>
    %279 = arith.addf %277, %278 : vector<8x32xf32>
    %280 = math.tanh %279 : vector<8x32xf32>
    %281 = arith.mulf %276, %280 : vector<8x32xf32>
    %282 = arith.truncf %281 : vector<8x32xf32> to vector<8x32xbf16>
    %c0_87 = arith.constant 0 : index
    %283 = arith.index_cast %250 : i32 to index
    %c0_88 = arith.constant 0 : index
    %c0_89 = arith.constant 0 : index
    %284 = vector.load %arg4[%c0_87, %283, %c0_88, %c0_89] : memref<1x8x8x32xbf16, #tpu.memory_space<vmem>>, vector<1x1x8x32xbf16>
    %285 = vector.shape_cast %284 : vector<1x1x8x32xbf16> to vector<8x32xbf16>
    %286 = vector.shape_cast %282 : vector<8x32xbf16> to vector<1x1x8x32xbf16>
    tpu.vector_store %arg4[%c0_87, %283, %c0_88, %c0_89], %286 {strides = array<i32>} : memref<1x8x8x32xbf16, #tpu.memory_space<vmem>>, vector<1x1x8x32xbf16>,
    %c7_i32_90 = arith.constant 7 : i32
    %c2_i32_91 = arith.constant 2 : i32
    %287 = arith.muli %c2_i32_91, %c7_i32_90 : i32
    %c7_i32_92 = arith.constant 7 : i32
    %288 = arith.subi %c7_i32_92, %287 : i32
    %289 = arith.muli %arg0, %288 : i32
    %290 = arith.addi %c7_i32_90, %289 : i32
    %c0_93 = arith.constant 0 : index
    %291 = arith.index_cast %290 : i32 to index
    %c0_94 = arith.constant 0 : index
    %c0_95 = arith.constant 0 : index
    %292 = vector.load %arg2[%c0_93, %291, %c0_94, %c0_95] : memref<1x8x8x128xf32, #tpu.memory_space<vmem>>, vector<1x1x8x128xf32>
    %293 = vector.shape_cast %292 : vector<1x1x8x128xf32> to vector<8x128xf32>
    %294 = arith.truncf %281 : vector<8x32xf32> to vector<8x32xbf16>
    %cst_96 = arith.constant dense<0.000000e+00> : vector<8x128xf32>
    %295 = tpu.matmul %294, %4, %cst_96 {dimension_numbers = #tpu.dot_dimension_numbers<[1], [0], [0], [1], [0, 0, 1, 1], [], []>} : vector<8x32xbf16>, vector<32x128xbf16>, vector<8x128xf32> -> vector<8x128xf32>
    %296 = arith.addf %293, %295 : vector<8x128xf32>
    %297 = vector.extract_strided_slice %296 {offsets = [0, 0], sizes = [8, 32], strides = [1, 1]} : vector<8x128xf32> to vector<8x32xf32>
    %298 = arith.negf %297 : vector<8x32xf32>
    %299 = math.exp %298 : vector<8x32xf32>
    %cst_97 = arith.constant 1.000000e+00 : f32
    %300 = vector.broadcast %cst_97 : f32 to vector<8x32xf32>
    %301 = arith.addf %300, %299 : vector<8x32xf32>
    %302 = arith.divf %300, %301 : vector<8x32xf32>
    %303 = vector.extract_strided_slice %296 {offsets = [0, 32], sizes = [8, 32], strides = [1, 1]} : vector<8x128xf32> to vector<8x32xf32>
    %304 = arith.negf %303 : vector<8x32xf32>
    %305 = math.exp %304 : vector<8x32xf32>
    %cst_98 = arith.constant 1.000000e+00 : f32
    %306 = vector.broadcast %cst_98 : f32 to vector<8x32xf32>
    %307 = arith.addf %306, %305 : vector<8x32xf32>
    %308 = arith.divf %306, %307 : vector<8x32xf32>
    %309 = vector.extract_strided_slice %296 {offsets = [0, 64], sizes = [8, 32], strides = [1, 1]} : vector<8x128xf32> to vector<8x32xf32>
    %310 = math.tanh %309 : vector<8x32xf32>
    %311 = vector.extract_strided_slice %296 {offsets = [0, 96], sizes = [8, 32], strides = [1, 1]} : vector<8x128xf32> to vector<8x32xf32>
    %312 = arith.negf %311 : vector<8x32xf32>
    %313 = math.exp %312 : vector<8x32xf32>
    %cst_99 = arith.constant 1.000000e+00 : f32
    %314 = vector.broadcast %cst_99 : f32 to vector<8x32xf32>
    %315 = arith.addf %314, %313 : vector<8x32xf32>
    %316 = arith.divf %314, %315 : vector<8x32xf32>
    %317 = arith.mulf %308, %279 : vector<8x32xf32>
    %318 = arith.mulf %302, %310 : vector<8x32xf32>
    %319 = arith.addf %317, %318 : vector<8x32xf32>
    %320 = math.tanh %319 : vector<8x32xf32>
    %321 = arith.mulf %316, %320 : vector<8x32xf32>
    %322 = arith.truncf %321 : vector<8x32xf32> to vector<8x32xbf16>
    %c0_100 = arith.constant 0 : index
    %323 = arith.index_cast %290 : i32 to index
    %c0_101 = arith.constant 0 : index
    %c0_102 = arith.constant 0 : index
    %324 = vector.load %arg4[%c0_100, %323, %c0_101, %c0_102] : memref<1x8x8x32xbf16, #tpu.memory_space<vmem>>, vector<1x1x8x32xbf16>
    %325 = vector.shape_cast %324 : vector<1x1x8x32xbf16> to vector<8x32xbf16>
    %326 = vector.shape_cast %322 : vector<8x32xbf16> to vector<1x1x8x32xbf16>
    tpu.vector_store %arg4[%c0_100, %323, %c0_101, %c0_102], %326 {strides = array<i32>} : memref<1x8x8x32xbf16, #tpu.memory_space<vmem>>, vector<1x1x8x32xbf16>,
    %c8_i32 = arith.constant 8 : i32
    %c0_103 = arith.constant 0 : index
    %c0_104 = arith.constant 0 : index
    %327 = vector.load %arg5[%c0_103, %c0_104] : memref<8x32xf32, #tpu.memory_space<vmem>>, vector<8x32xf32>
    tpu.vector_store %arg5[%c0_103, %c0_104], %321 {strides = array<i32>} : memref<8x32xf32, #tpu.memory_space<vmem>>, vector<8x32xf32>,
    %c0_105 = arith.constant 0 : index
    %c0_106 = arith.constant 0 : index
    %328 = vector.load %arg6[%c0_105, %c0_106] : memref<8x32xf32, #tpu.memory_space<vmem>>, vector<8x32xf32>
    tpu.vector_store %arg6[%c0_105, %c0_106], %319 {strides = array<i32>} : memref<8x32xf32, #tpu.memory_space<vmem>>, vector<8x32xf32>,
    return
  }
  func.func @transform_0(%arg0: i32, %arg1: i32) -> (i32, i32, i32, i32) {
    %c2_i32 = arith.constant 2 : i32
    %0 = arith.muli %c2_i32, %arg1 : i32
    %c0_i32 = arith.constant 0 : i32
    %1 = arith.subi %c0_i32, %0 : i32
    %2 = arith.muli %arg0, %1 : i32
    %3 = arith.addi %arg1, %2 : i32
    %c0_i32_0 = arith.constant 0 : i32
    %c0_i32_1 = arith.constant 0 : i32
    %c0_i32_2 = arith.constant 0 : i32
    return %arg0, %3, %c0_i32_0, %c0_i32_1 : i32, i32, i32, i32
  }
  func.func @transform_1(%arg0: i32, %arg1: i32) -> (i32, i32, i32) {
    %c0_i32 = arith.constant 0 : i32
    %c0_i32_0 = arith.constant 0 : i32
    %c0_i32_1 = arith.constant 0 : i32
    return %arg0, %c0_i32, %c0_i32_0 : i32, i32, i32
  }
  func.func @transform_2(%arg0: i32, %arg1: i32) -> (i32, i32, i32, i32) {
    %c2_i32 = arith.constant 2 : i32
    %0 = arith.muli %c2_i32, %arg1 : i32
    %c0_i32 = arith.constant 0 : i32
    %1 = arith.subi %c0_i32, %0 : i32
    %2 = arith.muli %arg0, %1 : i32
    %3 = arith.addi %arg1, %2 : i32
    %c0_i32_0 = arith.constant 0 : i32
    %c0_i32_1 = arith.constant 0 : i32
    %c0_i32_2 = arith.constant 0 : i32
    return %arg0, %3, %c0_i32_0, %c0_i32_1 : i32, i32, i32, i32
  }
}

module attributes {stable_mosaic.version = 11 : i64} {
  func.func @_lstm_chunk_kernel(%arg0: i32, %arg1: i32, %arg2: memref<1x8x8x128xf32, #tpu.memory_space<vmem>>, %arg3: memref<1x32x128xbf16, #tpu.memory_space<vmem>>, %arg4: memref<1x8x8x32xf32, #tpu.memory_space<vmem>>, %arg5: memref<8x32xf32, #tpu.memory_space<vmem>>, %arg6: memref<8x32xf32, #tpu.memory_space<vmem>>) attributes {dimension_semantics = [#tpu.dimension_semantics<parallel>, #tpu.dimension_semantics<arbitrary>], iteration_bounds = array<i64: 2, 1>, scalar_prefetch = 0 : i64, scratch_operands = 2 : i64, tpu.core_type = #tpu.core_type<tc>, window_params = [{transform_indices = @transform_0, window_bounds = array<i64: 1, 8, 8, 128>}, {transform_indices = @transform_1, window_bounds = array<i64: 1, 32, 128>}, {transform_indices = @transform_2, window_bounds = array<i64: 1, 8, 8, 32>}]} {
    %c0_i32 = arith.constant 0 : i32
    %0 = arith.cmpi eq, %arg1, %c0_i32 : i32
    %1 = arith.extui %0 : i1 to i32
    %c0_i32_0 = arith.constant 0 : i32
    %2 = arith.cmpi ne, %1, %c0_i32_0 : i32
    scf.if %2 {
      %cst_107 = arith.constant 0.000000e+00 : f32
      %321 = vector.broadcast %cst_107 : f32 to vector<8x32xf32>
      %c0_108 = arith.constant 0 : index
      %c0_109 = arith.constant 0 : index
      %322 = vector.load %arg5[%c0_108, %c0_109] : memref<8x32xf32, #tpu.memory_space<vmem>>, vector<8x32xf32>
      tpu.vector_store %arg5[%c0_108, %c0_109], %321 {strides = array<i32>} : memref<8x32xf32, #tpu.memory_space<vmem>>, vector<8x32xf32>,
      %cst_110 = arith.constant 0.000000e+00 : f32
      %323 = vector.broadcast %cst_110 : f32 to vector<8x32xf32>
      %c0_111 = arith.constant 0 : index
      %c0_112 = arith.constant 0 : index
      %324 = vector.load %arg6[%c0_111, %c0_112] : memref<8x32xf32, #tpu.memory_space<vmem>>, vector<8x32xf32>
      tpu.vector_store %arg6[%c0_111, %c0_112], %323 {strides = array<i32>} : memref<8x32xf32, #tpu.memory_space<vmem>>, vector<8x32xf32>,
    } else {
    }
    %c0 = arith.constant 0 : index
    %c0_1 = arith.constant 0 : index
    %c0_2 = arith.constant 0 : index
    %3 = vector.load %arg3[%c0, %c0_1, %c0_2] : memref<1x32x128xbf16, #tpu.memory_space<vmem>>, vector<1x32x128xbf16>
    %4 = vector.shape_cast %3 : vector<1x32x128xbf16> to vector<32x128xbf16>
    %c0_3 = arith.constant 0 : index
    %c0_4 = arith.constant 0 : index
    %5 = vector.load %arg5[%c0_3, %c0_4] : memref<8x32xf32, #tpu.memory_space<vmem>>, vector<8x32xf32>
    %c0_5 = arith.constant 0 : index
    %c0_6 = arith.constant 0 : index
    %6 = vector.load %arg6[%c0_5, %c0_6] : memref<8x32xf32, #tpu.memory_space<vmem>>, vector<8x32xf32>
    %c0_i32_7 = arith.constant 0 : i32
    %c2_i32 = arith.constant 2 : i32
    %7 = arith.muli %c2_i32, %c0_i32_7 : i32
    %c7_i32 = arith.constant 7 : i32
    %8 = arith.subi %c7_i32, %7 : i32
    %9 = arith.muli %arg0, %8 : i32
    %10 = arith.addi %c0_i32_7, %9 : i32
    %c0_8 = arith.constant 0 : index
    %11 = arith.index_cast %10 : i32 to index
    %c0_9 = arith.constant 0 : index
    %c0_10 = arith.constant 0 : index
    %12 = vector.load %arg2[%c0_8, %11, %c0_9, %c0_10] : memref<1x8x8x128xf32, #tpu.memory_space<vmem>>, vector<1x1x8x128xf32>
    %13 = vector.shape_cast %12 : vector<1x1x8x128xf32> to vector<8x128xf32>
    %14 = arith.truncf %5 : vector<8x32xf32> to vector<8x32xbf16>
    %cst = arith.constant dense<0.000000e+00> : vector<8x128xf32>
    %15 = tpu.matmul %14, %4, %cst {dimension_numbers = #tpu.dot_dimension_numbers<[1], [0], [0], [1], [0, 0, 1, 1], [], []>} : vector<8x32xbf16>, vector<32x128xbf16>, vector<8x128xf32> -> vector<8x128xf32>
    %16 = arith.addf %13, %15 : vector<8x128xf32>
    %17 = vector.extract_strided_slice %16 {offsets = [0, 0], sizes = [8, 32], strides = [1, 1]} : vector<8x128xf32> to vector<8x32xf32>
    %18 = arith.negf %17 : vector<8x32xf32>
    %19 = math.exp %18 : vector<8x32xf32>
    %cst_11 = arith.constant 1.000000e+00 : f32
    %20 = vector.broadcast %cst_11 : f32 to vector<8x32xf32>
    %21 = arith.addf %20, %19 : vector<8x32xf32>
    %22 = arith.divf %20, %21 : vector<8x32xf32>
    %23 = vector.extract_strided_slice %16 {offsets = [0, 32], sizes = [8, 32], strides = [1, 1]} : vector<8x128xf32> to vector<8x32xf32>
    %24 = arith.negf %23 : vector<8x32xf32>
    %25 = math.exp %24 : vector<8x32xf32>
    %cst_12 = arith.constant 1.000000e+00 : f32
    %26 = vector.broadcast %cst_12 : f32 to vector<8x32xf32>
    %27 = arith.addf %26, %25 : vector<8x32xf32>
    %28 = arith.divf %26, %27 : vector<8x32xf32>
    %29 = vector.extract_strided_slice %16 {offsets = [0, 64], sizes = [8, 32], strides = [1, 1]} : vector<8x128xf32> to vector<8x32xf32>
    %30 = math.tanh %29 : vector<8x32xf32>
    %31 = vector.extract_strided_slice %16 {offsets = [0, 96], sizes = [8, 32], strides = [1, 1]} : vector<8x128xf32> to vector<8x32xf32>
    %32 = arith.negf %31 : vector<8x32xf32>
    %33 = math.exp %32 : vector<8x32xf32>
    %cst_13 = arith.constant 1.000000e+00 : f32
    %34 = vector.broadcast %cst_13 : f32 to vector<8x32xf32>
    %35 = arith.addf %34, %33 : vector<8x32xf32>
    %36 = arith.divf %34, %35 : vector<8x32xf32>
    %37 = arith.mulf %28, %6 : vector<8x32xf32>
    %38 = arith.mulf %22, %30 : vector<8x32xf32>
    %39 = arith.addf %37, %38 : vector<8x32xf32>
    %40 = math.tanh %39 : vector<8x32xf32>
    %41 = arith.mulf %36, %40 : vector<8x32xf32>
    %c0_14 = arith.constant 0 : index
    %42 = arith.index_cast %10 : i32 to index
    %c0_15 = arith.constant 0 : index
    %c0_16 = arith.constant 0 : index
    %43 = vector.load %arg4[%c0_14, %42, %c0_15, %c0_16] : memref<1x8x8x32xf32, #tpu.memory_space<vmem>>, vector<1x1x8x32xf32>
    %44 = vector.shape_cast %43 : vector<1x1x8x32xf32> to vector<8x32xf32>
    %45 = vector.shape_cast %41 : vector<8x32xf32> to vector<1x1x8x32xf32>
    tpu.vector_store %arg4[%c0_14, %42, %c0_15, %c0_16], %45 {strides = array<i32>} : memref<1x8x8x32xf32, #tpu.memory_space<vmem>>, vector<1x1x8x32xf32>,
    %c1_i32 = arith.constant 1 : i32
    %c2_i32_17 = arith.constant 2 : i32
    %46 = arith.muli %c2_i32_17, %c1_i32 : i32
    %c7_i32_18 = arith.constant 7 : i32
    %47 = arith.subi %c7_i32_18, %46 : i32
    %48 = arith.muli %arg0, %47 : i32
    %49 = arith.addi %c1_i32, %48 : i32
    %c0_19 = arith.constant 0 : index
    %50 = arith.index_cast %49 : i32 to index
    %c0_20 = arith.constant 0 : index
    %c0_21 = arith.constant 0 : index
    %51 = vector.load %arg2[%c0_19, %50, %c0_20, %c0_21] : memref<1x8x8x128xf32, #tpu.memory_space<vmem>>, vector<1x1x8x128xf32>
    %52 = vector.shape_cast %51 : vector<1x1x8x128xf32> to vector<8x128xf32>
    %53 = arith.truncf %41 : vector<8x32xf32> to vector<8x32xbf16>
    %cst_22 = arith.constant dense<0.000000e+00> : vector<8x128xf32>
    %54 = tpu.matmul %53, %4, %cst_22 {dimension_numbers = #tpu.dot_dimension_numbers<[1], [0], [0], [1], [0, 0, 1, 1], [], []>} : vector<8x32xbf16>, vector<32x128xbf16>, vector<8x128xf32> -> vector<8x128xf32>
    %55 = arith.addf %52, %54 : vector<8x128xf32>
    %56 = vector.extract_strided_slice %55 {offsets = [0, 0], sizes = [8, 32], strides = [1, 1]} : vector<8x128xf32> to vector<8x32xf32>
    %57 = arith.negf %56 : vector<8x32xf32>
    %58 = math.exp %57 : vector<8x32xf32>
    %cst_23 = arith.constant 1.000000e+00 : f32
    %59 = vector.broadcast %cst_23 : f32 to vector<8x32xf32>
    %60 = arith.addf %59, %58 : vector<8x32xf32>
    %61 = arith.divf %59, %60 : vector<8x32xf32>
    %62 = vector.extract_strided_slice %55 {offsets = [0, 32], sizes = [8, 32], strides = [1, 1]} : vector<8x128xf32> to vector<8x32xf32>
    %63 = arith.negf %62 : vector<8x32xf32>
    %64 = math.exp %63 : vector<8x32xf32>
    %cst_24 = arith.constant 1.000000e+00 : f32
    %65 = vector.broadcast %cst_24 : f32 to vector<8x32xf32>
    %66 = arith.addf %65, %64 : vector<8x32xf32>
    %67 = arith.divf %65, %66 : vector<8x32xf32>
    %68 = vector.extract_strided_slice %55 {offsets = [0, 64], sizes = [8, 32], strides = [1, 1]} : vector<8x128xf32> to vector<8x32xf32>
    %69 = math.tanh %68 : vector<8x32xf32>
    %70 = vector.extract_strided_slice %55 {offsets = [0, 96], sizes = [8, 32], strides = [1, 1]} : vector<8x128xf32> to vector<8x32xf32>
    %71 = arith.negf %70 : vector<8x32xf32>
    %72 = math.exp %71 : vector<8x32xf32>
    %cst_25 = arith.constant 1.000000e+00 : f32
    %73 = vector.broadcast %cst_25 : f32 to vector<8x32xf32>
    %74 = arith.addf %73, %72 : vector<8x32xf32>
    %75 = arith.divf %73, %74 : vector<8x32xf32>
    %76 = arith.mulf %67, %39 : vector<8x32xf32>
    %77 = arith.mulf %61, %69 : vector<8x32xf32>
    %78 = arith.addf %76, %77 : vector<8x32xf32>
    %79 = math.tanh %78 : vector<8x32xf32>
    %80 = arith.mulf %75, %79 : vector<8x32xf32>
    %c0_26 = arith.constant 0 : index
    %81 = arith.index_cast %49 : i32 to index
    %c0_27 = arith.constant 0 : index
    %c0_28 = arith.constant 0 : index
    %82 = vector.load %arg4[%c0_26, %81, %c0_27, %c0_28] : memref<1x8x8x32xf32, #tpu.memory_space<vmem>>, vector<1x1x8x32xf32>
    %83 = vector.shape_cast %82 : vector<1x1x8x32xf32> to vector<8x32xf32>
    %84 = vector.shape_cast %80 : vector<8x32xf32> to vector<1x1x8x32xf32>
    tpu.vector_store %arg4[%c0_26, %81, %c0_27, %c0_28], %84 {strides = array<i32>} : memref<1x8x8x32xf32, #tpu.memory_space<vmem>>, vector<1x1x8x32xf32>,
    %c2_i32_29 = arith.constant 2 : i32
    %c2_i32_30 = arith.constant 2 : i32
    %85 = arith.muli %c2_i32_30, %c2_i32_29 : i32
    %c7_i32_31 = arith.constant 7 : i32
    %86 = arith.subi %c7_i32_31, %85 : i32
    %87 = arith.muli %arg0, %86 : i32
    %88 = arith.addi %c2_i32_29, %87 : i32
    %c0_32 = arith.constant 0 : index
    %89 = arith.index_cast %88 : i32 to index
    %c0_33 = arith.constant 0 : index
    %c0_34 = arith.constant 0 : index
    %90 = vector.load %arg2[%c0_32, %89, %c0_33, %c0_34] : memref<1x8x8x128xf32, #tpu.memory_space<vmem>>, vector<1x1x8x128xf32>
    %91 = vector.shape_cast %90 : vector<1x1x8x128xf32> to vector<8x128xf32>
    %92 = arith.truncf %80 : vector<8x32xf32> to vector<8x32xbf16>
    %cst_35 = arith.constant dense<0.000000e+00> : vector<8x128xf32>
    %93 = tpu.matmul %92, %4, %cst_35 {dimension_numbers = #tpu.dot_dimension_numbers<[1], [0], [0], [1], [0, 0, 1, 1], [], []>} : vector<8x32xbf16>, vector<32x128xbf16>, vector<8x128xf32> -> vector<8x128xf32>
    %94 = arith.addf %91, %93 : vector<8x128xf32>
    %95 = vector.extract_strided_slice %94 {offsets = [0, 0], sizes = [8, 32], strides = [1, 1]} : vector<8x128xf32> to vector<8x32xf32>
    %96 = arith.negf %95 : vector<8x32xf32>
    %97 = math.exp %96 : vector<8x32xf32>
    %cst_36 = arith.constant 1.000000e+00 : f32
    %98 = vector.broadcast %cst_36 : f32 to vector<8x32xf32>
    %99 = arith.addf %98, %97 : vector<8x32xf32>
    %100 = arith.divf %98, %99 : vector<8x32xf32>
    %101 = vector.extract_strided_slice %94 {offsets = [0, 32], sizes = [8, 32], strides = [1, 1]} : vector<8x128xf32> to vector<8x32xf32>
    %102 = arith.negf %101 : vector<8x32xf32>
    %103 = math.exp %102 : vector<8x32xf32>
    %cst_37 = arith.constant 1.000000e+00 : f32
    %104 = vector.broadcast %cst_37 : f32 to vector<8x32xf32>
    %105 = arith.addf %104, %103 : vector<8x32xf32>
    %106 = arith.divf %104, %105 : vector<8x32xf32>
    %107 = vector.extract_strided_slice %94 {offsets = [0, 64], sizes = [8, 32], strides = [1, 1]} : vector<8x128xf32> to vector<8x32xf32>
    %108 = math.tanh %107 : vector<8x32xf32>
    %109 = vector.extract_strided_slice %94 {offsets = [0, 96], sizes = [8, 32], strides = [1, 1]} : vector<8x128xf32> to vector<8x32xf32>
    %110 = arith.negf %109 : vector<8x32xf32>
    %111 = math.exp %110 : vector<8x32xf32>
    %cst_38 = arith.constant 1.000000e+00 : f32
    %112 = vector.broadcast %cst_38 : f32 to vector<8x32xf32>
    %113 = arith.addf %112, %111 : vector<8x32xf32>
    %114 = arith.divf %112, %113 : vector<8x32xf32>
    %115 = arith.mulf %106, %78 : vector<8x32xf32>
    %116 = arith.mulf %100, %108 : vector<8x32xf32>
    %117 = arith.addf %115, %116 : vector<8x32xf32>
    %118 = math.tanh %117 : vector<8x32xf32>
    %119 = arith.mulf %114, %118 : vector<8x32xf32>
    %c0_39 = arith.constant 0 : index
    %120 = arith.index_cast %88 : i32 to index
    %c0_40 = arith.constant 0 : index
    %c0_41 = arith.constant 0 : index
    %121 = vector.load %arg4[%c0_39, %120, %c0_40, %c0_41] : memref<1x8x8x32xf32, #tpu.memory_space<vmem>>, vector<1x1x8x32xf32>
    %122 = vector.shape_cast %121 : vector<1x1x8x32xf32> to vector<8x32xf32>
    %123 = vector.shape_cast %119 : vector<8x32xf32> to vector<1x1x8x32xf32>
    tpu.vector_store %arg4[%c0_39, %120, %c0_40, %c0_41], %123 {strides = array<i32>} : memref<1x8x8x32xf32, #tpu.memory_space<vmem>>, vector<1x1x8x32xf32>,
    %c3_i32 = arith.constant 3 : i32
    %c2_i32_42 = arith.constant 2 : i32
    %124 = arith.muli %c2_i32_42, %c3_i32 : i32
    %c7_i32_43 = arith.constant 7 : i32
    %125 = arith.subi %c7_i32_43, %124 : i32
    %126 = arith.muli %arg0, %125 : i32
    %127 = arith.addi %c3_i32, %126 : i32
    %c0_44 = arith.constant 0 : index
    %128 = arith.index_cast %127 : i32 to index
    %c0_45 = arith.constant 0 : index
    %c0_46 = arith.constant 0 : index
    %129 = vector.load %arg2[%c0_44, %128, %c0_45, %c0_46] : memref<1x8x8x128xf32, #tpu.memory_space<vmem>>, vector<1x1x8x128xf32>
    %130 = vector.shape_cast %129 : vector<1x1x8x128xf32> to vector<8x128xf32>
    %131 = arith.truncf %119 : vector<8x32xf32> to vector<8x32xbf16>
    %cst_47 = arith.constant dense<0.000000e+00> : vector<8x128xf32>
    %132 = tpu.matmul %131, %4, %cst_47 {dimension_numbers = #tpu.dot_dimension_numbers<[1], [0], [0], [1], [0, 0, 1, 1], [], []>} : vector<8x32xbf16>, vector<32x128xbf16>, vector<8x128xf32> -> vector<8x128xf32>
    %133 = arith.addf %130, %132 : vector<8x128xf32>
    %134 = vector.extract_strided_slice %133 {offsets = [0, 0], sizes = [8, 32], strides = [1, 1]} : vector<8x128xf32> to vector<8x32xf32>
    %135 = arith.negf %134 : vector<8x32xf32>
    %136 = math.exp %135 : vector<8x32xf32>
    %cst_48 = arith.constant 1.000000e+00 : f32
    %137 = vector.broadcast %cst_48 : f32 to vector<8x32xf32>
    %138 = arith.addf %137, %136 : vector<8x32xf32>
    %139 = arith.divf %137, %138 : vector<8x32xf32>
    %140 = vector.extract_strided_slice %133 {offsets = [0, 32], sizes = [8, 32], strides = [1, 1]} : vector<8x128xf32> to vector<8x32xf32>
    %141 = arith.negf %140 : vector<8x32xf32>
    %142 = math.exp %141 : vector<8x32xf32>
    %cst_49 = arith.constant 1.000000e+00 : f32
    %143 = vector.broadcast %cst_49 : f32 to vector<8x32xf32>
    %144 = arith.addf %143, %142 : vector<8x32xf32>
    %145 = arith.divf %143, %144 : vector<8x32xf32>
    %146 = vector.extract_strided_slice %133 {offsets = [0, 64], sizes = [8, 32], strides = [1, 1]} : vector<8x128xf32> to vector<8x32xf32>
    %147 = math.tanh %146 : vector<8x32xf32>
    %148 = vector.extract_strided_slice %133 {offsets = [0, 96], sizes = [8, 32], strides = [1, 1]} : vector<8x128xf32> to vector<8x32xf32>
    %149 = arith.negf %148 : vector<8x32xf32>
    %150 = math.exp %149 : vector<8x32xf32>
    %cst_50 = arith.constant 1.000000e+00 : f32
    %151 = vector.broadcast %cst_50 : f32 to vector<8x32xf32>
    %152 = arith.addf %151, %150 : vector<8x32xf32>
    %153 = arith.divf %151, %152 : vector<8x32xf32>
    %154 = arith.mulf %145, %117 : vector<8x32xf32>
    %155 = arith.mulf %139, %147 : vector<8x32xf32>
    %156 = arith.addf %154, %155 : vector<8x32xf32>
    %157 = math.tanh %156 : vector<8x32xf32>
    %158 = arith.mulf %153, %157 : vector<8x32xf32>
    %c0_51 = arith.constant 0 : index
    %159 = arith.index_cast %127 : i32 to index
    %c0_52 = arith.constant 0 : index
    %c0_53 = arith.constant 0 : index
    %160 = vector.load %arg4[%c0_51, %159, %c0_52, %c0_53] : memref<1x8x8x32xf32, #tpu.memory_space<vmem>>, vector<1x1x8x32xf32>
    %161 = vector.shape_cast %160 : vector<1x1x8x32xf32> to vector<8x32xf32>
    %162 = vector.shape_cast %158 : vector<8x32xf32> to vector<1x1x8x32xf32>
    tpu.vector_store %arg4[%c0_51, %159, %c0_52, %c0_53], %162 {strides = array<i32>} : memref<1x8x8x32xf32, #tpu.memory_space<vmem>>, vector<1x1x8x32xf32>,
    %c4_i32 = arith.constant 4 : i32
    %c2_i32_54 = arith.constant 2 : i32
    %163 = arith.muli %c2_i32_54, %c4_i32 : i32
    %c7_i32_55 = arith.constant 7 : i32
    %164 = arith.subi %c7_i32_55, %163 : i32
    %165 = arith.muli %arg0, %164 : i32
    %166 = arith.addi %c4_i32, %165 : i32
    %c0_56 = arith.constant 0 : index
    %167 = arith.index_cast %166 : i32 to index
    %c0_57 = arith.constant 0 : index
    %c0_58 = arith.constant 0 : index
    %168 = vector.load %arg2[%c0_56, %167, %c0_57, %c0_58] : memref<1x8x8x128xf32, #tpu.memory_space<vmem>>, vector<1x1x8x128xf32>
    %169 = vector.shape_cast %168 : vector<1x1x8x128xf32> to vector<8x128xf32>
    %170 = arith.truncf %158 : vector<8x32xf32> to vector<8x32xbf16>
    %cst_59 = arith.constant dense<0.000000e+00> : vector<8x128xf32>
    %171 = tpu.matmul %170, %4, %cst_59 {dimension_numbers = #tpu.dot_dimension_numbers<[1], [0], [0], [1], [0, 0, 1, 1], [], []>} : vector<8x32xbf16>, vector<32x128xbf16>, vector<8x128xf32> -> vector<8x128xf32>
    %172 = arith.addf %169, %171 : vector<8x128xf32>
    %173 = vector.extract_strided_slice %172 {offsets = [0, 0], sizes = [8, 32], strides = [1, 1]} : vector<8x128xf32> to vector<8x32xf32>
    %174 = arith.negf %173 : vector<8x32xf32>
    %175 = math.exp %174 : vector<8x32xf32>
    %cst_60 = arith.constant 1.000000e+00 : f32
    %176 = vector.broadcast %cst_60 : f32 to vector<8x32xf32>
    %177 = arith.addf %176, %175 : vector<8x32xf32>
    %178 = arith.divf %176, %177 : vector<8x32xf32>
    %179 = vector.extract_strided_slice %172 {offsets = [0, 32], sizes = [8, 32], strides = [1, 1]} : vector<8x128xf32> to vector<8x32xf32>
    %180 = arith.negf %179 : vector<8x32xf32>
    %181 = math.exp %180 : vector<8x32xf32>
    %cst_61 = arith.constant 1.000000e+00 : f32
    %182 = vector.broadcast %cst_61 : f32 to vector<8x32xf32>
    %183 = arith.addf %182, %181 : vector<8x32xf32>
    %184 = arith.divf %182, %183 : vector<8x32xf32>
    %185 = vector.extract_strided_slice %172 {offsets = [0, 64], sizes = [8, 32], strides = [1, 1]} : vector<8x128xf32> to vector<8x32xf32>
    %186 = math.tanh %185 : vector<8x32xf32>
    %187 = vector.extract_strided_slice %172 {offsets = [0, 96], sizes = [8, 32], strides = [1, 1]} : vector<8x128xf32> to vector<8x32xf32>
    %188 = arith.negf %187 : vector<8x32xf32>
    %189 = math.exp %188 : vector<8x32xf32>
    %cst_62 = arith.constant 1.000000e+00 : f32
    %190 = vector.broadcast %cst_62 : f32 to vector<8x32xf32>
    %191 = arith.addf %190, %189 : vector<8x32xf32>
    %192 = arith.divf %190, %191 : vector<8x32xf32>
    %193 = arith.mulf %184, %156 : vector<8x32xf32>
    %194 = arith.mulf %178, %186 : vector<8x32xf32>
    %195 = arith.addf %193, %194 : vector<8x32xf32>
    %196 = math.tanh %195 : vector<8x32xf32>
    %197 = arith.mulf %192, %196 : vector<8x32xf32>
    %c0_63 = arith.constant 0 : index
    %198 = arith.index_cast %166 : i32 to index
    %c0_64 = arith.constant 0 : index
    %c0_65 = arith.constant 0 : index
    %199 = vector.load %arg4[%c0_63, %198, %c0_64, %c0_65] : memref<1x8x8x32xf32, #tpu.memory_space<vmem>>, vector<1x1x8x32xf32>
    %200 = vector.shape_cast %199 : vector<1x1x8x32xf32> to vector<8x32xf32>
    %201 = vector.shape_cast %197 : vector<8x32xf32> to vector<1x1x8x32xf32>
    tpu.vector_store %arg4[%c0_63, %198, %c0_64, %c0_65], %201 {strides = array<i32>} : memref<1x8x8x32xf32, #tpu.memory_space<vmem>>, vector<1x1x8x32xf32>,
    %c5_i32 = arith.constant 5 : i32
    %c2_i32_66 = arith.constant 2 : i32
    %202 = arith.muli %c2_i32_66, %c5_i32 : i32
    %c7_i32_67 = arith.constant 7 : i32
    %203 = arith.subi %c7_i32_67, %202 : i32
    %204 = arith.muli %arg0, %203 : i32
    %205 = arith.addi %c5_i32, %204 : i32
    %c0_68 = arith.constant 0 : index
    %206 = arith.index_cast %205 : i32 to index
    %c0_69 = arith.constant 0 : index
    %c0_70 = arith.constant 0 : index
    %207 = vector.load %arg2[%c0_68, %206, %c0_69, %c0_70] : memref<1x8x8x128xf32, #tpu.memory_space<vmem>>, vector<1x1x8x128xf32>
    %208 = vector.shape_cast %207 : vector<1x1x8x128xf32> to vector<8x128xf32>
    %209 = arith.truncf %197 : vector<8x32xf32> to vector<8x32xbf16>
    %cst_71 = arith.constant dense<0.000000e+00> : vector<8x128xf32>
    %210 = tpu.matmul %209, %4, %cst_71 {dimension_numbers = #tpu.dot_dimension_numbers<[1], [0], [0], [1], [0, 0, 1, 1], [], []>} : vector<8x32xbf16>, vector<32x128xbf16>, vector<8x128xf32> -> vector<8x128xf32>
    %211 = arith.addf %208, %210 : vector<8x128xf32>
    %212 = vector.extract_strided_slice %211 {offsets = [0, 0], sizes = [8, 32], strides = [1, 1]} : vector<8x128xf32> to vector<8x32xf32>
    %213 = arith.negf %212 : vector<8x32xf32>
    %214 = math.exp %213 : vector<8x32xf32>
    %cst_72 = arith.constant 1.000000e+00 : f32
    %215 = vector.broadcast %cst_72 : f32 to vector<8x32xf32>
    %216 = arith.addf %215, %214 : vector<8x32xf32>
    %217 = arith.divf %215, %216 : vector<8x32xf32>
    %218 = vector.extract_strided_slice %211 {offsets = [0, 32], sizes = [8, 32], strides = [1, 1]} : vector<8x128xf32> to vector<8x32xf32>
    %219 = arith.negf %218 : vector<8x32xf32>
    %220 = math.exp %219 : vector<8x32xf32>
    %cst_73 = arith.constant 1.000000e+00 : f32
    %221 = vector.broadcast %cst_73 : f32 to vector<8x32xf32>
    %222 = arith.addf %221, %220 : vector<8x32xf32>
    %223 = arith.divf %221, %222 : vector<8x32xf32>
    %224 = vector.extract_strided_slice %211 {offsets = [0, 64], sizes = [8, 32], strides = [1, 1]} : vector<8x128xf32> to vector<8x32xf32>
    %225 = math.tanh %224 : vector<8x32xf32>
    %226 = vector.extract_strided_slice %211 {offsets = [0, 96], sizes = [8, 32], strides = [1, 1]} : vector<8x128xf32> to vector<8x32xf32>
    %227 = arith.negf %226 : vector<8x32xf32>
    %228 = math.exp %227 : vector<8x32xf32>
    %cst_74 = arith.constant 1.000000e+00 : f32
    %229 = vector.broadcast %cst_74 : f32 to vector<8x32xf32>
    %230 = arith.addf %229, %228 : vector<8x32xf32>
    %231 = arith.divf %229, %230 : vector<8x32xf32>
    %232 = arith.mulf %223, %195 : vector<8x32xf32>
    %233 = arith.mulf %217, %225 : vector<8x32xf32>
    %234 = arith.addf %232, %233 : vector<8x32xf32>
    %235 = math.tanh %234 : vector<8x32xf32>
    %236 = arith.mulf %231, %235 : vector<8x32xf32>
    %c0_75 = arith.constant 0 : index
    %237 = arith.index_cast %205 : i32 to index
    %c0_76 = arith.constant 0 : index
    %c0_77 = arith.constant 0 : index
    %238 = vector.load %arg4[%c0_75, %237, %c0_76, %c0_77] : memref<1x8x8x32xf32, #tpu.memory_space<vmem>>, vector<1x1x8x32xf32>
    %239 = vector.shape_cast %238 : vector<1x1x8x32xf32> to vector<8x32xf32>
    %240 = vector.shape_cast %236 : vector<8x32xf32> to vector<1x1x8x32xf32>
    tpu.vector_store %arg4[%c0_75, %237, %c0_76, %c0_77], %240 {strides = array<i32>} : memref<1x8x8x32xf32, #tpu.memory_space<vmem>>, vector<1x1x8x32xf32>,
    %c6_i32 = arith.constant 6 : i32
    %c2_i32_78 = arith.constant 2 : i32
    %241 = arith.muli %c2_i32_78, %c6_i32 : i32
    %c7_i32_79 = arith.constant 7 : i32
    %242 = arith.subi %c7_i32_79, %241 : i32
    %243 = arith.muli %arg0, %242 : i32
    %244 = arith.addi %c6_i32, %243 : i32
    %c0_80 = arith.constant 0 : index
    %245 = arith.index_cast %244 : i32 to index
    %c0_81 = arith.constant 0 : index
    %c0_82 = arith.constant 0 : index
    %246 = vector.load %arg2[%c0_80, %245, %c0_81, %c0_82] : memref<1x8x8x128xf32, #tpu.memory_space<vmem>>, vector<1x1x8x128xf32>
    %247 = vector.shape_cast %246 : vector<1x1x8x128xf32> to vector<8x128xf32>
    %248 = arith.truncf %236 : vector<8x32xf32> to vector<8x32xbf16>
    %cst_83 = arith.constant dense<0.000000e+00> : vector<8x128xf32>
    %249 = tpu.matmul %248, %4, %cst_83 {dimension_numbers = #tpu.dot_dimension_numbers<[1], [0], [0], [1], [0, 0, 1, 1], [], []>} : vector<8x32xbf16>, vector<32x128xbf16>, vector<8x128xf32> -> vector<8x128xf32>
    %250 = arith.addf %247, %249 : vector<8x128xf32>
    %251 = vector.extract_strided_slice %250 {offsets = [0, 0], sizes = [8, 32], strides = [1, 1]} : vector<8x128xf32> to vector<8x32xf32>
    %252 = arith.negf %251 : vector<8x32xf32>
    %253 = math.exp %252 : vector<8x32xf32>
    %cst_84 = arith.constant 1.000000e+00 : f32
    %254 = vector.broadcast %cst_84 : f32 to vector<8x32xf32>
    %255 = arith.addf %254, %253 : vector<8x32xf32>
    %256 = arith.divf %254, %255 : vector<8x32xf32>
    %257 = vector.extract_strided_slice %250 {offsets = [0, 32], sizes = [8, 32], strides = [1, 1]} : vector<8x128xf32> to vector<8x32xf32>
    %258 = arith.negf %257 : vector<8x32xf32>
    %259 = math.exp %258 : vector<8x32xf32>
    %cst_85 = arith.constant 1.000000e+00 : f32
    %260 = vector.broadcast %cst_85 : f32 to vector<8x32xf32>
    %261 = arith.addf %260, %259 : vector<8x32xf32>
    %262 = arith.divf %260, %261 : vector<8x32xf32>
    %263 = vector.extract_strided_slice %250 {offsets = [0, 64], sizes = [8, 32], strides = [1, 1]} : vector<8x128xf32> to vector<8x32xf32>
    %264 = math.tanh %263 : vector<8x32xf32>
    %265 = vector.extract_strided_slice %250 {offsets = [0, 96], sizes = [8, 32], strides = [1, 1]} : vector<8x128xf32> to vector<8x32xf32>
    %266 = arith.negf %265 : vector<8x32xf32>
    %267 = math.exp %266 : vector<8x32xf32>
    %cst_86 = arith.constant 1.000000e+00 : f32
    %268 = vector.broadcast %cst_86 : f32 to vector<8x32xf32>
    %269 = arith.addf %268, %267 : vector<8x32xf32>
    %270 = arith.divf %268, %269 : vector<8x32xf32>
    %271 = arith.mulf %262, %234 : vector<8x32xf32>
    %272 = arith.mulf %256, %264 : vector<8x32xf32>
    %273 = arith.addf %271, %272 : vector<8x32xf32>
    %274 = math.tanh %273 : vector<8x32xf32>
    %275 = arith.mulf %270, %274 : vector<8x32xf32>
    %c0_87 = arith.constant 0 : index
    %276 = arith.index_cast %244 : i32 to index
    %c0_88 = arith.constant 0 : index
    %c0_89 = arith.constant 0 : index
    %277 = vector.load %arg4[%c0_87, %276, %c0_88, %c0_89] : memref<1x8x8x32xf32, #tpu.memory_space<vmem>>, vector<1x1x8x32xf32>
    %278 = vector.shape_cast %277 : vector<1x1x8x32xf32> to vector<8x32xf32>
    %279 = vector.shape_cast %275 : vector<8x32xf32> to vector<1x1x8x32xf32>
    tpu.vector_store %arg4[%c0_87, %276, %c0_88, %c0_89], %279 {strides = array<i32>} : memref<1x8x8x32xf32, #tpu.memory_space<vmem>>, vector<1x1x8x32xf32>,
    %c7_i32_90 = arith.constant 7 : i32
    %c2_i32_91 = arith.constant 2 : i32
    %280 = arith.muli %c2_i32_91, %c7_i32_90 : i32
    %c7_i32_92 = arith.constant 7 : i32
    %281 = arith.subi %c7_i32_92, %280 : i32
    %282 = arith.muli %arg0, %281 : i32
    %283 = arith.addi %c7_i32_90, %282 : i32
    %c0_93 = arith.constant 0 : index
    %284 = arith.index_cast %283 : i32 to index
    %c0_94 = arith.constant 0 : index
    %c0_95 = arith.constant 0 : index
    %285 = vector.load %arg2[%c0_93, %284, %c0_94, %c0_95] : memref<1x8x8x128xf32, #tpu.memory_space<vmem>>, vector<1x1x8x128xf32>
    %286 = vector.shape_cast %285 : vector<1x1x8x128xf32> to vector<8x128xf32>
    %287 = arith.truncf %275 : vector<8x32xf32> to vector<8x32xbf16>
    %cst_96 = arith.constant dense<0.000000e+00> : vector<8x128xf32>
    %288 = tpu.matmul %287, %4, %cst_96 {dimension_numbers = #tpu.dot_dimension_numbers<[1], [0], [0], [1], [0, 0, 1, 1], [], []>} : vector<8x32xbf16>, vector<32x128xbf16>, vector<8x128xf32> -> vector<8x128xf32>
    %289 = arith.addf %286, %288 : vector<8x128xf32>
    %290 = vector.extract_strided_slice %289 {offsets = [0, 0], sizes = [8, 32], strides = [1, 1]} : vector<8x128xf32> to vector<8x32xf32>
    %291 = arith.negf %290 : vector<8x32xf32>
    %292 = math.exp %291 : vector<8x32xf32>
    %cst_97 = arith.constant 1.000000e+00 : f32
    %293 = vector.broadcast %cst_97 : f32 to vector<8x32xf32>
    %294 = arith.addf %293, %292 : vector<8x32xf32>
    %295 = arith.divf %293, %294 : vector<8x32xf32>
    %296 = vector.extract_strided_slice %289 {offsets = [0, 32], sizes = [8, 32], strides = [1, 1]} : vector<8x128xf32> to vector<8x32xf32>
    %297 = arith.negf %296 : vector<8x32xf32>
    %298 = math.exp %297 : vector<8x32xf32>
    %cst_98 = arith.constant 1.000000e+00 : f32
    %299 = vector.broadcast %cst_98 : f32 to vector<8x32xf32>
    %300 = arith.addf %299, %298 : vector<8x32xf32>
    %301 = arith.divf %299, %300 : vector<8x32xf32>
    %302 = vector.extract_strided_slice %289 {offsets = [0, 64], sizes = [8, 32], strides = [1, 1]} : vector<8x128xf32> to vector<8x32xf32>
    %303 = math.tanh %302 : vector<8x32xf32>
    %304 = vector.extract_strided_slice %289 {offsets = [0, 96], sizes = [8, 32], strides = [1, 1]} : vector<8x128xf32> to vector<8x32xf32>
    %305 = arith.negf %304 : vector<8x32xf32>
    %306 = math.exp %305 : vector<8x32xf32>
    %cst_99 = arith.constant 1.000000e+00 : f32
    %307 = vector.broadcast %cst_99 : f32 to vector<8x32xf32>
    %308 = arith.addf %307, %306 : vector<8x32xf32>
    %309 = arith.divf %307, %308 : vector<8x32xf32>
    %310 = arith.mulf %301, %273 : vector<8x32xf32>
    %311 = arith.mulf %295, %303 : vector<8x32xf32>
    %312 = arith.addf %310, %311 : vector<8x32xf32>
    %313 = math.tanh %312 : vector<8x32xf32>
    %314 = arith.mulf %309, %313 : vector<8x32xf32>
    %c0_100 = arith.constant 0 : index
    %315 = arith.index_cast %283 : i32 to index
    %c0_101 = arith.constant 0 : index
    %c0_102 = arith.constant 0 : index
    %316 = vector.load %arg4[%c0_100, %315, %c0_101, %c0_102] : memref<1x8x8x32xf32, #tpu.memory_space<vmem>>, vector<1x1x8x32xf32>
    %317 = vector.shape_cast %316 : vector<1x1x8x32xf32> to vector<8x32xf32>
    %318 = vector.shape_cast %314 : vector<8x32xf32> to vector<1x1x8x32xf32>
    tpu.vector_store %arg4[%c0_100, %315, %c0_101, %c0_102], %318 {strides = array<i32>} : memref<1x8x8x32xf32, #tpu.memory_space<vmem>>, vector<1x1x8x32xf32>,
    %c8_i32 = arith.constant 8 : i32
    %c0_103 = arith.constant 0 : index
    %c0_104 = arith.constant 0 : index
    %319 = vector.load %arg5[%c0_103, %c0_104] : memref<8x32xf32, #tpu.memory_space<vmem>>, vector<8x32xf32>
    tpu.vector_store %arg5[%c0_103, %c0_104], %314 {strides = array<i32>} : memref<8x32xf32, #tpu.memory_space<vmem>>, vector<8x32xf32>,
    %c0_105 = arith.constant 0 : index
    %c0_106 = arith.constant 0 : index
    %320 = vector.load %arg6[%c0_105, %c0_106] : memref<8x32xf32, #tpu.memory_space<vmem>>, vector<8x32xf32>
    tpu.vector_store %arg6[%c0_105, %c0_106], %312 {strides = array<i32>} : memref<8x32xf32, #tpu.memory_space<vmem>>, vector<8x32xf32>,
    return
  }
  func.func @transform_0(%arg0: i32, %arg1: i32) -> (i32, i32, i32, i32) {
    %c2_i32 = arith.constant 2 : i32
    %0 = arith.muli %c2_i32, %arg1 : i32
    %c0_i32 = arith.constant 0 : i32
    %1 = arith.subi %c0_i32, %0 : i32
    %2 = arith.muli %arg0, %1 : i32
    %3 = arith.addi %arg1, %2 : i32
    %c0_i32_0 = arith.constant 0 : i32
    %c0_i32_1 = arith.constant 0 : i32
    %c0_i32_2 = arith.constant 0 : i32
    return %arg0, %3, %c0_i32_0, %c0_i32_1 : i32, i32, i32, i32
  }
  func.func @transform_1(%arg0: i32, %arg1: i32) -> (i32, i32, i32) {
    %c0_i32 = arith.constant 0 : i32
    %c0_i32_0 = arith.constant 0 : i32
    %c0_i32_1 = arith.constant 0 : i32
    return %arg0, %c0_i32, %c0_i32_0 : i32, i32, i32
  }
  func.func @transform_2(%arg0: i32, %arg1: i32) -> (i32, i32, i32, i32) {
    %c2_i32 = arith.constant 2 : i32
    %0 = arith.muli %c2_i32, %arg1 : i32
    %c0_i32 = arith.constant 0 : i32
    %1 = arith.subi %c0_i32, %0 : i32
    %2 = arith.muli %arg0, %1 : i32
    %3 = arith.addi %arg1, %2 : i32
    %c0_i32_0 = arith.constant 0 : i32
    %c0_i32_1 = arith.constant 0 : i32
    %c0_i32_2 = arith.constant 0 : i32
    return %arg0, %3, %c0_i32_0, %c0_i32_1 : i32, i32, i32, i32
  }
}

</mosaic_0001>

<llo_original>
// kernel: _lambda_.3
$region0: #{_lambda_.3}
  #allocation0 [shape = 'u32[]', space=smem, size = 0x4, offset = 0x4, fixed_abs, tag = 'smem constant byte address 0x4 - core index']
  #allocation1 [shape = 'u32[144,128]{1,0:T(1,128)}', space=vmem, size = 0x12000, scoped, tag = 'internal scratch']
  #allocation2 [shape = 'f32[8,32]{1,0:T(8,128)}', space=vmem, size = 0x1000, scoped, tag = 'scratch operand']
  #allocation3 [shape = 'f32[8,32]{1,0:T(8,128)}', space=vmem, size = 0x1000, scoped, tag = 'scratch operand']
  %s0 = inlined_call_operand.vmem [shape: f32[2,8,8,128], index: 0, kind: input, shape index: {}]
  %s1 = inlined_call_operand.vmem [shape: bf16[2,32,128], index: 1, kind: input, shape index: {}]
  %s2 = inlined_call_operand.vmem [shape: f32[2,8,8,32], index: 2, kind: output, shape index: {}]
  %s3 = sld [smem:[#allocation0]]
  $region45: #{_lambda_.3} parent=0
    _
  %s5 = ssub.s32 1, %s3
  %s6 = scalar_select 0, %s5, %s3
  loop: start=0, step=1, limit=4
  $region2: #{_lambda_.3} parent=0 // loop_pre_header
    _
  $region3: #{_lambda_.3} parent=0 // loop_header
    %s8 = sphi 0, %s12
    %p9 = scmp.ge.s32.totalorder %s8, 4
    %s15 = sphi 0, %s27
    %s16 = sphi 0, %s23
    %s17 = sphi 0, %s15
    %s18 = sphi 0, %s16
    %s19 = sphi 0, %s17
    %s20 = sphi 0, %s18
    %s40 = sphi 0, %s42
    %s43 = sphi 0, %s40
    %s44 = sphi 0, %s43
    %s60 = sphi 0, %s44
    %s66 = sphi 0, %s68
    %s69 = sphi 0, %s66
    %s70 = sphi 0, %s69
    %s86 = sphi 0, %s70
    %s102 = sphi 0, %s104
    %s105 = sphi 0, %s102
    %s106 = sphi 0, %s105
    %s122 = sphi 0, %s106
  $region4: #{_lambda_.3} parent=0 // loop_header_branch
    %11 = sbr.rel (%p9) target = $region8
  $region5: #{_lambda_.3} parent=0 // loop_body
    %s13 = ssub.s32 %s8, 1
    %s14 = ssub.s32 %s8, 2
    %s21 = sadd.s32 1, %s16
    %p22 = scmp.ge.s32.totalorder %s21, 1
    %s23 = scalar_select %p22, 0, %s21
    %s24 = sadd.s32 1, %s15
    %s25 = scalar_select %p22, %s24, %s15
    %p26 = scmp.ge.s32.totalorder %s25, 2
    %s27 = scalar_select %p26, 0, %s25
    %s28 = smul.u32 %s16, 2
    %s29 = ssub.s32 0, %s28
    %s30 = smul.u32 %s15, %s29
    %s31 = sadd.s32 %s16, %s30
    %s32 = smul.u32 %s23, 2
    %s33 = ssub.s32 0, %s32
    %s34 = smul.u32 %s27, %s33
    %s35 = sadd.s32 %s23, %s34
    %s36 = ssub.s32 %s15, %s27
    %s37 = ssub.s32 %s31, %s35
    %s38 = sor.u32 %s36, %s37
    %p39 = scmp.eq.s32.totalorder %s38, 0
    %s41 = sadd.s32 %s40, 1
    %s42 = scalar_select %p39, %s40, %s41
    %p45 = pneg %p39
    %p46 = scmp.eq.s32.totalorder %s8, 1
    %p47 = por %p45, %p46
    %p48 = scmp.ne.s32.totalorder %s40, %s43
    %p49 = scmp.eq.s32.totalorder %s8, 0
    %p50 = por %p48, %p49
    %p51 = scmp.ne.s32.totalorder %s40, %s43
    %p52 = scmp.eq.s32.totalorder %s13, 1
    %p53 = por %p51, %p52
    %p54 = scmp.ne.s32.totalorder %s43, %s44
    %p55 = scmp.eq.s32.totalorder %s13, 0
    %p56 = por %p54, %p55
    %p57 = scmp.ne.s32.totalorder %s43, %s44
    %p58 = scmp.eq.s32.totalorder %s14, 1
    %p59 = por %p57, %p58
    %p61 = scmp.ne.s32.totalorder %s44, %s60
    %p62 = scmp.eq.s32.totalorder %s14, 0
    %p63 = por %p61, %p62
    %s64 = ssub.s32 %s15, %s27
    %p65 = scmp.eq.s32.totalorder %s64, 0
    %s67 = sadd.s32 %s66, 1
    %s68 = scalar_select %p65, %s66, %s67
    %p71 = pneg %p65
    %p72 = scmp.eq.s32.totalorder %s8, 1
    %p73 = por %p71, %p72
    %p74 = scmp.ne.s32.totalorder %s66, %s69
    %p75 = scmp.eq.s32.totalorder %s8, 0
    %p76 = por %p74, %p75
    %p77 = scmp.ne.s32.totalorder %s66, %s69
    %p78 = scmp.eq.s32.totalorder %s13, 1
    %p79 = por %p77, %p78
    %p80 = scmp.ne.s32.totalorder %s69, %s70
    %p81 = scmp.eq.s32.totalorder %s13, 0
    %p82 = por %p80, %p81
    %p83 = scmp.ne.s32.totalorder %s69, %s70
    %p84 = scmp.eq.s32.totalorder %s14, 1
    %p85 = por %p83, %p84
    %p87 = scmp.ne.s32.totalorder %s70, %s86
    %p88 = scmp.eq.s32.totalorder %s14, 0
    %p89 = por %p87, %p88
    %s90 = smul.u32 %s16, 2
    %s91 = ssub.s32 0, %s90
    %s92 = smul.u32 %s15, %s91
    %s93 = sadd.s32 %s16, %s92
    %s94 = smul.u32 %s23, 2
    %s95 = ssub.s32 0, %s94
    %s96 = smul.u32 %s27, %s95
    %s97 = sadd.s32 %s23, %s96
    %s98 = ssub.s32 %s15, %s27
    %s99 = ssub.s32 %s93, %s97
    %s100 = sor.u32 %s98, %s99
    %p101 = scmp.eq.s32.totalorder %s100, 0
    %s103 = sadd.s32 %s102, 1
    %s104 = scalar_select %p101, %s102, %s103
    %p107 = pneg %p101
    %p108 = scmp.eq.s32.totalorder %s8, 1
    %p109 = por %p107, %p108
    %p110 = scmp.ne.s32.totalorder %s102, %s105
    %p111 = scmp.eq.s32.totalorder %s8, 0
    %p112 = por %p110, %p111
    %p113 = scmp.ne.s32.totalorder %s102, %s105
    %p114 = scmp.eq.s32.totalorder %s13, 1
    %p115 = por %p113, %p114
    %p116 = scmp.ne.s32.totalorder %s105, %s106
    %p117 = scmp.eq.s32.totalorder %s13, 0
    %p118 = por %p116, %p117
    %p119 = scmp.ne.s32.totalorder %s105, %s106
    %p120 = scmp.eq.s32.totalorder %s14, 1
    %p121 = por %p119, %p120
    %p123 = scmp.ne.s32.totalorder %s106, %s122
    %p124 = scmp.eq.s32.totalorder %s14, 0
    %p125 = por %p123, %p124
    %p126 = scmp.le.s32.totalorder 1, %s8
    %p127 = scmp.lt.s32.totalorder %s8, 3
    %p128 = pnand %p126, %p127
    %p129 = pneg %p128
    // Predicated region
    $region9: #{_lambda_.3} parent=5 // pred_check
      _
    $region10: #{_lambda_.3} parent=5 // pred_check_branch
      %131 = sbr.rel (%p128) target = $region12
    $region11: #{_lambda_.3} parent=5 // pred_region
      %s132 = ssub.s32 %s8, 1
    $region12: #{_lambda_.3} parent=5 // pred_fallthru
      _
    %p133 = scmp.lt.s32.totalorder %s8, 2
    // Predicated region
    $region13: #{_lambda_.3} parent=5 // pred_check
      %p134 = pneg %p133
    $region14: #{_lambda_.3} parent=5 // pred_check_branch
      %136 = sbr.rel (%p134) target = $region16
    $region15: #{_lambda_.3} parent=5 // pred_region
      // Predicated region
      $region17: #{_lambda_.3} parent=15 // pred_check
        %p137 = pneg %p50
      $region18: #{_lambda_.3} parent=15 // pred_check_branch
        %139 = sbr.rel (%p137) target = $region20
      $region19: #{_lambda_.3} parent=15 // pred_region
        %s140 = smul.u32 %s16, 2
        %s141 = ssub.s32 0, %s140
        %s142 = smul.u32 %s15, %s141
        %s143 = sadd.s32 %s16, %s142
        %s144 = smul.u32 8, %s143
        %p145 = scmp.lt.s32.totalorder %s15, 1
        %s146 = scalar_select %p145, %s15, 1
        %p147 = scmp.lt.s32.totalorder %s144, 7
        %s148 = scalar_select %p147, %s144, 7
        %s149 = smul.addr %s146, 8
        %s150 = sadd.s32 %s148, %s149
        %s151 = smul.addr %s150, 8
        %s152 = scalar_lea.vmem %s0, %s151
        %s153 = smul.u32 %s16, 2
        %s154 = ssub.s32 0, %s153
        %s155 = smul.u32 %s15, %s154
        %s156 = sadd.s32 %s16, %s155
        %s157 = smul.u32 8, %s156
      $region20: #{_lambda_.3} parent=15 // pred_fallthru
        _
      // Predicated region
      $region21: #{_lambda_.3} parent=15 // pred_check
        %p158 = pneg %p76
      $region22: #{_lambda_.3} parent=15 // pred_check_branch
        %160 = sbr.rel (%p158) target = $region24
      $region23: #{_lambda_.3} parent=15 // pred_region
        %p161 = scmp.lt.s32.totalorder %s15, 1
        %s162 = scalar_select %p161, %s15, 1
        %s163 = smul.addr %s162, 4
        %s164 = smul.addr %s163, 4
        %s165 = scalar_lea.vmem %s1, %s164
      $region24: #{_lambda_.3} parent=15 // pred_fallthru
        _
    $region16: #{_lambda_.3} parent=5 // pred_fallthru
      _
    %p166 = scmp.le.s32.totalorder 1, %s8
    %p167 = scmp.lt.s32.totalorder %s8, 3
    %p168 = pnand %p166, %p167
    %p169 = pneg %p168
    // Predicated region
    $region25: #{_lambda_.3} parent=5 // pred_check
      _
    $region26: #{_lambda_.3} parent=5 // pred_check_branch
      %171 = sbr.rel (%p168) target = $region28
    $region27: #{_lambda_.3} parent=5 // pred_region
      %s172 = ssub.s32 %s8, 1
      %s173 = smul.u32 %s18, 2
      %s174 = ssub.s32 0, %s173
      %s175 = smul.u32 %s17, %s174
      %s176 = sadd.s32 %s18, %s175
      %s177 = smul.u32 8, %s176
      %p178 = scmp.lt.s32.totalorder %s17, 1
      %s179 = scalar_select %p178, %s17, 1
      %p180 = scmp.lt.s32.totalorder %s177, 7
      %s181 = scalar_select %p180, %s177, 7
      %s182 = smul.addr %s179, 8
      %s183 = sadd.s32 %s181, %s182
      %s184 = smul.addr %s183, 8
      %s185 = scalar_lea.vmem %s0, %s184
      %p186 = pneg %p56
      %p187 = pneg %p53
      %p188 = scmp.lt.s32.totalorder %s17, 1
      %s189 = scalar_select %p188, %s17, 1
      %s190 = smul.addr %s189, 4
      %s191 = smul.addr %s190, 4
      %s192 = scalar_lea.vmem %s1, %s191
      %p193 = pneg %p82
      %p194 = pneg %p79
      %p195 = pneg %p118
      %p196 = pneg %p115
      %s197 = smul.u32 %s18, 2
      %s198 = ssub.s32 0, %s197
      %s199 = smul.u32 %s17, %s198
      %s200 = sadd.s32 %s18, %s199
      %s201 = smul.u32 8, %s200
      %p202 = scmp.lt.s32.totalorder %s17, 1
      %s203 = scalar_select %p202, %s17, 1
      %p204 = scmp.lt.s32.totalorder %s201, 7
      %s205 = scalar_select %p204, %s201, 7
      %s206 = smul.addr %s203, 8
      %s207 = sadd.s32 %s205, %s206
      %s208 = smul.addr %s207, 8
      %s209 = scalar_lea.vmem %s2, %s208
      %s210 = smul.u32 %s18, 2
      %s211 = ssub.s32 0, %s210
      %s212 = smul.u32 %s17, %s211
      %s213 = sadd.s32 %s18, %s212
      %s214 = smul.u32 8, %s213
      %p215 = scmp.lt.s32.totalorder %s17, 1
      %s216 = scalar_select %p215, %s17, 1
      %p217 = scmp.lt.s32.totalorder %s214, 7
      %s218 = scalar_select %p217, %s214, 7
      %s219 = smul.addr %s216, 8
      %s220 = sadd.s32 %s218, %s219
      %s221 = smul.addr %s220, 8
      %s222 = scalar_lea.vmem %s0, %s221
      %s223 = smul.u32 %s18, 2
      %s224 = ssub.s32 0, %s223
      %s225 = smul.u32 %s17, %s224
      %s226 = sadd.s32 %s18, %s225
      %s227 = smul.u32 8, %s226
      %p228 = scmp.lt.s32.totalorder %s17, 1
      %s229 = scalar_select %p228, %s17, 1
      %s230 = smul.addr %s229, 4
      %s231 = smul.addr %s230, 4
      %s232 = scalar_lea.vmem %s1, %s231
      %s233 = smul.u32 %s18, 2
      %s234 = ssub.s32 0, %s233
      %s235 = smul.u32 %s17, %s234
      %s236 = sadd.s32 %s18, %s235
      %s237 = smul.u32 8, %s236
      %p238 = scmp.lt.s32.totalorder %s17, 1
      %s239 = scalar_select %p238, %s17, 1
      %p240 = scmp.lt.s32.totalorder %s237, 7
      %s241 = scalar_select %p240, %s237, 7
      %s242 = smul.addr %s239, 8
      %s243 = sadd.s32 %s241, %s242
      %s244 = smul.addr %s243, 8
      %s245 = scalar_lea.vmem %s2, %s244
      %s246 = smul.u32 %s18, 2
      %s247 = ssub.s32 0, %s246
      %s248 = smul.u32 %s17, %s247
      %s249 = sadd.s32 %s18, %s248
      %s250 = smul.u32 8, %s249
      %p252 = scmp.eq.s32.totalorder %s18, 0
      // Predicated region
      $region29: #{_lambda_.3} parent=27 // pred_check
        %p253 = pneg %p252
      $region30: #{_lambda_.3} parent=27 // pred_check_branch
        %255 = sbr.rel (%p253) target = $region32
      $region31: #{_lambda_.3} parent=27 // pred_region
        %vm256 = vcmask 261120
        %257 = vst.msk [vmem:[#allocation2] sm:$0xff] %vm256, 0.0
        %258 = vst.msk [vmem:[#allocation3] sm:$0xff] %vm256, 0.0
      $region32: #{_lambda_.3} parent=27 // pred_fallthru
        _
      %v259 = vld [vmem:[%s232] sm:$0xf]
      %v260 = vld [vmem:[%s232 + $0x4] sm:$0xf]
      %v261 = vld [vmem:[%s232 + $0x8] sm:$0xf]
      %v262 = vld [vmem:[%s232 + $0xc] sm:$0xf]
      %v263 = vld [vmem:[#allocation2] sm:$0xff]
      %v264 = vld [vmem:[#allocation3] sm:$0xff]
      %s265 = smul.u32 %s17, 7
      %s266 = smul.u32 %s265, 8
      %s267 = scalar_lea.vmem %s222, %s266
      %v268 = vld [vmem:[%s267] sm:$0xff]
      %v269 = vpack.c.bf16 %v263, %v263
      %v274 = vunpack.c.l.b16 %v259
      %v275 = vunpack.c.l.b16 %v260
      %v276 = vunpack.c.l.b16 %v261
      %v277 = vunpack.c.l.b16 %v262
      %v278 = vpack.c.b16 %v275, %v274
      %v279 = vpack.c.b16 %v277, %v276
      %vm282 = vcmask 261120
      %v284 = vsel %vm282, %v269, 0
      %286 = vmatprep.subr.bf16.mxu0 0
      %287 = vmatpush1.bf16.msra.mxu0 0
      %288 = vmatprep.subr.bf16.mxu0 0
      %289 = vmatpush1.bf16.msra.mxu0 0
      %290 = vmatprep.subr.bf16.mxu0 0
      %291 = vmatpush1.bf16.msra.mxu0 0
      %292 = vmatprep.subr.bf16.mxu0 0
      %293 = vmatpush1.bf16.msra.mxu0 0
      %294 = vmatprep.subr.bf16.mxu0 0
      %295 = vmatpush1.bf16.msra.mxu0 0
      %296 = vmatprep.subr.bf16.mxu0 0
      %297 = vmatpush1.bf16.msra.mxu0 0
      %298 = vmatprep.subr.bf16.mxu0 0
      %299 = vmatpush1.bf16.msra.mxu0 %v279
      %300 = vmatprep.subr.bf16.mxu0 0
      %301 = vmatpush1.bf16.msra.mxu0 %v278
      %302 = vmatprep.subr.bf16.mxu0 0
      %303 = vmatpush2.bf16.msra.mxu0 0
      %304 = vmatprep.subr.bf16.mxu0 0
      %305 = vmatpush2.bf16.msra.mxu0 0
      %306 = vmatprep.subr.bf16.mxu0 0
      %307 = vmatpush2.bf16.msra.mxu0 0
      %308 = vmatprep.subr.bf16.mxu0 0
      %309 = vmatpush2.bf16.msra.mxu0 0
      %310 = vmatprep.subr.bf16.mxu0 0
      %311 = vmatpush2.bf16.msra.mxu0 0
      %312 = vmatprep.subr.bf16.mxu0 0
      %313 = vmatpush2.bf16.msra.mxu0 0
      %314 = vmatprep.subr.bf16.mxu0 0
      %315 = vmatpush2.bf16.msra.mxu0 0
      %316 = vmatprep.subr.bf16.mxu0 0
      %317 = vmatpush2.bf16.msra.mxu0 0
      %318 = vmatprep.mubr.bf16.mxu0 0
      %319 = vmatmul.mubr.bf16.gmra.mxu0 %v284
      %v320 = vpop.f32.mrf.mxu0
      %v321 = vadd.f32 0.0, %v320
      %v322 = vpop.f32.mrf.mxu0
      %v323 = vpop.f32.mrf.mxu0
      %v324 = vpop.f32.mrf.mxu0
      %325 = vdwg.mxu0
      %v326 = vadd.f32 %v268, %v321
      %v327 = vxor.u32 %v326, 2147483648
      %v328 = vmul.f32 %v327, 1.442695
      %v329 = vpow.pop %v328
      %v330 = vadd.f32 %v329, 1.0
      %v331 = vrcp.pop %v330
      %v332 = vmul.f32 1.0, %v331
      %v333 = vtanh.pop %v326
      %335 = vrot.lane.b32.xlu0 %v264, 32
      %v336 = vpop.permute.xlu0 %335
      %v338 = vmul.f32 %v332, %v336
      %340 = vrot.lane.b32.xlu0 %v333, 64
      %v341 = vpop.permute.xlu0 %340
      %v343 = vmul.f32 %v332, %v341
      %345 = vrot.lane.b32.xlu0 %v343, 32
      %v346 = vpop.permute.xlu0 %345
      %v348 = vadd.f32 %v338, %v346
      %v349 = vtanh.pop %v348
      %351 = vrot.lane.b32.xlu0 %v349, 64
      %v352 = vpop.permute.xlu0 %351
      %v354 = vmul.f32 %v332, %v352
      %356 = vrot.lane.b32.xlu0 %v354, 32
      %v357 = vpop.permute.xlu0 %356
      %s359 = scalar_lea.vmem %s245, %s266
      %360 = vst.msk [vmem:[%s359] sm:$0xff] %vm282, %v357
      %s361 = smul.u32 %s17, 5
      %s362 = sadd.s32 %s361, 1
      %s363 = smul.u32 %s362, 8
      %s364 = scalar_lea.vmem %s222, %s363
      %v365 = vld [vmem:[%s364] sm:$0xff]
      %v366 = vpack.c.bf16 %v354, %v354
      %368 = vrot.lane.b32.xlu0 %v366, 32
      %v369 = vpop.permute.xlu0 %368
      %v371 = vsel %vm282, %v369, 0
      %373 = vmatprep.subr.bf16.mxu0 0
      %374 = vmatpush1.bf16.msra.mxu0 0
      %375 = vmatprep.subr.bf16.mxu0 0
      %376 = vmatpush1.bf16.msra.mxu0 0
      %377 = vmatprep.subr.bf16.mxu0 0
      %378 = vmatpush1.bf16.msra.mxu0 0
      %379 = vmatprep.subr.bf16.mxu0 0
      %380 = vmatpush1.bf16.msra.mxu0 0
      %381 = vmatprep.subr.bf16.mxu0 0
      %382 = vmatpush1.bf16.msra.mxu0 0
      %383 = vmatprep.subr.bf16.mxu0 0
      %384 = vmatpush1.bf16.msra.mxu0 0
      %385 = vmatprep.subr.bf16.mxu0 0
      %386 = vmatpush1.bf16.msra.mxu0 %v279
      %387 = vmatprep.subr.bf16.mxu0 0
      %388 = vmatpush1.bf16.msra.mxu0 %v278
      %389 = vmatprep.subr.bf16.mxu0 0
      %390 = vmatpush2.bf16.msra.mxu0 0
      %391 = vmatprep.subr.bf16.mxu0 0
      %392 = vmatpush2.bf16.msra.mxu0 0
      %393 = vmatprep.subr.bf16.mxu0 0
      %394 = vmatpush2.bf16.msra.mxu0 0
      %395 = vmatprep.subr.bf16.mxu0 0
      %396 = vmatpush2.bf16.msra.mxu0 0
      %397 = vmatprep.subr.bf16.mxu0 0
      %398 = vmatpush2.bf16.msra.mxu0 0
      %399 = vmatprep.subr.bf16.mxu0 0
      %400 = vmatpush2.bf16.msra.mxu0 0
      %401 = vmatprep.subr.bf16.mxu0 0
      %402 = vmatpush2.bf16.msra.mxu0 0
      %403 = vmatprep.subr.bf16.mxu0 0
      %404 = vmatpush2.bf16.msra.mxu0 0
      %405 = vmatprep.mubr.bf16.mxu0 0
      %406 = vmatmul.mubr.bf16.gmra.mxu0 %v371
      %v407 = vpop.f32.mrf.mxu0
      %v408 = vadd.f32 0.0, %v407
      %v409 = vpop.f32.mrf.mxu0
      %v410 = vpop.f32.mrf.mxu0
      %v411 = vpop.f32.mrf.mxu0
      %412 = vdwg.mxu0
      %v413 = vadd.f32 %v365, %v408
      %v414 = vxor.u32 %v413, 2147483648
      %v415 = vmul.f32 %v414, 1.442695
      %v416 = vpow.pop %v415
      %v417 = vadd.f32 %v416, 1.0
      %v418 = vrcp.pop %v417
      %v419 = vmul.f32 1.0, %v418
      %v420 = vtanh.pop %v413
      %v421 = vmul.f32 %v419, %v348
      %423 = vrot.lane.b32.xlu0 %v420, 64
      %v424 = vpop.permute.xlu0 %423
      %v426 = vmul.f32 %v419, %v424
      %428 = vrot.lane.b32.xlu0 %v426, 32
      %v429 = vpop.permute.xlu0 %428
      %v431 = vadd.f32 %v421, %v429
      %v432 = vtanh.pop %v431
      %434 = vrot.lane.b32.xlu0 %v432, 64
      %v435 = vpop.permute.xlu0 %434
      %v437 = vmul.f32 %v419, %v435
      %439 = vrot.lane.b32.xlu0 %v437, 32
      %v440 = vpop.permute.xlu0 %439
      %s442 = scalar_lea.vmem %s245, %s363
      %443 = vst.msk [vmem:[%s442] sm:$0xff] %vm282, %v440
      %s444 = smul.u32 %s17, 3
      %s445 = sadd.s32 %s444, 2
      %s446 = smul.u32 %s445, 8
      %s447 = scalar_lea.vmem %s222, %s446
      %v448 = vld [vmem:[%s447] sm:$0xff]
      %v449 = vpack.c.bf16 %v437, %v437
      %451 = vrot.lane.b32.xlu0 %v449, 32
      %v452 = vpop.permute.xlu0 %451
      %v454 = vsel %vm282, %v452, 0
      %456 = vmatprep.subr.bf16.mxu0 0
      %457 = vmatpush1.bf16.msra.mxu0 0
      %458 = vmatprep.subr.bf16.mxu0 0
      %459 = vmatpush1.bf16.msra.mxu0 0
      %460 = vmatprep.subr.bf16.mxu0 0
      %461 = vmatpush1.bf16.msra.mxu0 0
      %462 = vmatprep.subr.bf16.mxu0 0
      %463 = vmatpush1.bf16.msra.mxu0 0
      %464 = vmatprep.subr.bf16.mxu0 0
      %465 = vmatpush1.bf16.msra.mxu0 0
      %466 = vmatprep.subr.bf16.mxu0 0
      %467 = vmatpush1.bf16.msra.mxu0 0
      %468 = vmatprep.subr.bf16.mxu0 0
      %469 = vmatpush1.bf16.msra.mxu0 %v279
      %470 = vmatprep.subr.bf16.mxu0 0
      %471 = vmatpush1.bf16.msra.mxu0 %v278
      %472 = vmatprep.subr.bf16.mxu0 0
      %473 = vmatpush2.bf16.msra.mxu0 0
      %474 = vmatprep.subr.bf16.mxu0 0
      %475 = vmatpush2.bf16.msra.mxu0 0
      %476 = vmatprep.subr.bf16.mxu0 0
      %477 = vmatpush2.bf16.msra.mxu0 0
      %478 = vmatprep.subr.bf16.mxu0 0
      %479 = vmatpush2.bf16.msra.mxu0 0
      %480 = vmatprep.subr.bf16.mxu0 0
      %481 = vmatpush2.bf16.msra.mxu0 0
      %482 = vmatprep.subr.bf16.mxu0 0
      %483 = vmatpush2.bf16.msra.mxu0 0
      %484 = vmatprep.subr.bf16.mxu0 0
      %485 = vmatpush2.bf16.msra.mxu0 0
      %486 = vmatprep.subr.bf16.mxu0 0
      %487 = vmatpush2.bf16.msra.mxu0 0
      %488 = vmatprep.mubr.bf16.mxu0 0
      %489 = vmatmul.mubr.bf16.gmra.mxu0 %v454
      %v490 = vpop.f32.mrf.mxu0
      %v491 = vadd.f32 0.0, %v490
      %v492 = vpop.f32.mrf.mxu0
      %v493 = vpop.f32.mrf.mxu0
      %v494 = vpop.f32.mrf.mxu0
      %495 = vdwg.mxu0
      %v496 = vadd.f32 %v448, %v491
      %v497 = vxor.u32 %v496, 2147483648
      %v498 = vmul.f32 %v497, 1.442695
      %v499 = vpow.pop %v498
      %v500 = vadd.f32 %v499, 1.0
      %v501 = vrcp.pop %v500
      %v502 = vmul.f32 1.0, %v501
      %v503 = vtanh.pop %v496
      %v504 = vmul.f32 %v502, %v431
      %506 = vrot.lane.b32.xlu0 %v503, 64
      %v507 = vpop.permute.xlu0 %506
      %v509 = vmul.f32 %v502, %v507
      %511 = vrot.lane.b32.xlu0 %v509, 32
      %v512 = vpop.permute.xlu0 %511
      %v514 = vadd.f32 %v504, %v512
      %v515 = vtanh.pop %v514
      %517 = vrot.lane.b32.xlu0 %v515, 64
      %v518 = vpop.permute.xlu0 %517
      %v520 = vmul.f32 %v502, %v518
      %522 = vrot.lane.b32.xlu0 %v520, 32
      %v523 = vpop.permute.xlu0 %522
      %s525 = scalar_lea.vmem %s245, %s446
      %526 = vst.msk [vmem:[%s525] sm:$0xff] %vm282, %v523
      %s527 = sadd.s32 %s17, 3
      %s528 = smul.u32 %s527, 8
      %s529 = scalar_lea.vmem %s222, %s528
      %v530 = vld [vmem:[%s529] sm:$0xff]
      %v531 = vpack.c.bf16 %v520, %v520
      %533 = vrot.lane.b32.xlu0 %v531, 32
      %v534 = vpop.permute.xlu0 %533
      %v536 = vsel %vm282, %v534, 0
      %538 = vmatprep.subr.bf16.mxu0 0
      %539 = vmatpush1.bf16.msra.mxu0 0
      %540 = vmatprep.subr.bf16.mxu0 0
      %541 = vmatpush1.bf16.msra.mxu0 0
      %542 = vmatprep.subr.bf16.mxu0 0
      %543 = vmatpush1.bf16.msra.mxu0 0
      %544 = vmatprep.subr.bf16.mxu0 0
      %545 = vmatpush1.bf16.msra.mxu0 0
      %546 = vmatprep.subr.bf16.mxu0 0
      %547 = vmatpush1.bf16.msra.mxu0 0
      %548 = vmatprep.subr.bf16.mxu0 0
      %549 = vmatpush1.bf16.msra.mxu0 0
      %550 = vmatprep.subr.bf16.mxu0 0
      %551 = vmatpush1.bf16.msra.mxu0 %v279
      %552 = vmatprep.subr.bf16.mxu0 0
      %553 = vmatpush1.bf16.msra.mxu0 %v278
      %554 = vmatprep.subr.bf16.mxu0 0
      %555 = vmatpush2.bf16.msra.mxu0 0
      %556 = vmatprep.subr.bf16.mxu0 0
      %557 = vmatpush2.bf16.msra.mxu0 0
      %558 = vmatprep.subr.bf16.mxu0 0
      %559 = vmatpush2.bf16.msra.mxu0 0
      %560 = vmatprep.subr.bf16.mxu0 0
      %561 = vmatpush2.bf16.msra.mxu0 0
      %562 = vmatprep.subr.bf16.mxu0 0
      %563 = vmatpush2.bf16.msra.mxu0 0
      %564 = vmatprep.subr.bf16.mxu0 0
      %565 = vmatpush2.bf16.msra.mxu0 0
      %566 = vmatprep.subr.bf16.mxu0 0
      %567 = vmatpush2.bf16.msra.mxu0 0
      %568 = vmatprep.subr.bf16.mxu0 0
      %569 = vmatpush2.bf16.msra.mxu0 0
      %570 = vmatprep.mubr.bf16.mxu0 0
      %571 = vmatmul.mubr.bf16.gmra.mxu0 %v536
      %v572 = vpop.f32.mrf.mxu0
      %v573 = vadd.f32 0.0, %v572
      %v574 = vpop.f32.mrf.mxu0
      %v575 = vpop.f32.mrf.mxu0
      %v576 = vpop.f32.mrf.mxu0
      %577 = vdwg.mxu0
      %v578 = vadd.f32 %v530, %v573
      %v579 = vxor.u32 %v578, 2147483648
      %v580 = vmul.f32 %v579, 1.442695
      %v581 = vpow.pop %v580
      %v582 = vadd.f32 %v581, 1.0
      %v583 = vrcp.pop %v582
      %v584 = vmul.f32 1.0, %v583
      %v585 = vtanh.pop %v578
      %v586 = vmul.f32 %v584, %v514
      %588 = vrot.lane.b32.xlu0 %v585, 64
      %v589 = vpop.permute.xlu0 %588
      %v591 = vmul.f32 %v584, %v589
      %593 = vrot.lane.b32.xlu0 %v591, 32
      %v594 = vpop.permute.xlu0 %593
      %v596 = vadd.f32 %v586, %v594
      %v597 = vtanh.pop %v596
      %599 = vrot.lane.b32.xlu0 %v597, 64
      %v600 = vpop.permute.xlu0 %599
      %v602 = vmul.f32 %v584, %v600
      %604 = vrot.lane.b32.xlu0 %v602, 32
      %v605 = vpop.permute.xlu0 %604
      %s607 = scalar_lea.vmem %s245, %s528
      %608 = vst.msk [vmem:[%s607] sm:$0xff] %vm282, %v605
      %s609 = ssub.s32 4, %s17
      %s610 = smul.u32 %s609, 8
      %s611 = scalar_lea.vmem %s222, %s610
      %v612 = vld [vmem:[%s611] sm:$0xff]
      %v613 = vpack.c.bf16 %v602, %v602
      %615 = vrot.lane.b32.xlu0 %v613, 32
      %v616 = vpop.permute.xlu0 %615
      %v618 = vsel %vm282, %v616, 0
      %620 = vmatprep.subr.bf16.mxu0 0
      %621 = vmatpush1.bf16.msra.mxu0 0
      %622 = vmatprep.subr.bf16.mxu0 0
      %623 = vmatpush1.bf16.msra.mxu0 0
      %624 = vmatprep.subr.bf16.mxu0 0
      %625 = vmatpush1.bf16.msra.mxu0 0
      %626 = vmatprep.subr.bf16.mxu0 0
      %627 = vmatpush1.bf16.msra.mxu0 0
      %628 = vmatprep.subr.bf16.mxu0 0
      %629 = vmatpush1.bf16.msra.mxu0 0
      %630 = vmatprep.subr.bf16.mxu0 0
      %631 = vmatpush1.bf16.msra.mxu0 0
      %632 = vmatprep.subr.bf16.mxu0 0
      %633 = vmatpush1.bf16.msra.mxu0 %v279
      %634 = vmatprep.subr.bf16.mxu0 0
      %635 = vmatpush1.bf16.msra.mxu0 %v278
      %636 = vmatprep.subr.bf16.mxu0 0
      %637 = vmatpush2.bf16.msra.mxu0 0
      %638 = vmatprep.subr.bf16.mxu0 0
      %639 = vmatpush2.bf16.msra.mxu0 0
      %640 = vmatprep.subr.bf16.mxu0 0
      %641 = vmatpush2.bf16.msra.mxu0 0
      %642 = vmatprep.subr.bf16.mxu0 0
      %643 = vmatpush2.bf16.msra.mxu0 0
      %644 = vmatprep.subr.bf16.mxu0 0
      %645 = vmatpush2.bf16.msra.mxu0 0
      %646 = vmatprep.subr.bf16.mxu0 0
      %647 = vmatpush2.bf16.msra.mxu0 0
      %648 = vmatprep.subr.bf16.mxu0 0
      %649 = vmatpush2.bf16.msra.mxu0 0
      %650 = vmatprep.subr.bf16.mxu0 0
      %651 = vmatpush2.bf16.msra.mxu0 0
      %652 = vmatprep.mubr.bf16.mxu0 0
      %653 = vmatmul.mubr.bf16.gmra.mxu0 %v618
      %v654 = vpop.f32.mrf.mxu0
      %v655 = vadd.f32 0.0, %v654
      %v656 = vpop.f32.mrf.mxu0
      %v657 = vpop.f32.mrf.mxu0
      %v658 = vpop.f32.mrf.mxu0
      %659 = vdwg.mxu0
      %v660 = vadd.f32 %v612, %v655
      %v661 = vxor.u32 %v660, 2147483648
      %v662 = vmul.f32 %v661, 1.442695
      %v663 = vpow.pop %v662
      %v664 = vadd.f32 %v663, 1.0
      %v665 = vrcp.pop %v664
      %v666 = vmul.f32 1.0, %v665
      %v667 = vtanh.pop %v660
      %v668 = vmul.f32 %v666, %v596
      %670 = vrot.lane.b32.xlu0 %v667, 64
      %v671 = vpop.permute.xlu0 %670
      %v673 = vmul.f32 %v666, %v671
      %675 = vrot.lane.b32.xlu0 %v673, 32
      %v676 = vpop.permute.xlu0 %675
      %v678 = vadd.f32 %v668, %v676
      %v679 = vtanh.pop %v678
      %681 = vrot.lane.b32.xlu0 %v679, 64
      %v682 = vpop.permute.xlu0 %681
      %v684 = vmul.f32 %v666, %v682
      %686 = vrot.lane.b32.xlu0 %v684, 32
      %v687 = vpop.permute.xlu0 %686
      %s689 = scalar_lea.vmem %s245, %s610
      %690 = vst.msk [vmem:[%s689] sm:$0xff] %vm282, %v687
      %s691 = smul.u32 %s17, 4294967293
      %s692 = sadd.s32 %s691, 5
      %s693 = smul.u32 %s692, 8
      %s694 = scalar_lea.vmem %s222, %s693
      %v695 = vld [vmem:[%s694] sm:$0xff]
      %v696 = vpack.c.bf16 %v684, %v684
      %698 = vrot.lane.b32.xlu0 %v696, 32
      %v699 = vpop.permute.xlu0 %698
      %v701 = vsel %vm282, %v699, 0
      %703 = vmatprep.subr.bf16.mxu0 0
      %704 = vmatpush1.bf16.msra.mxu0 0
      %705 = vmatprep.subr.bf16.mxu0 0
      %706 = vmatpush1.bf16.msra.mxu0 0
      %707 = vmatprep.subr.bf16.mxu0 0
      %708 = vmatpush1.bf16.msra.mxu0 0
      %709 = vmatprep.subr.bf16.mxu0 0
      %710 = vmatpush1.bf16.msra.mxu0 0
      %711 = vmatprep.subr.bf16.mxu0 0
      %712 = vmatpush1.bf16.msra.mxu0 0
      %713 = vmatprep.subr.bf16.mxu0 0
      %714 = vmatpush1.bf16.msra.mxu0 0
      %715 = vmatprep.subr.bf16.mxu0 0
      %716 = vmatpush1.bf16.msra.mxu0 %v279
      %717 = vmatprep.subr.bf16.mxu0 0
      %718 = vmatpush1.bf16.msra.mxu0 %v278
      %719 = vmatprep.subr.bf16.mxu0 0
      %720 = vmatpush2.bf16.msra.mxu0 0
      %721 = vmatprep.subr.bf16.mxu0 0
      %722 = vmatpush2.bf16.msra.mxu0 0
      %723 = vmatprep.subr.bf16.mxu0 0
      %724 = vmatpush2.bf16.msra.mxu0 0
      %725 = vmatprep.subr.bf16.mxu0 0
      %726 = vmatpush2.bf16.msra.mxu0 0
      %727 = vmatprep.subr.bf16.mxu0 0
      %728 = vmatpush2.bf16.msra.mxu0 0
      %729 = vmatprep.subr.bf16.mxu0 0
      %730 = vmatpush2.bf16.msra.mxu0 0
      %731 = vmatprep.subr.bf16.mxu0 0
      %732 = vmatpush2.bf16.msra.mxu0 0
      %733 = vmatprep.subr.bf16.mxu0 0
      %734 = vmatpush2.bf16.msra.mxu0 0
      %735 = vmatprep.mubr.bf16.mxu0 0
      %736 = vmatmul.mubr.bf16.gmra.mxu0 %v701
      %v737 = vpop.f32.mrf.mxu0
      %v738 = vadd.f32 0.0, %v737
      %v739 = vpop.f32.mrf.mxu0
      %v740 = vpop.f32.mrf.mxu0
      %v741 = vpop.f32.mrf.mxu0
      %742 = vdwg.mxu0
      %v743 = vadd.f32 %v695, %v738
      %v744 = vxor.u32 %v743, 2147483648
      %v745 = vmul.f32 %v744, 1.442695
      %v746 = vpow.pop %v745
      %v747 = vadd.f32 %v746, 1.0
      %v748 = vrcp.pop %v747
      %v749 = vmul.f32 1.0, %v748
      %v750 = vtanh.pop %v743
      %v751 = vmul.f32 %v749, %v678
      %753 = vrot.lane.b32.xlu0 %v750, 64
      %v754 = vpop.permute.xlu0 %753
      %v756 = vmul.f32 %v749, %v754
      %758 = vrot.lane.b32.xlu0 %v756, 32
      %v759 = vpop.permute.xlu0 %758
      %v761 = vadd.f32 %v751, %v759
      %v762 = vtanh.pop %v761
      %764 = vrot.lane.b32.xlu0 %v762, 64
      %v765 = vpop.permute.xlu0 %764
      %v767 = vmul.f32 %v749, %v765
      %769 = vrot.lane.b32.xlu0 %v767, 32
      %v770 = vpop.permute.xlu0 %769
      %s772 = scalar_lea.vmem %s245, %s693
      %773 = vst.msk [vmem:[%s772] sm:$0xff] %vm282, %v770
      %s774 = smul.u32 %s17, 4294967291
      %s775 = sadd.s32 %s774, 6
      %s776 = smul.u32 %s775, 8
      %s777 = scalar_lea.vmem %s222, %s776
      %v778 = vld [vmem:[%s777] sm:$0xff]
      %v779 = vpack.c.bf16 %v767, %v767
      %781 = vrot.lane.b32.xlu0 %v779, 32
      %v782 = vpop.permute.xlu0 %781
      %v784 = vsel %vm282, %v782, 0
      %786 = vmatprep.subr.bf16.mxu0 0
      %787 = vmatpush1.bf16.msra.mxu0 0
      %788 = vmatprep.subr.bf16.mxu0 0
      %789 = vmatpush1.bf16.msra.mxu0 0
      %790 = vmatprep.subr.bf16.mxu0 0
      %791 = vmatpush1.bf16.msra.mxu0 0
      %792 = vmatprep.subr.bf16.mxu0 0
      %793 = vmatpush1.bf16.msra.mxu0 0
      %794 = vmatprep.subr.bf16.mxu0 0
      %795 = vmatpush1.bf16.msra.mxu0 0
      %796 = vmatprep.subr.bf16.mxu0 0
      %797 = vmatpush1.bf16.msra.mxu0 0
      %798 = vmatprep.subr.bf16.mxu0 0
      %799 = vmatpush1.bf16.msra.mxu0 %v279
      %800 = vmatprep.subr.bf16.mxu0 0
      %801 = vmatpush1.bf16.msra.mxu0 %v278
      %802 = vmatprep.subr.bf16.mxu0 0
      %803 = vmatpush2.bf16.msra.mxu0 0
      %804 = vmatprep.subr.bf16.mxu0 0
      %805 = vmatpush2.bf16.msra.mxu0 0
      %806 = vmatprep.subr.bf16.mxu0 0
      %807 = vmatpush2.bf16.msra.mxu0 0
      %808 = vmatprep.subr.bf16.mxu0 0
      %809 = vmatpush2.bf16.msra.mxu0 0
      %810 = vmatprep.subr.bf16.mxu0 0
      %811 = vmatpush2.bf16.msra.mxu0 0
      %812 = vmatprep.subr.bf16.mxu0 0
      %813 = vmatpush2.bf16.msra.mxu0 0
      %814 = vmatprep.subr.bf16.mxu0 0
      %815 = vmatpush2.bf16.msra.mxu0 0
      %816 = vmatprep.subr.bf16.mxu0 0
      %817 = vmatpush2.bf16.msra.mxu0 0
      %818 = vmatprep.mubr.bf16.mxu0 0
      %819 = vmatmul.mubr.bf16.gmra.mxu0 %v784
      %v820 = vpop.f32.mrf.mxu0
      %v821 = vadd.f32 0.0, %v820
      %v822 = vpop.f32.mrf.mxu0
      %v823 = vpop.f32.mrf.mxu0
      %v824 = vpop.f32.mrf.mxu0
      %825 = vdwg.mxu0
      %v826 = vadd.f32 %v778, %v821
      %v827 = vxor.u32 %v826, 2147483648
      %v828 = vmul.f32 %v827, 1.442695
      %v829 = vpow.pop %v828
      %v830 = vadd.f32 %v829, 1.0
      %v831 = vrcp.pop %v830
      %v832 = vmul.f32 1.0, %v831
      %v833 = vtanh.pop %v826
      %v834 = vmul.f32 %v832, %v761
      %836 = vrot.lane.b32.xlu0 %v833, 64
      %v837 = vpop.permute.xlu0 %836
      %v839 = vmul.f32 %v832, %v837
      %841 = vrot.lane.b32.xlu0 %v839, 32
      %v842 = vpop.permute.xlu0 %841
      %v844 = vadd.f32 %v834, %v842
      %v845 = vtanh.pop %v844
      %847 = vrot.lane.b32.xlu0 %v845, 64
      %v848 = vpop.permute.xlu0 %847
      %v850 = vmul.f32 %v832, %v848
      %852 = vrot.lane.b32.xlu0 %v850, 32
      %v853 = vpop.permute.xlu0 %852
      %s855 = scalar_lea.vmem %s245, %s776
      %856 = vst.msk [vmem:[%s855] sm:$0xff] %vm282, %v853
      %s857 = smul.u32 %s17, 4294967289
      %s858 = sadd.s32 %s857, 7
      %s859 = smul.u32 %s858, 8
      %s860 = scalar_lea.vmem %s222, %s859
      %v861 = vld [vmem:[%s860] sm:$0xff]
      %v862 = vpack.c.bf16 %v850, %v850
      %864 = vrot.lane.b32.xlu0 %v862, 32
      %v865 = vpop.permute.xlu0 %864
      %v867 = vsel %vm282, %v865, 0
      %869 = vmatprep.subr.bf16.mxu0 0
      %870 = vmatpush1.bf16.msra.mxu0 0
      %871 = vmatprep.subr.bf16.mxu0 0
      %872 = vmatpush1.bf16.msra.mxu0 0
      %873 = vmatprep.subr.bf16.mxu0 0
      %874 = vmatpush1.bf16.msra.mxu0 0
      %875 = vmatprep.subr.bf16.mxu0 0
      %876 = vmatpush1.bf16.msra.mxu0 0
      %877 = vmatprep.subr.bf16.mxu0 0
      %878 = vmatpush1.bf16.msra.mxu0 0
      %879 = vmatprep.subr.bf16.mxu0 0
      %880 = vmatpush1.bf16.msra.mxu0 0
      %881 = vmatprep.subr.bf16.mxu0 0
      %882 = vmatpush1.bf16.msra.mxu0 %v279
      %883 = vmatprep.subr.bf16.mxu0 0
      %884 = vmatpush1.bf16.msra.mxu0 %v278
      %885 = vmatprep.subr.bf16.mxu0 0
      %886 = vmatpush2.bf16.msra.mxu0 0
      %887 = vmatprep.subr.bf16.mxu0 0
      %888 = vmatpush2.bf16.msra.mxu0 0
      %889 = vmatprep.subr.bf16.mxu0 0
      %890 = vmatpush2.bf16.msra.mxu0 0
      %891 = vmatprep.subr.bf16.mxu0 0
      %892 = vmatpush2.bf16.msra.mxu0 0
      %893 = vmatprep.subr.bf16.mxu0 0
      %894 = vmatpush2.bf16.msra.mxu0 0
      %895 = vmatprep.subr.bf16.mxu0 0
      %896 = vmatpush2.bf16.msra.mxu0 0
      %897 = vmatprep.subr.bf16.mxu0 0
      %898 = vmatpush2.bf16.msra.mxu0 0
      %899 = vmatprep.subr.bf16.mxu0 0
      %900 = vmatpush2.bf16.msra.mxu0 0
      %901 = vmatprep.mubr.bf16.mxu0 0
      %902 = vmatmul.mubr.bf16.gmra.mxu0 %v867
      %v903 = vpop.f32.mrf.mxu0
      %v904 = vadd.f32 0.0, %v903
      %v905 = vpop.f32.mrf.mxu0
      %v906 = vpop.f32.mrf.mxu0
      %v907 = vpop.f32.mrf.mxu0
      %908 = vdwg.mxu0
      %v909 = vadd.f32 %v861, %v904
      %v910 = vxor.u32 %v909, 2147483648
      %v911 = vmul.f32 %v910, 1.442695
      %v912 = vpow.pop %v911
      %v913 = vadd.f32 %v912, 1.0
      %v914 = vrcp.pop %v913
      %v915 = vmul.f32 1.0, %v914
      %v916 = vtanh.pop %v909
      %v917 = vmul.f32 %v915, %v844
      %919 = vrot.lane.b32.xlu0 %v916, 64
      %v920 = vpop.permute.xlu0 %919
      %v922 = vmul.f32 %v915, %v920
      %924 = vrot.lane.b32.xlu0 %v922, 32
      %v925 = vpop.permute.xlu0 %924
      %v927 = vadd.f32 %v917, %v925
      %v928 = vtanh.pop %v927
      %930 = vrot.lane.b32.xlu0 %v928, 64
      %v931 = vpop.permute.xlu0 %930
      %v933 = vmul.f32 %v915, %v931
      %935 = vrot.lane.b32.xlu0 %v933, 32
      %v936 = vpop.permute.xlu0 %935
      %s938 = scalar_lea.vmem %s245, %s859
      %939 = vst.msk [vmem:[%s938] sm:$0xff] %vm282, %v936
      %940 = vst.msk [vmem:[#allocation2] sm:$0xff] %vm282, %v936
      %942 = vrot.lane.b32.xlu0 %v927, 96
      %v943 = vpop.permute.xlu0 %942
      %945 = vst.msk [vmem:[#allocation3] sm:$0xff] %vm282, %v943
      %s946 = smul.u32 %s18, 2
      %s947 = ssub.s32 0, %s946
      %s948 = smul.u32 %s17, %s947
      %s949 = sadd.s32 %s18, %s948
      %s950 = smul.u32 8, %s949
      %p951 = scmp.lt.s32.totalorder %s17, 1
      %s952 = scalar_select %p951, %s17, 1
      %p953 = scmp.lt.s32.totalorder %s950, 7
      %s954 = scalar_select %p953, %s950, 7
      %s955 = smul.addr %s952, 8
      %s956 = sadd.s32 %s954, %s955
      %s957 = smul.addr %s956, 8
      %s958 = scalar_lea.vmem %s2, %s957
      // Predicated region
      $region33: #{_lambda_.3} parent=27 // pred_check
        %p959 = pneg %p115
      $region34: #{_lambda_.3} parent=27 // pred_check_branch
        %961 = sbr.rel (%p959) target = $region36
      $region35: #{_lambda_.3} parent=27 // pred_region
        %s962 = smul.u32 %s18, 2
        %s963 = ssub.s32 0, %s962
        %s964 = smul.u32 %s17, %s963
        %s965 = sadd.s32 %s18, %s964
        %s966 = smul.u32 8, %s965
      $region36: #{_lambda_.3} parent=27 // pred_fallthru
        _
    $region28: #{_lambda_.3} parent=5 // pred_fallthru
      _
    %p967 = scmp.le.s32.totalorder 2, %s8
    // Predicated region
    $region37: #{_lambda_.3} parent=5 // pred_check
      %p968 = pneg %p967
    $region38: #{_lambda_.3} parent=5 // pred_check_branch
      %970 = sbr.rel (%p968) target = $region40
    $region39: #{_lambda_.3} parent=5 // pred_region
      %s971 = ssub.s32 %s8, 2
      // Predicated region
      $region41: #{_lambda_.3} parent=39 // pred_check
        %p972 = pneg %p121
      $region42: #{_lambda_.3} parent=39 // pred_check_branch
        %974 = sbr.rel (%p972) target = $region44
      $region43: #{_lambda_.3} parent=39 // pred_region
        %s975 = smul.u32 %s20, 2
        %s976 = ssub.s32 0, %s975
        %s977 = smul.u32 %s19, %s976
        %s978 = sadd.s32 %s20, %s977
        %s979 = smul.u32 8, %s978
        %p980 = scmp.lt.s32.totalorder %s19, 1
        %s981 = scalar_select %p980, %s19, 1
        %p982 = scmp.lt.s32.totalorder %s979, 7
        %s983 = scalar_select %p982, %s979, 7
        %s984 = smul.addr %s981, 8
        %s985 = sadd.s32 %s983, %s984
        %s986 = smul.addr %s985, 8
        %s987 = scalar_lea.vmem %s2, %s986
      $region44: #{_lambda_.3} parent=39 // pred_fallthru
        _
    $region40: #{_lambda_.3} parent=5 // pred_fallthru
      _
  $region6: #{_lambda_.3} parent=0 // loop_footer
    %s12 = sadd.s32 1, %s8
  $region7: #{_lambda_.3} parent=0 // loop_footer_branch
    %7 = sbr.rel target = $region3
  $region8: #{_lambda_.3} parent=0 // loop_exit
    _

// kernel: _lambda_.2
$region0: #{_lambda_.2}
  #allocation0 [shape = 'u32[]', space=smem, size = 0x4, offset = 0x4, fixed_abs, tag = 'smem constant byte address 0x4 - core index']
  #allocation1 [shape = 'u32[144,128]{1,0:T(1,128)}', space=vmem, size = 0x12000, scoped, tag = 'internal scratch']
  #allocation2 [shape = 'f32[8,32]{1,0:T(8,128)}', space=vmem, size = 0x1000, scoped, tag = 'scratch operand']
  #allocation3 [shape = 'f32[8,32]{1,0:T(8,128)}', space=vmem, size = 0x1000, scoped, tag = 'scratch operand']
  %s0 = inlined_call_operand.vmem [shape: f32[2,8,8,128], index: 0, kind: input, shape index: {}]
  %s1 = inlined_call_operand.vmem [shape: bf16[2,32,128], index: 1, kind: input, shape index: {}]
  %s2 = inlined_call_operand.vmem [shape: bf16[2,8,8,32], index: 2, kind: output, shape index: {}]
  %s3 = sld [smem:[#allocation0]]
  $region45: #{_lambda_.2} parent=0
    _
  %s5 = ssub.s32 1, %s3
  %s6 = scalar_select 0, %s5, %s3
  loop: start=0, step=1, limit=4
  $region2: #{_lambda_.2} parent=0 // loop_pre_header
    _
  $region3: #{_lambda_.2} parent=0 // loop_header
    %s8 = sphi 0, %s12
    %p9 = scmp.ge.s32.totalorder %s8, 4
    %s15 = sphi 0, %s27
    %s16 = sphi 0, %s23
    %s17 = sphi 0, %s15
    %s18 = sphi 0, %s16
    %s19 = sphi 0, %s17
    %s20 = sphi 0, %s18
    %s40 = sphi 0, %s42
    %s43 = sphi 0, %s40
    %s44 = sphi 0, %s43
    %s60 = sphi 0, %s44
    %s66 = sphi 0, %s68
    %s69 = sphi 0, %s66
    %s70 = sphi 0, %s69
    %s86 = sphi 0, %s70
    %s102 = sphi 0, %s104
    %s105 = sphi 0, %s102
    %s106 = sphi 0, %s105
    %s122 = sphi 0, %s106
  $region4: #{_lambda_.2} parent=0 // loop_header_branch
    %11 = sbr.rel (%p9) target = $region8
  $region5: #{_lambda_.2} parent=0 // loop_body
    %s13 = ssub.s32 %s8, 1
    %s14 = ssub.s32 %s8, 2
    %s21 = sadd.s32 1, %s16
    %p22 = scmp.ge.s32.totalorder %s21, 1
    %s23 = scalar_select %p22, 0, %s21
    %s24 = sadd.s32 1, %s15
    %s25 = scalar_select %p22, %s24, %s15
    %p26 = scmp.ge.s32.totalorder %s25, 2
    %s27 = scalar_select %p26, 0, %s25
    %s28 = smul.u32 %s16, 2
    %s29 = ssub.s32 0, %s28
    %s30 = smul.u32 %s15, %s29
    %s31 = sadd.s32 %s16, %s30
    %s32 = smul.u32 %s23, 2
    %s33 = ssub.s32 0, %s32
    %s34 = smul.u32 %s27, %s33
    %s35 = sadd.s32 %s23, %s34
    %s36 = ssub.s32 %s15, %s27
    %s37 = ssub.s32 %s31, %s35
    %s38 = sor.u32 %s36, %s37
    %p39 = scmp.eq.s32.totalorder %s38, 0
    %s41 = sadd.s32 %s40, 1
    %s42 = scalar_select %p39, %s40, %s41
    %p45 = pneg %p39
    %p46 = scmp.eq.s32.totalorder %s8, 1
    %p47 = por %p45, %p46
    %p48 = scmp.ne.s32.totalorder %s40, %s43
    %p49 = scmp.eq.s32.totalorder %s8, 0
    %p50 = por %p48, %p49
    %p51 = scmp.ne.s32.totalorder %s40, %s43
    %p52 = scmp.eq.s32.totalorder %s13, 1
    %p53 = por %p51, %p52
    %p54 = scmp.ne.s32.totalorder %s43, %s44
    %p55 = scmp.eq.s32.totalorder %s13, 0
    %p56 = por %p54, %p55
    %p57 = scmp.ne.s32.totalorder %s43, %s44
    %p58 = scmp.eq.s32.totalorder %s14, 1
    %p59 = por %p57, %p58
    %p61 = scmp.ne.s32.totalorder %s44, %s60
    %p62 = scmp.eq.s32.totalorder %s14, 0
    %p63 = por %p61, %p62
    %s64 = ssub.s32 %s15, %s27
    %p65 = scmp.eq.s32.totalorder %s64, 0
    %s67 = sadd.s32 %s66, 1
    %s68 = scalar_select %p65, %s66, %s67
    %p71 = pneg %p65
    %p72 = scmp.eq.s32.totalorder %s8, 1
    %p73 = por %p71, %p72
    %p74 = scmp.ne.s32.totalorder %s66, %s69
    %p75 = scmp.eq.s32.totalorder %s8, 0
    %p76 = por %p74, %p75
    %p77 = scmp.ne.s32.totalorder %s66, %s69
    %p78 = scmp.eq.s32.totalorder %s13, 1
    %p79 = por %p77, %p78
    %p80 = scmp.ne.s32.totalorder %s69, %s70
    %p81 = scmp.eq.s32.totalorder %s13, 0
    %p82 = por %p80, %p81
    %p83 = scmp.ne.s32.totalorder %s69, %s70
    %p84 = scmp.eq.s32.totalorder %s14, 1
    %p85 = por %p83, %p84
    %p87 = scmp.ne.s32.totalorder %s70, %s86
    %p88 = scmp.eq.s32.totalorder %s14, 0
    %p89 = por %p87, %p88
    %s90 = smul.u32 %s16, 2
    %s91 = ssub.s32 0, %s90
    %s92 = smul.u32 %s15, %s91
    %s93 = sadd.s32 %s16, %s92
    %s94 = smul.u32 %s23, 2
    %s95 = ssub.s32 0, %s94
    %s96 = smul.u32 %s27, %s95
    %s97 = sadd.s32 %s23, %s96
    %s98 = ssub.s32 %s15, %s27
    %s99 = ssub.s32 %s93, %s97
    %s100 = sor.u32 %s98, %s99
    %p101 = scmp.eq.s32.totalorder %s100, 0
    %s103 = sadd.s32 %s102, 1
    %s104 = scalar_select %p101, %s102, %s103
    %p107 = pneg %p101
    %p108 = scmp.eq.s32.totalorder %s8, 1
    %p109 = por %p107, %p108
    %p110 = scmp.ne.s32.totalorder %s102, %s105
    %p111 = scmp.eq.s32.totalorder %s8, 0
    %p112 = por %p110, %p111
    %p113 = scmp.ne.s32.totalorder %s102, %s105
    %p114 = scmp.eq.s32.totalorder %s13, 1
    %p115 = por %p113, %p114
    %p116 = scmp.ne.s32.totalorder %s105, %s106
    %p117 = scmp.eq.s32.totalorder %s13, 0
    %p118 = por %p116, %p117
    %p119 = scmp.ne.s32.totalorder %s105, %s106
    %p120 = scmp.eq.s32.totalorder %s14, 1
    %p121 = por %p119, %p120
    %p123 = scmp.ne.s32.totalorder %s106, %s122
    %p124 = scmp.eq.s32.totalorder %s14, 0
    %p125 = por %p123, %p124
    %p126 = scmp.le.s32.totalorder 1, %s8
    %p127 = scmp.lt.s32.totalorder %s8, 3
    %p128 = pnand %p126, %p127
    %p129 = pneg %p128
    // Predicated region
    $region9: #{_lambda_.2} parent=5 // pred_check
      _
    $region10: #{_lambda_.2} parent=5 // pred_check_branch
      %131 = sbr.rel (%p128) target = $region12
    $region11: #{_lambda_.2} parent=5 // pred_region
      %s132 = ssub.s32 %s8, 1
    $region12: #{_lambda_.2} parent=5 // pred_fallthru
      _
    %p133 = scmp.lt.s32.totalorder %s8, 2
    // Predicated region
    $region13: #{_lambda_.2} parent=5 // pred_check
      %p134 = pneg %p133
    $region14: #{_lambda_.2} parent=5 // pred_check_branch
      %136 = sbr.rel (%p134) target = $region16
    $region15: #{_lambda_.2} parent=5 // pred_region
      // Predicated region
      $region17: #{_lambda_.2} parent=15 // pred_check
        %p137 = pneg %p50
      $region18: #{_lambda_.2} parent=15 // pred_check_branch
        %139 = sbr.rel (%p137) target = $region20
      $region19: #{_lambda_.2} parent=15 // pred_region
        %s140 = smul.u32 %s16, 2
        %s141 = ssub.s32 0, %s140
        %s142 = smul.u32 %s15, %s141
        %s143 = sadd.s32 %s16, %s142
        %s144 = smul.u32 8, %s143
        %p145 = scmp.lt.s32.totalorder %s15, 1
        %s146 = scalar_select %p145, %s15, 1
        %p147 = scmp.lt.s32.totalorder %s144, 7
        %s148 = scalar_select %p147, %s144, 7
        %s149 = smul.addr %s146, 8
        %s150 = sadd.s32 %s148, %s149
        %s151 = smul.addr %s150, 8
        %s152 = scalar_lea.vmem %s0, %s151
        %s153 = smul.u32 %s16, 2
        %s154 = ssub.s32 0, %s153
        %s155 = smul.u32 %s15, %s154
        %s156 = sadd.s32 %s16, %s155
        %s157 = smul.u32 8, %s156
      $region20: #{_lambda_.2} parent=15 // pred_fallthru
        _
      // Predicated region
      $region21: #{_lambda_.2} parent=15 // pred_check
        %p158 = pneg %p76
      $region22: #{_lambda_.2} parent=15 // pred_check_branch
        %160 = sbr.rel (%p158) target = $region24
      $region23: #{_lambda_.2} parent=15 // pred_region
        %p161 = scmp.lt.s32.totalorder %s15, 1
        %s162 = scalar_select %p161, %s15, 1
        %s163 = smul.addr %s162, 4
        %s164 = smul.addr %s163, 4
        %s165 = scalar_lea.vmem %s1, %s164
      $region24: #{_lambda_.2} parent=15 // pred_fallthru
        _
    $region16: #{_lambda_.2} parent=5 // pred_fallthru
      _
    %p166 = scmp.le.s32.totalorder 1, %s8
    %p167 = scmp.lt.s32.totalorder %s8, 3
    %p168 = pnand %p166, %p167
    %p169 = pneg %p168
    // Predicated region
    $region25: #{_lambda_.2} parent=5 // pred_check
      _
    $region26: #{_lambda_.2} parent=5 // pred_check_branch
      %171 = sbr.rel (%p168) target = $region28
    $region27: #{_lambda_.2} parent=5 // pred_region
      %s172 = ssub.s32 %s8, 1
      %s173 = smul.u32 %s18, 2
      %s174 = ssub.s32 0, %s173
      %s175 = smul.u32 %s17, %s174
      %s176 = sadd.s32 %s18, %s175
      %s177 = smul.u32 8, %s176
      %p178 = scmp.lt.s32.totalorder %s17, 1
      %s179 = scalar_select %p178, %s17, 1
      %p180 = scmp.lt.s32.totalorder %s177, 7
      %s181 = scalar_select %p180, %s177, 7
      %s182 = smul.addr %s179, 8
      %s183 = sadd.s32 %s181, %s182
      %s184 = smul.addr %s183, 8
      %s185 = scalar_lea.vmem %s0, %s184
      %p186 = pneg %p56
      %p187 = pneg %p53
      %p188 = scmp.lt.s32.totalorder %s17, 1
      %s189 = scalar_select %p188, %s17, 1
      %s190 = smul.addr %s189, 4
      %s191 = smul.addr %s190, 4
      %s192 = scalar_lea.vmem %s1, %s191
      %p193 = pneg %p82
      %p194 = pneg %p79
      %p195 = pneg %p118
      %p196 = pneg %p115
      %s197 = smul.u32 %s18, 2
      %s198 = ssub.s32 0, %s197
      %s199 = smul.u32 %s17, %s198
      %s200 = sadd.s32 %s18, %s199
      %s201 = smul.u32 8, %s200
      %p202 = scmp.lt.s32.totalorder %s17, 1
      %s203 = scalar_select %p202, %s17, 1
      %p204 = scmp.lt.s32.totalorder %s201, 7
      %s205 = scalar_select %p204, %s201, 7
      %s206 = smul.addr %s203, 8
      %s207 = sadd.s32 %s205, %s206
      %s208 = smul.addr %s207, 4
      %s209 = scalar_lea.vmem %s2, %s208
      %s210 = smul.u32 %s18, 2
      %s211 = ssub.s32 0, %s210
      %s212 = smul.u32 %s17, %s211
      %s213 = sadd.s32 %s18, %s212
      %s214 = smul.u32 8, %s213
      %p215 = scmp.lt.s32.totalorder %s17, 1
      %s216 = scalar_select %p215, %s17, 1
      %p217 = scmp.lt.s32.totalorder %s214, 7
      %s218 = scalar_select %p217, %s214, 7
      %s219 = smul.addr %s216, 8
      %s220 = sadd.s32 %s218, %s219
      %s221 = smul.addr %s220, 8
      %s222 = scalar_lea.vmem %s0, %s221
      %s223 = smul.u32 %s18, 2
      %s224 = ssub.s32 0, %s223
      %s225 = smul.u32 %s17, %s224
      %s226 = sadd.s32 %s18, %s225
      %s227 = smul.u32 8, %s226
      %p228 = scmp.lt.s32.totalorder %s17, 1
      %s229 = scalar_select %p228, %s17, 1
      %s230 = smul.addr %s229, 4
      %s231 = smul.addr %s230, 4
      %s232 = scalar_lea.vmem %s1, %s231
      %s233 = smul.u32 %s18, 2
      %s234 = ssub.s32 0, %s233
      %s235 = smul.u32 %s17, %s234
      %s236 = sadd.s32 %s18, %s235
      %s237 = smul.u32 8, %s236
      %p238 = scmp.lt.s32.totalorder %s17, 1
      %s239 = scalar_select %p238, %s17, 1
      %p240 = scmp.lt.s32.totalorder %s237, 7
      %s241 = scalar_select %p240, %s237, 7
      %s242 = smul.addr %s239, 8
      %s243 = sadd.s32 %s241, %s242
      %s244 = smul.addr %s243, 4
      %s245 = scalar_lea.vmem %s2, %s244
      %s246 = smul.u32 %s18, 2
      %s247 = ssub.s32 0, %s246
      %s248 = smul.u32 %s17, %s247
      %s249 = sadd.s32 %s18, %s248
      %s250 = smul.u32 8, %s249
      %p252 = scmp.eq.s32.totalorder %s18, 0
      // Predicated region
      $region29: #{_lambda_.2} parent=27 // pred_check
        %p253 = pneg %p252
      $region30: #{_lambda_.2} parent=27 // pred_check_branch
        %255 = sbr.rel (%p253) target = $region32
      $region31: #{_lambda_.2} parent=27 // pred_region
        %vm256 = vcmask 261120
        %257 = vst.msk [vmem:[#allocation2] sm:$0xff] %vm256, 0.0
        %258 = vst.msk [vmem:[#allocation3] sm:$0xff] %vm256, 0.0
      $region32: #{_lambda_.2} parent=27 // pred_fallthru
        _
      %v259 = vld [vmem:[%s232] sm:$0xf]
      %v260 = vld [vmem:[%s232 + $0x4] sm:$0xf]
      %v261 = vld [vmem:[%s232 + $0x8] sm:$0xf]
      %v262 = vld [vmem:[%s232 + $0xc] sm:$0xf]
      %v263 = vld [vmem:[#allocation2] sm:$0xff]
      %v264 = vld [vmem:[#allocation3] sm:$0xff]
      %s265 = smul.u32 %s17, 7
      %s266 = smul.u32 %s265, 8
      %s267 = scalar_lea.vmem %s222, %s266
      %v268 = vld [vmem:[%s267] sm:$0xff]
      %v269 = vpack.c.bf16 %v263, %v263
      %v274 = vunpack.c.l.b16 %v259
      %v275 = vunpack.c.l.b16 %v260
      %v276 = vunpack.c.l.b16 %v261
      %v277 = vunpack.c.l.b16 %v262
      %v278 = vpack.c.b16 %v275, %v274
      %v279 = vpack.c.b16 %v277, %v276
      %vm282 = vcmask 261120
      %v284 = vsel %vm282, %v269, 0
      %286 = vmatprep.subr.bf16.mxu0 0
      %287 = vmatpush1.bf16.msra.mxu0 0
      %288 = vmatprep.subr.bf16.mxu0 0
      %289 = vmatpush1.bf16.msra.mxu0 0
      %290 = vmatprep.subr.bf16.mxu0 0
      %291 = vmatpush1.bf16.msra.mxu0 0
      %292 = vmatprep.subr.bf16.mxu0 0
      %293 = vmatpush1.bf16.msra.mxu0 0
      %294 = vmatprep.subr.bf16.mxu0 0
      %295 = vmatpush1.bf16.msra.mxu0 0
      %296 = vmatprep.subr.bf16.mxu0 0
      %297 = vmatpush1.bf16.msra.mxu0 0
      %298 = vmatprep.subr.bf16.mxu0 0
      %299 = vmatpush1.bf16.msra.mxu0 %v279
      %300 = vmatprep.subr.bf16.mxu0 0
      %301 = vmatpush1.bf16.msra.mxu0 %v278
      %302 = vmatprep.subr.bf16.mxu0 0
      %303 = vmatpush2.bf16.msra.mxu0 0
      %304 = vmatprep.subr.bf16.mxu0 0
      %305 = vmatpush2.bf16.msra.mxu0 0
      %306 = vmatprep.subr.bf16.mxu0 0
      %307 = vmatpush2.bf16.msra.mxu0 0
      %308 = vmatprep.subr.bf16.mxu0 0
      %309 = vmatpush2.bf16.msra.mxu0 0
      %310 = vmatprep.subr.bf16.mxu0 0
      %311 = vmatpush2.bf16.msra.mxu0 0
      %312 = vmatprep.subr.bf16.mxu0 0
      %313 = vmatpush2.bf16.msra.mxu0 0
      %314 = vmatprep.subr.bf16.mxu0 0
      %315 = vmatpush2.bf16.msra.mxu0 0
      %316 = vmatprep.subr.bf16.mxu0 0
      %317 = vmatpush2.bf16.msra.mxu0 0
      %318 = vmatprep.mubr.bf16.mxu0 0
      %319 = vmatmul.mubr.bf16.gmra.mxu0 %v284
      %v320 = vpop.f32.mrf.mxu0
      %v321 = vadd.f32 0.0, %v320
      %v322 = vpop.f32.mrf.mxu0
      %v323 = vpop.f32.mrf.mxu0
      %v324 = vpop.f32.mrf.mxu0
      %325 = vdwg.mxu0
      %v326 = vadd.f32 %v268, %v321
      %v327 = vxor.u32 %v326, 2147483648
      %v328 = vmul.f32 %v327, 1.442695
      %v329 = vpow.pop %v328
      %v330 = vadd.f32 %v329, 1.0
      %v331 = vrcp.pop %v330
      %v332 = vmul.f32 1.0, %v331
      %v333 = vtanh.pop %v326
      %335 = vrot.lane.b32.xlu0 %v264, 32
      %v336 = vpop.permute.xlu0 %335
      %v338 = vmul.f32 %v332, %v336
      %340 = vrot.lane.b32.xlu0 %v333, 64
      %v341 = vpop.permute.xlu0 %340
      %v343 = vmul.f32 %v332, %v341
      %345 = vrot.lane.b32.xlu0 %v343, 32
      %v346 = vpop.permute.xlu0 %345
      %v348 = vadd.f32 %v338, %v346
      %v349 = vtanh.pop %v348
      %351 = vrot.lane.b32.xlu0 %v349, 64
      %v352 = vpop.permute.xlu0 %351
      %v354 = vmul.f32 %v332, %v352
      %v355 = vpack.c.bf16 %v354, %v354
      %v357 = vunpack.c.l.b16 %v355
      %v358 = vpack.c.b16 %v357, %v357
      %359 = vrot.lane.b32.xlu0 %v358, 32
      %v360 = vpop.permute.xlu0 %359
      %s362 = smul.addr %s265, 4
      %s363 = scalar_lea.vmem %s245, %s362
      %vm364 = vcmask 257024
      %365 = vst.msk [vmem:[%s363] sm:$0xf] %vm364, %v360
      %s366 = smul.u32 %s17, 5
      %s367 = sadd.s32 %s366, 1
      %s368 = smul.u32 %s367, 8
      %s369 = scalar_lea.vmem %s222, %s368
      %v370 = vld [vmem:[%s369] sm:$0xff]
      %371 = vrot.lane.b32.xlu0 %v355, 32
      %v372 = vpop.permute.xlu0 %371
      %v374 = vsel %vm282, %v372, 0
      %376 = vmatprep.subr.bf16.mxu0 0
      %377 = vmatpush1.bf16.msra.mxu0 0
      %378 = vmatprep.subr.bf16.mxu0 0
      %379 = vmatpush1.bf16.msra.mxu0 0
      %380 = vmatprep.subr.bf16.mxu0 0
      %381 = vmatpush1.bf16.msra.mxu0 0
      %382 = vmatprep.subr.bf16.mxu0 0
      %383 = vmatpush1.bf16.msra.mxu0 0
      %384 = vmatprep.subr.bf16.mxu0 0
      %385 = vmatpush1.bf16.msra.mxu0 0
      %386 = vmatprep.subr.bf16.mxu0 0
      %387 = vmatpush1.bf16.msra.mxu0 0
      %388 = vmatprep.subr.bf16.mxu0 0
      %389 = vmatpush1.bf16.msra.mxu0 %v279
      %390 = vmatprep.subr.bf16.mxu0 0
      %391 = vmatpush1.bf16.msra.mxu0 %v278
      %392 = vmatprep.subr.bf16.mxu0 0
      %393 = vmatpush2.bf16.msra.mxu0 0
      %394 = vmatprep.subr.bf16.mxu0 0
      %395 = vmatpush2.bf16.msra.mxu0 0
      %396 = vmatprep.subr.bf16.mxu0 0
      %397 = vmatpush2.bf16.msra.mxu0 0
      %398 = vmatprep.subr.bf16.mxu0 0
      %399 = vmatpush2.bf16.msra.mxu0 0
      %400 = vmatprep.subr.bf16.mxu0 0
      %401 = vmatpush2.bf16.msra.mxu0 0
      %402 = vmatprep.subr.bf16.mxu0 0
      %403 = vmatpush2.bf16.msra.mxu0 0
      %404 = vmatprep.subr.bf16.mxu0 0
      %405 = vmatpush2.bf16.msra.mxu0 0
      %406 = vmatprep.subr.bf16.mxu0 0
      %407 = vmatpush2.bf16.msra.mxu0 0
      %408 = vmatprep.mubr.bf16.mxu0 0
      %409 = vmatmul.mubr.bf16.gmra.mxu0 %v374
      %v410 = vpop.f32.mrf.mxu0
      %v411 = vadd.f32 0.0, %v410
      %v412 = vpop.f32.mrf.mxu0
      %v413 = vpop.f32.mrf.mxu0
      %v414 = vpop.f32.mrf.mxu0
      %415 = vdwg.mxu0
      %v416 = vadd.f32 %v370, %v411
      %v417 = vxor.u32 %v416, 2147483648
      %v418 = vmul.f32 %v417, 1.442695
      %v419 = vpow.pop %v418
      %v420 = vadd.f32 %v419, 1.0
      %v421 = vrcp.pop %v420
      %v422 = vmul.f32 1.0, %v421
      %v423 = vtanh.pop %v416
      %v424 = vmul.f32 %v422, %v348
      %426 = vrot.lane.b32.xlu0 %v423, 64
      %v427 = vpop.permute.xlu0 %426
      %v429 = vmul.f32 %v422, %v427
      %431 = vrot.lane.b32.xlu0 %v429, 32
      %v432 = vpop.permute.xlu0 %431
      %v434 = vadd.f32 %v424, %v432
      %v435 = vtanh.pop %v434
      %437 = vrot.lane.b32.xlu0 %v435, 64
      %v438 = vpop.permute.xlu0 %437
      %v440 = vmul.f32 %v422, %v438
      %v441 = vpack.c.bf16 %v440, %v440
      %v443 = vunpack.c.l.b16 %v441
      %v444 = vpack.c.b16 %v443, %v443
      %445 = vrot.lane.b32.xlu0 %v444, 32
      %v446 = vpop.permute.xlu0 %445
      %s448 = smul.addr %s367, 4
      %s449 = scalar_lea.vmem %s245, %s448
      %450 = vst.msk [vmem:[%s449] sm:$0xf] %vm364, %v446
      %s451 = smul.u32 %s17, 3
      %s452 = sadd.s32 %s451, 2
      %s453 = smul.u32 %s452, 8
      %s454 = scalar_lea.vmem %s222, %s453
      %v455 = vld [vmem:[%s454] sm:$0xff]
      %456 = vrot.lane.b32.xlu0 %v441, 32
      %v457 = vpop.permute.xlu0 %456
      %v459 = vsel %vm282, %v457, 0
      %461 = vmatprep.subr.bf16.mxu0 0
      %462 = vmatpush1.bf16.msra.mxu0 0
      %463 = vmatprep.subr.bf16.mxu0 0
      %464 = vmatpush1.bf16.msra.mxu0 0
      %465 = vmatprep.subr.bf16.mxu0 0
      %466 = vmatpush1.bf16.msra.mxu0 0
      %467 = vmatprep.subr.bf16.mxu0 0
      %468 = vmatpush1.bf16.msra.mxu0 0
      %469 = vmatprep.subr.bf16.mxu0 0
      %470 = vmatpush1.bf16.msra.mxu0 0
      %471 = vmatprep.subr.bf16.mxu0 0
      %472 = vmatpush1.bf16.msra.mxu0 0
      %473 = vmatprep.subr.bf16.mxu0 0
      %474 = vmatpush1.bf16.msra.mxu0 %v279
      %475 = vmatprep.subr.bf16.mxu0 0
      %476 = vmatpush1.bf16.msra.mxu0 %v278
      %477 = vmatprep.subr.bf16.mxu0 0
      %478 = vmatpush2.bf16.msra.mxu0 0
      %479 = vmatprep.subr.bf16.mxu0 0
      %480 = vmatpush2.bf16.msra.mxu0 0
      %481 = vmatprep.subr.bf16.mxu0 0
      %482 = vmatpush2.bf16.msra.mxu0 0
      %483 = vmatprep.subr.bf16.mxu0 0
      %484 = vmatpush2.bf16.msra.mxu0 0
      %485 = vmatprep.subr.bf16.mxu0 0
      %486 = vmatpush2.bf16.msra.mxu0 0
      %487 = vmatprep.subr.bf16.mxu0 0
      %488 = vmatpush2.bf16.msra.mxu0 0
      %489 = vmatprep.subr.bf16.mxu0 0
      %490 = vmatpush2.bf16.msra.mxu0 0
      %491 = vmatprep.subr.bf16.mxu0 0
      %492 = vmatpush2.bf16.msra.mxu0 0
      %493 = vmatprep.mubr.bf16.mxu0 0
      %494 = vmatmul.mubr.bf16.gmra.mxu0 %v459
      %v495 = vpop.f32.mrf.mxu0
      %v496 = vadd.f32 0.0, %v495
      %v497 = vpop.f32.mrf.mxu0
      %v498 = vpop.f32.mrf.mxu0
      %v499 = vpop.f32.mrf.mxu0
      %500 = vdwg.mxu0
      %v501 = vadd.f32 %v455, %v496
      %v502 = vxor.u32 %v501, 2147483648
      %v503 = vmul.f32 %v502, 1.442695
      %v504 = vpow.pop %v503
      %v505 = vadd.f32 %v504, 1.0
      %v506 = vrcp.pop %v505
      %v507 = vmul.f32 1.0, %v506
      %v508 = vtanh.pop %v501
      %v509 = vmul.f32 %v507, %v434
      %511 = vrot.lane.b32.xlu0 %v508, 64
      %v512 = vpop.permute.xlu0 %511
      %v514 = vmul.f32 %v507, %v512
      %516 = vrot.lane.b32.xlu0 %v514, 32
      %v517 = vpop.permute.xlu0 %516
      %v519 = vadd.f32 %v509, %v517
      %v520 = vtanh.pop %v519
      %522 = vrot.lane.b32.xlu0 %v520, 64
      %v523 = vpop.permute.xlu0 %522
      %v525 = vmul.f32 %v507, %v523
      %v526 = vpack.c.bf16 %v525, %v525
      %v528 = vunpack.c.l.b16 %v526
      %v529 = vpack.c.b16 %v528, %v528
      %530 = vrot.lane.b32.xlu0 %v529, 32
      %v531 = vpop.permute.xlu0 %530
      %s533 = smul.addr %s452, 4
      %s534 = scalar_lea.vmem %s245, %s533
      %535 = vst.msk [vmem:[%s534] sm:$0xf] %vm364, %v531
      %s536 = sadd.s32 %s17, 3
      %s537 = smul.u32 %s536, 8
      %s538 = scalar_lea.vmem %s222, %s537
      %v539 = vld [vmem:[%s538] sm:$0xff]
      %540 = vrot.lane.b32.xlu0 %v526, 32
      %v541 = vpop.permute.xlu0 %540
      %v543 = vsel %vm282, %v541, 0
      %545 = vmatprep.subr.bf16.mxu0 0
      %546 = vmatpush1.bf16.msra.mxu0 0
      %547 = vmatprep.subr.bf16.mxu0 0
      %548 = vmatpush1.bf16.msra.mxu0 0
      %549 = vmatprep.subr.bf16.mxu0 0
      %550 = vmatpush1.bf16.msra.mxu0 0
      %551 = vmatprep.subr.bf16.mxu0 0
      %552 = vmatpush1.bf16.msra.mxu0 0
      %553 = vmatprep.subr.bf16.mxu0 0
      %554 = vmatpush1.bf16.msra.mxu0 0
      %555 = vmatprep.subr.bf16.mxu0 0
      %556 = vmatpush1.bf16.msra.mxu0 0
      %557 = vmatprep.subr.bf16.mxu0 0
      %558 = vmatpush1.bf16.msra.mxu0 %v279
      %559 = vmatprep.subr.bf16.mxu0 0
      %560 = vmatpush1.bf16.msra.mxu0 %v278
      %561 = vmatprep.subr.bf16.mxu0 0
      %562 = vmatpush2.bf16.msra.mxu0 0
      %563 = vmatprep.subr.bf16.mxu0 0
      %564 = vmatpush2.bf16.msra.mxu0 0
      %565 = vmatprep.subr.bf16.mxu0 0
      %566 = vmatpush2.bf16.msra.mxu0 0
      %567 = vmatprep.subr.bf16.mxu0 0
      %568 = vmatpush2.bf16.msra.mxu0 0
      %569 = vmatprep.subr.bf16.mxu0 0
      %570 = vmatpush2.bf16.msra.mxu0 0
      %571 = vmatprep.subr.bf16.mxu0 0
      %572 = vmatpush2.bf16.msra.mxu0 0
      %573 = vmatprep.subr.bf16.mxu0 0
      %574 = vmatpush2.bf16.msra.mxu0 0
      %575 = vmatprep.subr.bf16.mxu0 0
      %576 = vmatpush2.bf16.msra.mxu0 0
      %577 = vmatprep.mubr.bf16.mxu0 0
      %578 = vmatmul.mubr.bf16.gmra.mxu0 %v543
      %v579 = vpop.f32.mrf.mxu0
      %v580 = vadd.f32 0.0, %v579
      %v581 = vpop.f32.mrf.mxu0
      %v582 = vpop.f32.mrf.mxu0
      %v583 = vpop.f32.mrf.mxu0
      %584 = vdwg.mxu0
      %v585 = vadd.f32 %v539, %v580
      %v586 = vxor.u32 %v585, 2147483648
      %v587 = vmul.f32 %v586, 1.442695
      %v588 = vpow.pop %v587
      %v589 = vadd.f32 %v588, 1.0
      %v590 = vrcp.pop %v589
      %v591 = vmul.f32 1.0, %v590
      %v592 = vtanh.pop %v585
      %v593 = vmul.f32 %v591, %v519
      %595 = vrot.lane.b32.xlu0 %v592, 64
      %v596 = vpop.permute.xlu0 %595
      %v598 = vmul.f32 %v591, %v596
      %600 = vrot.lane.b32.xlu0 %v598, 32
      %v601 = vpop.permute.xlu0 %600
      %v603 = vadd.f32 %v593, %v601
      %v604 = vtanh.pop %v603
      %606 = vrot.lane.b32.xlu0 %v604, 64
      %v607 = vpop.permute.xlu0 %606
      %v609 = vmul.f32 %v591, %v607
      %v610 = vpack.c.bf16 %v609, %v609
      %v612 = vunpack.c.l.b16 %v610
      %v613 = vpack.c.b16 %v612, %v612
      %614 = vrot.lane.b32.xlu0 %v613, 32
      %v615 = vpop.permute.xlu0 %614
      %s617 = smul.addr %s536, 4
      %s618 = scalar_lea.vmem %s245, %s617
      %619 = vst.msk [vmem:[%s618] sm:$0xf] %vm364, %v615
      %s620 = ssub.s32 4, %s17
      %s621 = smul.u32 %s620, 8
      %s622 = scalar_lea.vmem %s222, %s621
      %v623 = vld [vmem:[%s622] sm:$0xff]
      %624 = vrot.lane.b32.xlu0 %v610, 32
      %v625 = vpop.permute.xlu0 %624
      %v627 = vsel %vm282, %v625, 0
      %629 = vmatprep.subr.bf16.mxu0 0
      %630 = vmatpush1.bf16.msra.mxu0 0
      %631 = vmatprep.subr.bf16.mxu0 0
      %632 = vmatpush1.bf16.msra.mxu0 0
      %633 = vmatprep.subr.bf16.mxu0 0
      %634 = vmatpush1.bf16.msra.mxu0 0
      %635 = vmatprep.subr.bf16.mxu0 0
      %636 = vmatpush1.bf16.msra.mxu0 0
      %637 = vmatprep.subr.bf16.mxu0 0
      %638 = vmatpush1.bf16.msra.mxu0 0
      %639 = vmatprep.subr.bf16.mxu0 0
      %640 = vmatpush1.bf16.msra.mxu0 0
      %641 = vmatprep.subr.bf16.mxu0 0
      %642 = vmatpush1.bf16.msra.mxu0 %v279
      %643 = vmatprep.subr.bf16.mxu0 0
      %644 = vmatpush1.bf16.msra.mxu0 %v278
      %645 = vmatprep.subr.bf16.mxu0 0
      %646 = vmatpush2.bf16.msra.mxu0 0
      %647 = vmatprep.subr.bf16.mxu0 0
      %648 = vmatpush2.bf16.msra.mxu0 0
      %649 = vmatprep.subr.bf16.mxu0 0
      %650 = vmatpush2.bf16.msra.mxu0 0
      %651 = vmatprep.subr.bf16.mxu0 0
      %652 = vmatpush2.bf16.msra.mxu0 0
      %653 = vmatprep.subr.bf16.mxu0 0
      %654 = vmatpush2.bf16.msra.mxu0 0
      %655 = vmatprep.subr.bf16.mxu0 0
      %656 = vmatpush2.bf16.msra.mxu0 0
      %657 = vmatprep.subr.bf16.mxu0 0
      %658 = vmatpush2.bf16.msra.mxu0 0
      %659 = vmatprep.subr.bf16.mxu0 0
      %660 = vmatpush2.bf16.msra.mxu0 0
      %661 = vmatprep.mubr.bf16.mxu0 0
      %662 = vmatmul.mubr.bf16.gmra.mxu0 %v627
      %v663 = vpop.f32.mrf.mxu0
      %v664 = vadd.f32 0.0, %v663
      %v665 = vpop.f32.mrf.mxu0
      %v666 = vpop.f32.mrf.mxu0
      %v667 = vpop.f32.mrf.mxu0
      %668 = vdwg.mxu0
      %v669 = vadd.f32 %v623, %v664
      %v670 = vxor.u32 %v669, 2147483648
      %v671 = vmul.f32 %v670, 1.442695
      %v672 = vpow.pop %v671
      %v673 = vadd.f32 %v672, 1.0
      %v674 = vrcp.pop %v673
      %v675 = vmul.f32 1.0, %v674
      %v676 = vtanh.pop %v669
      %v677 = vmul.f32 %v675, %v603
      %679 = vrot.lane.b32.xlu0 %v676, 64
      %v680 = vpop.permute.xlu0 %679
      %v682 = vmul.f32 %v675, %v680
      %684 = vrot.lane.b32.xlu0 %v682, 32
      %v685 = vpop.permute.xlu0 %684
      %v687 = vadd.f32 %v677, %v685
      %v688 = vtanh.pop %v687
      %690 = vrot.lane.b32.xlu0 %v688, 64
      %v691 = vpop.permute.xlu0 %690
      %v693 = vmul.f32 %v675, %v691
      %v694 = vpack.c.bf16 %v693, %v693
      %v696 = vunpack.c.l.b16 %v694
      %v697 = vpack.c.b16 %v696, %v696
      %698 = vrot.lane.b32.xlu0 %v697, 32
      %v699 = vpop.permute.xlu0 %698
      %s701 = smul.addr %s620, 4
      %s702 = scalar_lea.vmem %s245, %s701
      %703 = vst.msk [vmem:[%s702] sm:$0xf] %vm364, %v699
      %s704 = smul.u32 %s17, 4294967293
      %s705 = sadd.s32 %s704, 5
      %s706 = smul.u32 %s705, 8
      %s707 = scalar_lea.vmem %s222, %s706
      %v708 = vld [vmem:[%s707] sm:$0xff]
      %709 = vrot.lane.b32.xlu0 %v694, 32
      %v710 = vpop.permute.xlu0 %709
      %v712 = vsel %vm282, %v710, 0
      %714 = vmatprep.subr.bf16.mxu0 0
      %715 = vmatpush1.bf16.msra.mxu0 0
      %716 = vmatprep.subr.bf16.mxu0 0
      %717 = vmatpush1.bf16.msra.mxu0 0
      %718 = vmatprep.subr.bf16.mxu0 0
      %719 = vmatpush1.bf16.msra.mxu0 0
      %720 = vmatprep.subr.bf16.mxu0 0
      %721 = vmatpush1.bf16.msra.mxu0 0
      %722 = vmatprep.subr.bf16.mxu0 0
      %723 = vmatpush1.bf16.msra.mxu0 0
      %724 = vmatprep.subr.bf16.mxu0 0
      %725 = vmatpush1.bf16.msra.mxu0 0
      %726 = vmatprep.subr.bf16.mxu0 0
      %727 = vmatpush1.bf16.msra.mxu0 %v279
      %728 = vmatprep.subr.bf16.mxu0 0
      %729 = vmatpush1.bf16.msra.mxu0 %v278
      %730 = vmatprep.subr.bf16.mxu0 0
      %731 = vmatpush2.bf16.msra.mxu0 0
      %732 = vmatprep.subr.bf16.mxu0 0
      %733 = vmatpush2.bf16.msra.mxu0 0
      %734 = vmatprep.subr.bf16.mxu0 0
      %735 = vmatpush2.bf16.msra.mxu0 0
      %736 = vmatprep.subr.bf16.mxu0 0
      %737 = vmatpush2.bf16.msra.mxu0 0
      %738 = vmatprep.subr.bf16.mxu0 0
      %739 = vmatpush2.bf16.msra.mxu0 0
      %740 = vmatprep.subr.bf16.mxu0 0
      %741 = vmatpush2.bf16.msra.mxu0 0
      %742 = vmatprep.subr.bf16.mxu0 0
      %743 = vmatpush2.bf16.msra.mxu0 0
      %744 = vmatprep.subr.bf16.mxu0 0
      %745 = vmatpush2.bf16.msra.mxu0 0
      %746 = vmatprep.mubr.bf16.mxu0 0
      %747 = vmatmul.mubr.bf16.gmra.mxu0 %v712
      %v748 = vpop.f32.mrf.mxu0
      %v749 = vadd.f32 0.0, %v748
      %v750 = vpop.f32.mrf.mxu0
      %v751 = vpop.f32.mrf.mxu0
      %v752 = vpop.f32.mrf.mxu0
      %753 = vdwg.mxu0
      %v754 = vadd.f32 %v708, %v749
      %v755 = vxor.u32 %v754, 2147483648
      %v756 = vmul.f32 %v755, 1.442695
      %v757 = vpow.pop %v756
      %v758 = vadd.f32 %v757, 1.0
      %v759 = vrcp.pop %v758
      %v760 = vmul.f32 1.0, %v759
      %v761 = vtanh.pop %v754
      %v762 = vmul.f32 %v760, %v687
      %764 = vrot.lane.b32.xlu0 %v761, 64
      %v765 = vpop.permute.xlu0 %764
      %v767 = vmul.f32 %v760, %v765
      %769 = vrot.lane.b32.xlu0 %v767, 32
      %v770 = vpop.permute.xlu0 %769
      %v772 = vadd.f32 %v762, %v770
      %v773 = vtanh.pop %v772
      %775 = vrot.lane.b32.xlu0 %v773, 64
      %v776 = vpop.permute.xlu0 %775
      %v778 = vmul.f32 %v760, %v776
      %v779 = vpack.c.bf16 %v778, %v778
      %v781 = vunpack.c.l.b16 %v779
      %v782 = vpack.c.b16 %v781, %v781
      %783 = vrot.lane.b32.xlu0 %v782, 32
      %v784 = vpop.permute.xlu0 %783
      %s786 = smul.addr %s705, 4
      %s787 = scalar_lea.vmem %s245, %s786
      %788 = vst.msk [vmem:[%s787] sm:$0xf] %vm364, %v784
      %s789 = smul.u32 %s17, 4294967291
      %s790 = sadd.s32 %s789, 6
      %s791 = smul.u32 %s790, 8
      %s792 = scalar_lea.vmem %s222, %s791
      %v793 = vld [vmem:[%s792] sm:$0xff]
      %794 = vrot.lane.b32.xlu0 %v779, 32
      %v795 = vpop.permute.xlu0 %794
      %v797 = vsel %vm282, %v795, 0
      %799 = vmatprep.subr.bf16.mxu0 0
      %800 = vmatpush1.bf16.msra.mxu0 0
      %801 = vmatprep.subr.bf16.mxu0 0
      %802 = vmatpush1.bf16.msra.mxu0 0
      %803 = vmatprep.subr.bf16.mxu0 0
      %804 = vmatpush1.bf16.msra.mxu0 0
      %805 = vmatprep.subr.bf16.mxu0 0
      %806 = vmatpush1.bf16.msra.mxu0 0
      %807 = vmatprep.subr.bf16.mxu0 0
      %808 = vmatpush1.bf16.msra.mxu0 0
      %809 = vmatprep.subr.bf16.mxu0 0
      %810 = vmatpush1.bf16.msra.mxu0 0
      %811 = vmatprep.subr.bf16.mxu0 0
      %812 = vmatpush1.bf16.msra.mxu0 %v279
      %813 = vmatprep.subr.bf16.mxu0 0
      %814 = vmatpush1.bf16.msra.mxu0 %v278
      %815 = vmatprep.subr.bf16.mxu0 0
      %816 = vmatpush2.bf16.msra.mxu0 0
      %817 = vmatprep.subr.bf16.mxu0 0
      %818 = vmatpush2.bf16.msra.mxu0 0
      %819 = vmatprep.subr.bf16.mxu0 0
      %820 = vmatpush2.bf16.msra.mxu0 0
      %821 = vmatprep.subr.bf16.mxu0 0
      %822 = vmatpush2.bf16.msra.mxu0 0
      %823 = vmatprep.subr.bf16.mxu0 0
      %824 = vmatpush2.bf16.msra.mxu0 0
      %825 = vmatprep.subr.bf16.mxu0 0
      %826 = vmatpush2.bf16.msra.mxu0 0
      %827 = vmatprep.subr.bf16.mxu0 0
      %828 = vmatpush2.bf16.msra.mxu0 0
      %829 = vmatprep.subr.bf16.mxu0 0
      %830 = vmatpush2.bf16.msra.mxu0 0
      %831 = vmatprep.mubr.bf16.mxu0 0
      %832 = vmatmul.mubr.bf16.gmra.mxu0 %v797
      %v833 = vpop.f32.mrf.mxu0
      %v834 = vadd.f32 0.0, %v833
      %v835 = vpop.f32.mrf.mxu0
      %v836 = vpop.f32.mrf.mxu0
      %v837 = vpop.f32.mrf.mxu0
      %838 = vdwg.mxu0
      %v839 = vadd.f32 %v793, %v834
      %v840 = vxor.u32 %v839, 2147483648
      %v841 = vmul.f32 %v840, 1.442695
      %v842 = vpow.pop %v841
      %v843 = vadd.f32 %v842, 1.0
      %v844 = vrcp.pop %v843
      %v845 = vmul.f32 1.0, %v844
      %v846 = vtanh.pop %v839
      %v847 = vmul.f32 %v845, %v772
      %849 = vrot.lane.b32.xlu0 %v846, 64
      %v850 = vpop.permute.xlu0 %849
      %v852 = vmul.f32 %v845, %v850
      %854 = vrot.lane.b32.xlu0 %v852, 32
      %v855 = vpop.permute.xlu0 %854
      %v857 = vadd.f32 %v847, %v855
      %v858 = vtanh.pop %v857
      %860 = vrot.lane.b32.xlu0 %v858, 64
      %v861 = vpop.permute.xlu0 %860
      %v863 = vmul.f32 %v845, %v861
      %v864 = vpack.c.bf16 %v863, %v863
      %v866 = vunpack.c.l.b16 %v864
      %v867 = vpack.c.b16 %v866, %v866
      %868 = vrot.lane.b32.xlu0 %v867, 32
      %v869 = vpop.permute.xlu0 %868
      %s871 = smul.addr %s790, 4
      %s872 = scalar_lea.vmem %s245, %s871
      %873 = vst.msk [vmem:[%s872] sm:$0xf] %vm364, %v869
      %s874 = smul.u32 %s17, 4294967289
      %s875 = sadd.s32 %s874, 7
      %s876 = smul.u32 %s875, 8
      %s877 = scalar_lea.vmem %s222, %s876
      %v878 = vld [vmem:[%s877] sm:$0xff]
      %879 = vrot.lane.b32.xlu0 %v864, 32
      %v880 = vpop.permute.xlu0 %879
      %v882 = vsel %vm282, %v880, 0
      %884 = vmatprep.subr.bf16.mxu0 0
      %885 = vmatpush1.bf16.msra.mxu0 0
      %886 = vmatprep.subr.bf16.mxu0 0
      %887 = vmatpush1.bf16.msra.mxu0 0
      %888 = vmatprep.subr.bf16.mxu0 0
      %889 = vmatpush1.bf16.msra.mxu0 0
      %890 = vmatprep.subr.bf16.mxu0 0
      %891 = vmatpush1.bf16.msra.mxu0 0
      %892 = vmatprep.subr.bf16.mxu0 0
      %893 = vmatpush1.bf16.msra.mxu0 0
      %894 = vmatprep.subr.bf16.mxu0 0
      %895 = vmatpush1.bf16.msra.mxu0 0
      %896 = vmatprep.subr.bf16.mxu0 0
      %897 = vmatpush1.bf16.msra.mxu0 %v279
      %898 = vmatprep.subr.bf16.mxu0 0
      %899 = vmatpush1.bf16.msra.mxu0 %v278
      %900 = vmatprep.subr.bf16.mxu0 0
      %901 = vmatpush2.bf16.msra.mxu0 0
      %902 = vmatprep.subr.bf16.mxu0 0
      %903 = vmatpush2.bf16.msra.mxu0 0
      %904 = vmatprep.subr.bf16.mxu0 0
      %905 = vmatpush2.bf16.msra.mxu0 0
      %906 = vmatprep.subr.bf16.mxu0 0
      %907 = vmatpush2.bf16.msra.mxu0 0
      %908 = vmatprep.subr.bf16.mxu0 0
      %909 = vmatpush2.bf16.msra.mxu0 0
      %910 = vmatprep.subr.bf16.mxu0 0
      %911 = vmatpush2.bf16.msra.mxu0 0
      %912 = vmatprep.subr.bf16.mxu0 0
      %913 = vmatpush2.bf16.msra.mxu0 0
      %914 = vmatprep.subr.bf16.mxu0 0
      %915 = vmatpush2.bf16.msra.mxu0 0
      %916 = vmatprep.mubr.bf16.mxu0 0
      %917 = vmatmul.mubr.bf16.gmra.mxu0 %v882
      %v918 = vpop.f32.mrf.mxu0
      %v919 = vadd.f32 0.0, %v918
      %v920 = vpop.f32.mrf.mxu0
      %v921 = vpop.f32.mrf.mxu0
      %v922 = vpop.f32.mrf.mxu0
      %923 = vdwg.mxu0
      %v924 = vadd.f32 %v878, %v919
      %v925 = vxor.u32 %v924, 2147483648
      %v926 = vmul.f32 %v925, 1.442695
      %v927 = vpow.pop %v926
      %v928 = vadd.f32 %v927, 1.0
      %v929 = vrcp.pop %v928
      %v930 = vmul.f32 1.0, %v929
      %v931 = vtanh.pop %v924
      %v932 = vmul.f32 %v930, %v857
      %934 = vrot.lane.b32.xlu0 %v931, 64
      %v935 = vpop.permute.xlu0 %934
      %v937 = vmul.f32 %v930, %v935
      %939 = vrot.lane.b32.xlu0 %v937, 32
      %v940 = vpop.permute.xlu0 %939
      %v942 = vadd.f32 %v932, %v940
      %v943 = vtanh.pop %v942
      %945 = vrot.lane.b32.xlu0 %v943, 64
      %v946 = vpop.permute.xlu0 %945
      %v948 = vmul.f32 %v930, %v946
      %v949 = vpack.c.bf16 %v948, %v948
      %v951 = vunpack.c.l.b16 %v949
      %v952 = vpack.c.b16 %v951, %v951
      %953 = vrot.lane.b32.xlu0 %v952, 32
      %v954 = vpop.permute.xlu0 %953
      %s956 = smul.addr %s875, 4
      %s957 = scalar_lea.vmem %s245, %s956
      %958 = vst.msk [vmem:[%s957] sm:$0xf] %vm364, %v954
      %960 = vrot.lane.b32.xlu0 %v948, 32
      %v961 = vpop.permute.xlu0 %960
      %963 = vst.msk [vmem:[#allocation2] sm:$0xff] %vm282, %v961
      %965 = vrot.lane.b32.xlu0 %v942, 96
      %v966 = vpop.permute.xlu0 %965
      %968 = vst.msk [vmem:[#allocation3] sm:$0xff] %vm282, %v966
      %s969 = smul.u32 %s18, 2
      %s970 = ssub.s32 0, %s969
      %s971 = smul.u32 %s17, %s970
      %s972 = sadd.s32 %s18, %s971
      %s973 = smul.u32 8, %s972
      %p974 = scmp.lt.s32.totalorder %s17, 1
      %s975 = scalar_select %p974, %s17, 1
      %p976 = scmp.lt.s32.totalorder %s973, 7
      %s977 = scalar_select %p976, %s973, 7
      %s978 = smul.addr %s975, 8
      %s979 = sadd.s32 %s977, %s978
      %s980 = smul.addr %s979, 4
      %s981 = scalar_lea.vmem %s2, %s980
      // Predicated region
      $region33: #{_lambda_.2} parent=27 // pred_check
        %p982 = pneg %p115
      $region34: #{_lambda_.2} parent=27 // pred_check_branch
        %984 = sbr.rel (%p982) target = $region36
      $region35: #{_lambda_.2} parent=27 // pred_region
        %s985 = smul.u32 %s18, 2
        %s986 = ssub.s32 0, %s985
        %s987 = smul.u32 %s17, %s986
        %s988 = sadd.s32 %s18, %s987
        %s989 = smul.u32 8, %s988
      $region36: #{_lambda_.2} parent=27 // pred_fallthru
        _
    $region28: #{_lambda_.2} parent=5 // pred_fallthru
      _
    %p990 = scmp.le.s32.totalorder 2, %s8
    // Predicated region
    $region37: #{_lambda_.2} parent=5 // pred_check
      %p991 = pneg %p990
    $region38: #{_lambda_.2} parent=5 // pred_check_branch
      %993 = sbr.rel (%p991) target = $region40
    $region39: #{_lambda_.2} parent=5 // pred_region
      %s994 = ssub.s32 %s8, 2
      // Predicated region
      $region41: #{_lambda_.2} parent=39 // pred_check
        %p995 = pneg %p121
      $region42: #{_lambda_.2} parent=39 // pred_check_branch
        %997 = sbr.rel (%p995) target = $region44
      $region43: #{_lambda_.2} parent=39 // pred_region
        %s998 = smul.u32 %s20, 2
        %s999 = ssub.s32 0, %s998
        %s1000 = smul.u32 %s19, %s999
        %s1001 = sadd.s32 %s20, %s1000
        %s1002 = smul.u32 8, %s1001
        %p1003 = scmp.lt.s32.totalorder %s19, 1
        %s1004 = scalar_select %p1003, %s19, 1
        %p1005 = scmp.lt.s32.totalorder %s1002, 7
        %s1006 = scalar_select %p1005, %s1002, 7
        %s1007 = smul.addr %s1004, 8
        %s1008 = sadd.s32 %s1006, %s1007
        %s1009 = smul.addr %s1008, 4
        %s1010 = scalar_lea.vmem %s2, %s1009
      $region44: #{_lambda_.2} parent=39 // pred_fallthru
        _
    $region40: #{_lambda_.2} parent=5 // pred_fallthru
      _
  $region6: #{_lambda_.2} parent=0 // loop_footer
    %s12 = sadd.s32 1, %s8
  $region7: #{_lambda_.2} parent=0 // loop_footer_branch
    %7 = sbr.rel target = $region3
  $region8: #{_lambda_.2} parent=0 // loop_exit
    _

</llo_original>
